<compile_context>
chip_gen: v7x
topology: tpu7x:2x2x1
jax: 0.10.0
libtpu: 0.0.40
codegen_flags: <defaults>
</compile_context>

<pallas_src>
import functools

import jax
import jax.numpy as jnp
from jax import lax
from jax.experimental import pallas as pl
from jax.experimental.pallas import tpu as pltpu

_EPS = 1e-5  # PyTorch GroupNorm default eps


def ela_kernel(x_ref, pool_ref, selm_ref, selt_ref, mgc_ref, mcg_ref,
               ecat_ref, shift_ref, w_ref, gamma_ref, beta_ref, o_ref,
               *, K, H, W):
    f32 = jnp.float32
    L = H * W

    x = x_ref[0].astype(f32)                                     # (BC, L) lane-dense

    # (1) Strip pooling on the MXU: xs = [mean over W | mean over H] -> (BC, H+W).
    xs = jnp.dot(x, pool_ref[...], preferred_element_type=f32)

    # (2) Shared depthwise Conv1d ('same', zero-pad per strip): one tiny MXU
    #     matmul per tap against a constant shift+edge-mask matrix (no concat,
    #     no unaligned lane slices; weights come pre-shaped as (K, BC, 1)).
    y = jnp.zeros_like(xs)
    for k in range(K):                                           # K static & small
        y = y + w_ref[k] * jnp.dot(xs, shift_ref[k],
                                   preferred_element_type=f32)

    # (3) GroupNorm (two-pass, biased variance) + sigmoid.  Stats for both
    #     strips are stacked as width-2 RHS matmuls against constant
    #     group-membership matrices (block-diagonal over fused batches).
    selm = selm_ref[...]                                         # (S, 2)  per-strip mean weights
    selt = selt_ref[...]                                         # (2, S)  per-strip broadcast-back
    mgc = mgc_ref[...]                                           # (BG, BC) group-mean (1/cg entries)
    mcg = mcg_ref[...]                                           # (BC, BG) group membership

    m_c = jnp.dot(y, selm, preferred_element_type=f32)           # (BC, 2) per-channel strip means
    m_g = jnp.dot(mgc, m_c, preferred_element_type=f32)          # (BG, 2) per-(batch,group) means
    mean = jnp.dot(jnp.dot(mcg, m_g, preferred_element_type=f32),
                   selt, preferred_element_type=f32)             # (BC, S)
    d = y - mean
    v_c = jnp.dot(d * d, selm, preferred_element_type=f32)       # (BC, 2)
    v_g = jnp.dot(mgc, v_c, preferred_element_type=f32)          # (BG, 2) biased variance
    var = jnp.dot(jnp.dot(mcg, v_g, preferred_element_type=f32),
                  selt, preferred_element_type=f32)              # (BC, S)

    a = jax.nn.sigmoid(d * lax.rsqrt(var + _EPS) * gamma_ref[...]
                       + beta_ref[...])                          # (BC, S)

    # (4) Expand both attention strips to the full map with one MXU matmul;
    #     the two halves are 128-lane aligned, so the final multiply + store
    #     are fully lane-dense (one unmasked vst per output vreg).
    a2 = jnp.dot(a, ecat_ref[...], preferred_element_type=f32)   # (BC, 2*L)
    o_ref[0] = (x * (a2[:, :L] * a2[:, L:])).astype(o_ref.dtype)


def _pick_batch_block(batch):
    """v5e/v6e (1 TC): fuse the whole batch into one grid step (per-step
    overhead dominates at these shapes).  v7x (2 TCs): keep >= 2 parallel
    grid steps so both TensorCores get work."""
    kind = ""
    try:
        kind = jax.devices()[0].device_kind.lower()
    except Exception:
        pass
    if batch >= 2 and ("v7" in kind or "7x" in kind):
        return 1
    return batch


def ela_forward(x, conv_w, gn_w, gn_b, *, K, G, batch_block=None):
    B, C, H, W = x.shape
    assert C % G == 0
    L, S = H * W, H + W
    BB = _pick_batch_block(B) if batch_block is None else batch_block
    assert B % BB == 0
    steps = B // BB
    BC, BG = BB * C, BB * G
    cg = C // G
    pad = K // 2
    f32 = jnp.float32

    # ---------------- constants, hoisted out of the kernel ----------------
    ii = jnp.arange(L)[:, None]                       # flattened index h*W + w
    jj = jnp.arange(S)[None, :]                       # [0,H) H-strip, [H,S) W-strip
    pool = jnp.where(jj < H,
                     ((ii // W) == jj).astype(f32) / W,
                     ((ii % W) == (jj - H)).astype(f32) / H)             # (L, S)

    js = jnp.arange(S)
    is_h = js < H
    sel_m = jnp.stack([jnp.where(is_h, 1.0 / H, 0.0),
                       jnp.where(is_h, 0.0, 1.0 / W)], axis=1).astype(f32)   # (S, 2)
    sel_t = jnp.stack([is_h.astype(f32), (~is_h).astype(f32)], axis=0)       # (2, S)

    gg = jnp.arange(BG)[:, None]
    cc = jnp.arange(BC)[None, :]
    member = ((gg // G) == (cc // C)) & ((gg % G) == ((cc % C) // cg))       # (BG, BC)
    m_gc = member.astype(f32) / float(cg)                                    # group-mean weights
    m_cg = member.astype(f32).T                                              # (BC, BG)

    jj2 = jnp.arange(S)[:, None]
    kk2 = jnp.arange(2 * L)[None, :]
    e_cat = jnp.where(kk2 < L,
                      (jj2 < H) & ((kk2 // W) == jj2),
                      (jj2 >= H) & (((kk2 - L) % W) == (jj2 - H))).astype(f32)  # (S, 2L)

    kk = jnp.arange(K)[:, None, None]
    i_s = jnp.arange(S)[None, :, None]
    j_s = jnp.arange(S)[None, None, :]
    same_strip = ((i_s < H) & (j_s < H)) | ((i_s >= H) & (j_s >= H))
    shift_m = ((i_s == j_s + (kk - pad)) & same_strip).astype(f32)           # (K, S, S)

    w3 = jnp.tile(conv_w.astype(f32).T.reshape(K, C, 1), (1, BB, 1))         # (K, BC, 1)
    gamma_t = jnp.tile(gn_w.astype(f32).reshape(C, 1), (BB, 1))              # (BC, 1)
    beta_t = jnp.tile(gn_b.astype(f32).reshape(C, 1), (BB, 1))               # (BC, 1)

    # Lane-dense layout: H*W on lanes (free contiguous reshape of NCHW).
    x2d = x.reshape(steps, BC, L)

    c2 = lambda i: (0, 0)
    c3 = lambda i: (0, 0, 0)
    kern = functools.partial(ela_kernel, K=K, H=H, W=W)

    out = pl.pallas_call(
        kern,
        out_shape=jax.ShapeDtypeStruct((steps, BC, L), x.dtype),
        grid_spec=pl.GridSpec(
            grid=(steps,),
            in_specs=[
                pl.BlockSpec((1, BC, L), lambda i: (i, 0, 0)),
                pl.BlockSpec((L, S), c2),        # pooling matrix
                pl.BlockSpec((S, 2), c2),        # per-strip mean selection
                pl.BlockSpec((2, S), c2),        # per-strip broadcast-back
                pl.BlockSpec((BG, BC), c2),      # group-mean matrix
                pl.BlockSpec((BC, BG), c2),      # group membership
                pl.BlockSpec((S, 2 * L), c2),    # attention expansion
                pl.BlockSpec((K, S, S), c3),     # conv shift+mask matrices
                pl.BlockSpec((K, BC, 1), c3),    # conv weights (per tap)
                pl.BlockSpec((BC, 1), c2),       # GN gamma
                pl.BlockSpec((BC, 1), c2),       # GN beta
            ],
            out_specs=pl.BlockSpec((1, BC, L), lambda i: (i, 0, 0)),
        ),
        compiler_params=pltpu.CompilerParams(
            dimension_semantics=("parallel",)),
    )(x2d, pool, sel_m, sel_t, m_gc, m_cg, e_cat, shift_m, w3, gamma_t, beta_t)
    return out.reshape(B, C, H, W)


def ela_reference(x, conv_w, gn_w, gn_b, *, K, G):
    """Pure-JAX reference mirroring the PyTorch forward."""
    x = x.astype(jnp.float32)
    b, c, h, w = x.shape
    pad = K // 2

    def conv(z):  # z: (b, c, L), depthwise 'same'
        zp = jnp.pad(z, ((0, 0), (0, 0), (pad, pad)))
        L = z.shape[2]
        out = jnp.zeros_like(z)
        for k in range(K):
            out = out + conv_w[None, :, k, None] * zp[:, :, k:k + L]
        return out

    def gn_sig(z):  # z: (b, c, L)
        bb, cc, L = z.shape
        zg = z.reshape(bb, G, cc // G, L)
        mu = zg.mean(axis=(2, 3), keepdims=True)
        var = ((zg - mu) ** 2).mean(axis=(2, 3), keepdims=True)
        zn = ((zg - mu) / jnp.sqrt(var + _EPS)).reshape(bb, cc, L)
        return jax.nn.sigmoid(zn * gn_w.reshape(1, cc, 1) + gn_b.reshape(1, cc, 1))

    a_h = gn_sig(conv(jnp.mean(x, axis=3)))   # (b, c, h)
    a_w = gn_sig(conv(jnp.mean(x, axis=2)))   # (b, c, w)
    return a_h[:, :, :, None] * a_w[:, :, None, :] * x


if __name__ == "__main__":
    # ELA-T config: kernel_size=5, groups=in_channels (depthwise), num_groups=32
    B, C, H, W = 2, 64, 16, 16
    K, G = 5, 32

    key = jax.random.PRNGKey(0)
    kx, kw, kg, kb = jax.random.split(key, 4)
    x = jax.random.normal(kx, (B, C, H, W), jnp.float32)
    conv_w = jax.random.normal(kw, (C, K), jnp.float32) * 0.2    # Conv1d weight (C,1,K) squeezed
    gn_w = 1.0 + 0.1 * jax.random.normal(kg, (C,), jnp.float32)  # GroupNorm gamma
    gn_b = 0.1 * jax.random.normal(kb, (C,), jnp.float32)        # GroupNorm beta

    out = ela_forward(x, conv_w, gn_w, gn_b, K=K, G=G)
    out = jax.block_until_ready(out)

    ref = ela_reference(x, conv_w, gn_w, gn_b, K=K, G=G)
    assert out.shape == (B, C, H, W)
    err = float(jnp.max(jnp.abs(out - ref)))
    assert jnp.allclose(out, ref, rtol=1e-4, atol=2e-4), err

    print("KERNEL_OK")
</pallas_src>

<mosaic_0001>
module attributes {stable_mosaic.version = 11 : i64} {
  func.func @ela_kernel(%arg0: i32, %arg1: memref<1x128x256xf32, #tpu.memory_space<vmem>>, %arg2: memref<256x32xf32, #tpu.memory_space<vmem>>, %arg3: memref<32x2xf32, #tpu.memory_space<vmem>>, %arg4: memref<2x32xf32, #tpu.memory_space<vmem>>, %arg5: memref<64x128xf32, #tpu.memory_space<vmem>>, %arg6: memref<128x64xf32, #tpu.memory_space<vmem>>, %arg7: memref<32x512xf32, #tpu.memory_space<vmem>>, %arg8: memref<5x32x32xf32, #tpu.memory_space<vmem>>, %arg9: memref<5x128x1xf32, #tpu.memory_space<vmem>>, %arg10: memref<128x1xf32, #tpu.memory_space<vmem>>, %arg11: memref<128x1xf32, #tpu.memory_space<vmem>>, %arg12: memref<1x128x256xf32, #tpu.memory_space<vmem>>) attributes {dimension_semantics = [#tpu.dimension_semantics<parallel>], iteration_bounds = array<i64: 1>, scalar_prefetch = 0 : i64, scratch_operands = 0 : i64, tpu.core_type = #tpu.core_type<tc>, window_params = [{transform_indices = @transform_0, window_bounds = array<i64: 1, 128, 256>}, {pipeline_mode = #tpu.pipeline_mode<synchronous>, transform_indices = @transform_1, window_bounds = array<i64: 256, 32>}, {pipeline_mode = #tpu.pipeline_mode<synchronous>, transform_indices = @transform_2, window_bounds = array<i64: 32, 2>}, {pipeline_mode = #tpu.pipeline_mode<synchronous>, transform_indices = @transform_3, window_bounds = array<i64: 2, 32>}, {pipeline_mode = #tpu.pipeline_mode<synchronous>, transform_indices = @transform_4, window_bounds = array<i64: 64, 128>}, {pipeline_mode = #tpu.pipeline_mode<synchronous>, transform_indices = @transform_5, window_bounds = array<i64: 128, 64>}, {pipeline_mode = #tpu.pipeline_mode<synchronous>, transform_indices = @transform_6, window_bounds = array<i64: 32, 512>}, {pipeline_mode = #tpu.pipeline_mode<synchronous>, transform_indices = @transform_7, window_bounds = array<i64: 5, 32, 32>}, {pipeline_mode = #tpu.pipeline_mode<synchronous>, transform_indices = @transform_8, window_bounds = array<i64: 5, 128, 1>}, {pipeline_mode = #tpu.pipeline_mode<synchronous>, transform_indices = @transform_9, window_bounds = array<i64: 128, 1>}, {pipeline_mode = #tpu.pipeline_mode<synchronous>, transform_indices = @transform_10, window_bounds = array<i64: 128, 1>}, {transform_indices = @transform_11, window_bounds = array<i64: 1, 128, 256>}]} {
    %c0 = arith.constant 0 : index
    %c0_0 = arith.constant 0 : index
    %c0_1 = arith.constant 0 : index
    %0 = vector.load %arg1[%c0, %c0_0, %c0_1] : memref<1x128x256xf32, #tpu.memory_space<vmem>>, vector<1x128x256xf32>
    %1 = vector.shape_cast %0 : vector<1x128x256xf32> to vector<128x256xf32>
    %c0_2 = arith.constant 0 : index
    %c0_3 = arith.constant 0 : index
    %2 = vector.load %arg2[%c0_2, %c0_3] : memref<256x32xf32, #tpu.memory_space<vmem>>, vector<256x32xf32>
    %cst = arith.constant dense<0.000000e+00> : vector<128x32xf32>
    %3 = tpu.matmul %1, %2, %cst {dimension_numbers = #tpu.dot_dimension_numbers<[1], [0], [0], [1], [0, 0, 1, 1], [], []>} : vector<128x256xf32>, vector<256x32xf32>, vector<128x32xf32> -> vector<128x32xf32>
    %cst_4 = arith.constant 0.000000e+00 : f32
    %4 = vector.broadcast %cst_4 : f32 to vector<128x32xf32>
    %c0_5 = arith.constant 0 : index
    %c0_6 = arith.constant 0 : index
    %c0_7 = arith.constant 0 : index
    %5 = vector.load %arg9[%c0_5, %c0_6, %c0_7] : memref<5x128x1xf32, #tpu.memory_space<vmem>>, vector<1x128x1xf32>
    %6 = vector.shape_cast %5 : vector<1x128x1xf32> to vector<128x1xf32>
    %c0_8 = arith.constant 0 : index
    %c0_9 = arith.constant 0 : index
    %c0_10 = arith.constant 0 : index
    %7 = vector.load %arg8[%c0_8, %c0_9, %c0_10] : memref<5x32x32xf32, #tpu.memory_space<vmem>>, vector<1x32x32xf32>
    %8 = vector.shape_cast %7 : vector<1x32x32xf32> to vector<32x32xf32>
    %cst_11 = arith.constant dense<0.000000e+00> : vector<128x32xf32>
    %9 = tpu.matmul %3, %8, %cst_11 {dimension_numbers = #tpu.dot_dimension_numbers<[1], [0], [0], [1], [0, 0, 1, 1], [], []>} : vector<128x32xf32>, vector<32x32xf32>, vector<128x32xf32> -> vector<128x32xf32>
    %10 = vector.broadcast %6 : vector<128x1xf32> to vector<128x32xf32>
    %11 = arith.mulf %10, %9 : vector<128x32xf32>
    %12 = arith.addf %4, %11 : vector<128x32xf32>
    %c1 = arith.constant 1 : index
    %c0_12 = arith.constant 0 : index
    %c0_13 = arith.constant 0 : index
    %13 = vector.load %arg9[%c1, %c0_12, %c0_13] : memref<5x128x1xf32, #tpu.memory_space<vmem>>, vector<1x128x1xf32>
    %14 = vector.shape_cast %13 : vector<1x128x1xf32> to vector<128x1xf32>
    %c1_14 = arith.constant 1 : index
    %c0_15 = arith.constant 0 : index
    %c0_16 = arith.constant 0 : index
    %15 = vector.load %arg8[%c1_14, %c0_15, %c0_16] : memref<5x32x32xf32, #tpu.memory_space<vmem>>, vector<1x32x32xf32>
    %16 = vector.shape_cast %15 : vector<1x32x32xf32> to vector<32x32xf32>
    %cst_17 = arith.constant dense<0.000000e+00> : vector<128x32xf32>
    %17 = tpu.matmul %3, %16, %cst_17 {dimension_numbers = #tpu.dot_dimension_numbers<[1], [0], [0], [1], [0, 0, 1, 1], [], []>} : vector<128x32xf32>, vector<32x32xf32>, vector<128x32xf32> -> vector<128x32xf32>
    %18 = vector.broadcast %14 : vector<128x1xf32> to vector<128x32xf32>
    %19 = arith.mulf %18, %17 : vector<128x32xf32>
    %20 = arith.addf %12, %19 : vector<128x32xf32>
    %c2 = arith.constant 2 : index
    %c0_18 = arith.constant 0 : index
    %c0_19 = arith.constant 0 : index
    %21 = vector.load %arg9[%c2, %c0_18, %c0_19] : memref<5x128x1xf32, #tpu.memory_space<vmem>>, vector<1x128x1xf32>
    %22 = vector.shape_cast %21 : vector<1x128x1xf32> to vector<128x1xf32>
    %c2_20 = arith.constant 2 : index
    %c0_21 = arith.constant 0 : index
    %c0_22 = arith.constant 0 : index
    %23 = vector.load %arg8[%c2_20, %c0_21, %c0_22] : memref<5x32x32xf32, #tpu.memory_space<vmem>>, vector<1x32x32xf32>
    %24 = vector.shape_cast %23 : vector<1x32x32xf32> to vector<32x32xf32>
    %cst_23 = arith.constant dense<0.000000e+00> : vector<128x32xf32>
    %25 = tpu.matmul %3, %24, %cst_23 {dimension_numbers = #tpu.dot_dimension_numbers<[1], [0], [0], [1], [0, 0, 1, 1], [], []>} : vector<128x32xf32>, vector<32x32xf32>, vector<128x32xf32> -> vector<128x32xf32>
    %26 = vector.broadcast %22 : vector<128x1xf32> to vector<128x32xf32>
    %27 = arith.mulf %26, %25 : vector<128x32xf32>
    %28 = arith.addf %20, %27 : vector<128x32xf32>
    %c3 = arith.constant 3 : index
    %c0_24 = arith.constant 0 : index
    %c0_25 = arith.constant 0 : index
    %29 = vector.load %arg9[%c3, %c0_24, %c0_25] : memref<5x128x1xf32, #tpu.memory_space<vmem>>, vector<1x128x1xf32>
    %30 = vector.shape_cast %29 : vector<1x128x1xf32> to vector<128x1xf32>
    %c3_26 = arith.constant 3 : index
    %c0_27 = arith.constant 0 : index
    %c0_28 = arith.constant 0 : index
    %31 = vector.load %arg8[%c3_26, %c0_27, %c0_28] : memref<5x32x32xf32, #tpu.memory_space<vmem>>, vector<1x32x32xf32>
    %32 = vector.shape_cast %31 : vector<1x32x32xf32> to vector<32x32xf32>
    %cst_29 = arith.constant dense<0.000000e+00> : vector<128x32xf32>
    %33 = tpu.matmul %3, %32, %cst_29 {dimension_numbers = #tpu.dot_dimension_numbers<[1], [0], [0], [1], [0, 0, 1, 1], [], []>} : vector<128x32xf32>, vector<32x32xf32>, vector<128x32xf32> -> vector<128x32xf32>
    %34 = vector.broadcast %30 : vector<128x1xf32> to vector<128x32xf32>
    %35 = arith.mulf %34, %33 : vector<128x32xf32>
    %36 = arith.addf %28, %35 : vector<128x32xf32>
    %c4 = arith.constant 4 : index
    %c0_30 = arith.constant 0 : index
    %c0_31 = arith.constant 0 : index
    %37 = vector.load %arg9[%c4, %c0_30, %c0_31] : memref<5x128x1xf32, #tpu.memory_space<vmem>>, vector<1x128x1xf32>
    %38 = vector.shape_cast %37 : vector<1x128x1xf32> to vector<128x1xf32>
    %c4_32 = arith.constant 4 : index
    %c0_33 = arith.constant 0 : index
    %c0_34 = arith.constant 0 : index
    %39 = vector.load %arg8[%c4_32, %c0_33, %c0_34] : memref<5x32x32xf32, #tpu.memory_space<vmem>>, vector<1x32x32xf32>
    %40 = vector.shape_cast %39 : vector<1x32x32xf32> to vector<32x32xf32>
    %cst_35 = arith.constant dense<0.000000e+00> : vector<128x32xf32>
    %41 = tpu.matmul %3, %40, %cst_35 {dimension_numbers = #tpu.dot_dimension_numbers<[1], [0], [0], [1], [0, 0, 1, 1], [], []>} : vector<128x32xf32>, vector<32x32xf32>, vector<128x32xf32> -> vector<128x32xf32>
    %42 = vector.broadcast %38 : vector<128x1xf32> to vector<128x32xf32>
    %43 = arith.mulf %42, %41 : vector<128x32xf32>
    %44 = arith.addf %36, %43 : vector<128x32xf32>
    %c0_36 = arith.constant 0 : index
    %c0_37 = arith.constant 0 : index
    %45 = vector.load %arg3[%c0_36, %c0_37] : memref<32x2xf32, #tpu.memory_space<vmem>>, vector<32x2xf32>
    %c0_38 = arith.constant 0 : index
    %c0_39 = arith.constant 0 : index
    %46 = vector.load %arg4[%c0_38, %c0_39] : memref<2x32xf32, #tpu.memory_space<vmem>>, vector<2x32xf32>
    %c0_40 = arith.constant 0 : index
    %c0_41 = arith.constant 0 : index
    %47 = vector.load %arg5[%c0_40, %c0_41] : memref<64x128xf32, #tpu.memory_space<vmem>>, vector<64x128xf32>
    %c0_42 = arith.constant 0 : index
    %c0_43 = arith.constant 0 : index
    %48 = vector.load %arg6[%c0_42, %c0_43] : memref<128x64xf32, #tpu.memory_space<vmem>>, vector<128x64xf32>
    %cst_44 = arith.constant dense<0.000000e+00> : vector<128x2xf32>
    %49 = tpu.matmul %44, %45, %cst_44 {dimension_numbers = #tpu.dot_dimension_numbers<[1], [0], [0], [1], [0, 0, 1, 1], [], []>} : vector<128x32xf32>, vector<32x2xf32>, vector<128x2xf32> -> vector<128x2xf32>
    %cst_45 = arith.constant dense<0.000000e+00> : vector<64x2xf32>
    %50 = tpu.matmul %47, %49, %cst_45 {dimension_numbers = #tpu.dot_dimension_numbers<[1], [0], [0], [1], [0, 0, 1, 1], [], []>} : vector<64x128xf32>, vector<128x2xf32>, vector<64x2xf32> -> vector<64x2xf32>
    %cst_46 = arith.constant dense<0.000000e+00> : vector<128x2xf32>
    %51 = tpu.matmul %48, %50, %cst_46 {dimension_numbers = #tpu.dot_dimension_numbers<[1], [0], [0], [1], [0, 0, 1, 1], [], []>} : vector<128x64xf32>, vector<64x2xf32>, vector<128x2xf32> -> vector<128x2xf32>
    %cst_47 = arith.constant dense<0.000000e+00> : vector<128x32xf32>
    %52 = tpu.matmul %51, %46, %cst_47 {dimension_numbers = #tpu.dot_dimension_numbers<[1], [0], [0], [1], [0, 0, 1, 1], [], []>} : vector<128x2xf32>, vector<2x32xf32>, vector<128x32xf32> -> vector<128x32xf32>
    %53 = arith.subf %44, %52 : vector<128x32xf32>
    %54 = arith.mulf %53, %53 : vector<128x32xf32>
    %cst_48 = arith.constant dense<0.000000e+00> : vector<128x2xf32>
    %55 = tpu.matmul %54, %45, %cst_48 {dimension_numbers = #tpu.dot_dimension_numbers<[1], [0], [0], [1], [0, 0, 1, 1], [], []>} : vector<128x32xf32>, vector<32x2xf32>, vector<128x2xf32> -> vector<128x2xf32>
    %cst_49 = arith.constant dense<0.000000e+00> : vector<64x2xf32>
    %56 = tpu.matmul %47, %55, %cst_49 {dimension_numbers = #tpu.dot_dimension_numbers<[1], [0], [0], [1], [0, 0, 1, 1], [], []>} : vector<64x128xf32>, vector<128x2xf32>, vector<64x2xf32> -> vector<64x2xf32>
    %cst_50 = arith.constant dense<0.000000e+00> : vector<128x2xf32>
    %57 = tpu.matmul %48, %56, %cst_50 {dimension_numbers = #tpu.dot_dimension_numbers<[1], [0], [0], [1], [0, 0, 1, 1], [], []>} : vector<128x64xf32>, vector<64x2xf32>, vector<128x2xf32> -> vector<128x2xf32>
    %cst_51 = arith.constant dense<0.000000e+00> : vector<128x32xf32>
    %58 = tpu.matmul %57, %46, %cst_51 {dimension_numbers = #tpu.dot_dimension_numbers<[1], [0], [0], [1], [0, 0, 1, 1], [], []>} : vector<128x2xf32>, vector<2x32xf32>, vector<128x32xf32> -> vector<128x32xf32>
    %cst_52 = arith.constant 9.99999974E-6 : f32
    %59 = vector.broadcast %cst_52 : f32 to vector<128x32xf32>
    %60 = arith.addf %58, %59 : vector<128x32xf32>
    %61 = math.rsqrt %60 : vector<128x32xf32>
    %62 = arith.mulf %53, %61 : vector<128x32xf32>
    %c0_53 = arith.constant 0 : index
    %c0_54 = arith.constant 0 : index
    %63 = vector.load %arg10[%c0_53, %c0_54] : memref<128x1xf32, #tpu.memory_space<vmem>>, vector<128x1xf32>
    %64 = vector.broadcast %63 : vector<128x1xf32> to vector<128x32xf32>
    %65 = arith.mulf %62, %64 : vector<128x32xf32>
    %c0_55 = arith.constant 0 : index
    %c0_56 = arith.constant 0 : index
    %66 = vector.load %arg11[%c0_55, %c0_56] : memref<128x1xf32, #tpu.memory_space<vmem>>, vector<128x1xf32>
    %67 = vector.broadcast %66 : vector<128x1xf32> to vector<128x32xf32>
    %68 = arith.addf %65, %67 : vector<128x32xf32>
    %69 = arith.negf %68 : vector<128x32xf32>
    %70 = math.exp %69 : vector<128x32xf32>
    %cst_57 = arith.constant 1.000000e+00 : f32
    %71 = vector.broadcast %cst_57 : f32 to vector<128x32xf32>
    %72 = arith.addf %71, %70 : vector<128x32xf32>
    %73 = arith.divf %71, %72 : vector<128x32xf32>
    %c0_58 = arith.constant 0 : index
    %c0_59 = arith.constant 0 : index
    %74 = vector.load %arg7[%c0_58, %c0_59] : memref<32x512xf32, #tpu.memory_space<vmem>>, vector<32x512xf32>
    %cst_60 = arith.constant dense<0.000000e+00> : vector<128x512xf32>
    %75 = tpu.matmul %73, %74, %cst_60 {dimension_numbers = #tpu.dot_dimension_numbers<[1], [0], [0], [1], [0, 0, 1, 1], [], []>} : vector<128x32xf32>, vector<32x512xf32>, vector<128x512xf32> -> vector<128x512xf32>
    %76 = vector.extract_strided_slice %75 {offsets = [0, 0], sizes = [128, 256], strides = [1, 1]} : vector<128x512xf32> to vector<128x256xf32>
    %77 = vector.extract_strided_slice %75 {offsets = [0, 256], sizes = [128, 256], strides = [1, 1]} : vector<128x512xf32> to vector<128x256xf32>
    %78 = arith.mulf %76, %77 : vector<128x256xf32>
    %79 = arith.mulf %1, %78 : vector<128x256xf32>
    %c0_61 = arith.constant 0 : index
    %c0_62 = arith.constant 0 : index
    %c0_63 = arith.constant 0 : index
    %80 = vector.load %arg12[%c0_61, %c0_62, %c0_63] : memref<1x128x256xf32, #tpu.memory_space<vmem>>, vector<1x128x256xf32>
    %81 = vector.shape_cast %80 : vector<1x128x256xf32> to vector<128x256xf32>
    %82 = vector.shape_cast %79 : vector<128x256xf32> to vector<1x128x256xf32>
    tpu.vector_store %arg12[%c0_61, %c0_62, %c0_63], %82 {strides = array<i32>} : memref<1x128x256xf32, #tpu.memory_space<vmem>>, vector<1x128x256xf32>,
    return
  }
  func.func @transform_0(%arg0: i32) -> (i32, i32, i32) {
    %c0_i32 = arith.constant 0 : i32
    %c0_i32_0 = arith.constant 0 : i32
    %c0_i32_1 = arith.constant 0 : i32
    return %arg0, %c0_i32, %c0_i32_0 : i32, i32, i32
  }
  func.func @transform_1(%arg0: i32) -> (i32, i32) {
    %c0_i32 = arith.constant 0 : i32
    %c0_i32_0 = arith.constant 0 : i32
    %c0_i32_1 = arith.constant 0 : i32
    return %c0_i32, %c0_i32_0 : i32, i32
  }
  func.func @transform_2(%arg0: i32) -> (i32, i32) {
    %c0_i32 = arith.constant 0 : i32
    %c0_i32_0 = arith.constant 0 : i32
    %c0_i32_1 = arith.constant 0 : i32
    return %c0_i32, %c0_i32_0 : i32, i32
  }
  func.func @transform_3(%arg0: i32) -> (i32, i32) {
    %c0_i32 = arith.constant 0 : i32
    %c0_i32_0 = arith.constant 0 : i32
    %c0_i32_1 = arith.constant 0 : i32
    return %c0_i32, %c0_i32_0 : i32, i32
  }
  func.func @transform_4(%arg0: i32) -> (i32, i32) {
    %c0_i32 = arith.constant 0 : i32
    %c0_i32_0 = arith.constant 0 : i32
    %c0_i32_1 = arith.constant 0 : i32
    return %c0_i32, %c0_i32_0 : i32, i32
  }
  func.func @transform_5(%arg0: i32) -> (i32, i32) {
    %c0_i32 = arith.constant 0 : i32
    %c0_i32_0 = arith.constant 0 : i32
    %c0_i32_1 = arith.constant 0 : i32
    return %c0_i32, %c0_i32_0 : i32, i32
  }
  func.func @transform_6(%arg0: i32) -> (i32, i32) {
    %c0_i32 = arith.constant 0 : i32
    %c0_i32_0 = arith.constant 0 : i32
    %c0_i32_1 = arith.constant 0 : i32
    return %c0_i32, %c0_i32_0 : i32, i32
  }
  func.func @transform_7(%arg0: i32) -> (i32, i32, i32) {
    %c0_i32 = arith.constant 0 : i32
    %c0_i32_0 = arith.constant 0 : i32
    %c0_i32_1 = arith.constant 0 : i32
    %c0_i32_2 = arith.constant 0 : i32
    return %c0_i32, %c0_i32_0, %c0_i32_1 : i32, i32, i32
  }
  func.func @transform_8(%arg0: i32) -> (i32, i32, i32) {
    %c0_i32 = arith.constant 0 : i32
    %c0_i32_0 = arith.constant 0 : i32
    %c0_i32_1 = arith.constant 0 : i32
    %c0_i32_2 = arith.constant 0 : i32
    return %c0_i32, %c0_i32_0, %c0_i32_1 : i32, i32, i32
  }
  func.func @transform_9(%arg0: i32) -> (i32, i32) {
    %c0_i32 = arith.constant 0 : i32
    %c0_i32_0 = arith.constant 0 : i32
    %c0_i32_1 = arith.constant 0 : i32
    return %c0_i32, %c0_i32_0 : i32, i32
  }
  func.func @transform_10(%arg0: i32) -> (i32, i32) {
    %c0_i32 = arith.constant 0 : i32
    %c0_i32_0 = arith.constant 0 : i32
    %c0_i32_1 = arith.constant 0 : i32
    return %c0_i32, %c0_i32_0 : i32, i32
  }
  func.func @transform_11(%arg0: i32) -> (i32, i32, i32) {
    %c0_i32 = arith.constant 0 : i32
    %c0_i32_0 = arith.constant 0 : i32
    %c0_i32_1 = arith.constant 0 : i32
    return %arg0, %c0_i32, %c0_i32_0 : i32, i32, i32
  }
}

</mosaic_0001>

<llo_original>
// kernel: tpu_custom_call.1
$region0: #{tpu_custom_call.1}
  #allocation0 [shape = 'u32[]', space=smem, size = 0x4, offset = 0x4, fixed_abs, tag = 'smem constant byte address 0x4 - core index']
  #allocation1 [shape = 'u32[144,128]{1,0:T(1,128)}', space=vmem, size = 0x12000, scoped, tag = 'internal scratch']
  %s0 = inlined_call_operand.vmem [shape: f32[1,128,256], index: 0, kind: input, shape index: {}]
  %s1 = inlined_call_operand.vmem [shape: f32[256,32], index: 1, kind: input, shape index: {}]
  %s2 = inlined_call_operand.vmem [shape: f32[32,2], index: 2, kind: input, shape index: {}]
  %s3 = inlined_call_operand.vmem [shape: f32[2,32], index: 3, kind: input, shape index: {}]
  %s4 = inlined_call_operand.vmem [shape: f32[64,128], index: 4, kind: input, shape index: {}]
  %s5 = inlined_call_operand.vmem [shape: f32[128,64], index: 5, kind: input, shape index: {}]
  %s6 = inlined_call_operand.vmem [shape: f32[32,512], index: 6, kind: input, shape index: {}]
  %s7 = inlined_call_operand.vmem [shape: f32[5,32,32], index: 7, kind: input, shape index: {}]
  %s8 = inlined_call_operand.vmem [shape: f32[5,128,1], index: 8, kind: input, shape index: {}]
  %s9 = inlined_call_operand.vmem [shape: f32[128,1], index: 9, kind: input, shape index: {}]
  %s10 = inlined_call_operand.vmem [shape: f32[128,1], index: 10, kind: input, shape index: {}]
  %s11 = inlined_call_operand.hbm [shape: f32[1,128,256], index: 11, kind: output, shape index: {}]
  %s12 = sld [smem:[#allocation0]]
  $region54: #{tpu_custom_call.1} parent=0
    _
  %s14 = ssub.s32 1, %s12
  %s15 = scalar_select 0, %s14, %s12
  $region1: #{tpu_custom_call.1} parent=0
    #allocation2 [shape = 'u8[131072]{0}', space=vmem, size = 0x20000, scoped, tag = 'output window, operand 0, single buffered']
    #allocation3 [shape = 's32[1]{0}', space=sflag, size = 0x4, scoped, tag = 'scoped memory for tpu_custom_call.1']
    %16 = vsyncpa [#allocation3], 0
    // Predicated region
    $region2: #{tpu_custom_call.1} parent=1 // pred_check
      _
    $region3: #{tpu_custom_call.1} parent=1 // pred_check_branch
      %18 = sbr.rel (0) target = $region5
    $region4: #{tpu_custom_call.1} parent=1 // pred_region
      _
    $region5: #{tpu_custom_call.1} parent=1 // pred_fallthru
      _
    // Predicated region
    $region6: #{tpu_custom_call.1} parent=1 // pred_check
      _
    $region7: #{tpu_custom_call.1} parent=1 // pred_check_branch
      %20 = sbr.rel (0) target = $region9
    $region8: #{tpu_custom_call.1} parent=1 // pred_region
      _
    $region9: #{tpu_custom_call.1} parent=1 // pred_fallthru
      _
    // Predicated region
    $region10: #{tpu_custom_call.1} parent=1 // pred_check
      _
    $region11: #{tpu_custom_call.1} parent=1 // pred_check_branch
      %22 = sbr.rel (0) target = $region13
    $region12: #{tpu_custom_call.1} parent=1 // pred_region
      _
    $region13: #{tpu_custom_call.1} parent=1 // pred_fallthru
      _
    // Predicated region
    $region14: #{tpu_custom_call.1} parent=1 // pred_check
      _
    $region15: #{tpu_custom_call.1} parent=1 // pred_check_branch
      %24 = sbr.rel (0) target = $region17
    $region16: #{tpu_custom_call.1} parent=1 // pred_region
      _
    $region17: #{tpu_custom_call.1} parent=1 // pred_fallthru
      _
    // Predicated region
    $region18: #{tpu_custom_call.1} parent=1 // pred_check
      _
    $region19: #{tpu_custom_call.1} parent=1 // pred_check_branch
      %26 = sbr.rel (0) target = $region21
    $region20: #{tpu_custom_call.1} parent=1 // pred_region
      _
    $region21: #{tpu_custom_call.1} parent=1 // pred_fallthru
      _
    // Predicated region
    $region22: #{tpu_custom_call.1} parent=1 // pred_check
      _
    $region23: #{tpu_custom_call.1} parent=1 // pred_check_branch
      %28 = sbr.rel (0) target = $region25
    $region24: #{tpu_custom_call.1} parent=1 // pred_region
      _
    $region25: #{tpu_custom_call.1} parent=1 // pred_fallthru
      _
    // Predicated region
    $region26: #{tpu_custom_call.1} parent=1 // pred_check
      _
    $region27: #{tpu_custom_call.1} parent=1 // pred_check_branch
      %30 = sbr.rel (0) target = $region29
    $region28: #{tpu_custom_call.1} parent=1 // pred_region
      _
    $region29: #{tpu_custom_call.1} parent=1 // pred_fallthru
      _
    // Predicated region
    $region30: #{tpu_custom_call.1} parent=1 // pred_check
      _
    $region31: #{tpu_custom_call.1} parent=1 // pred_check_branch
      %32 = sbr.rel (0) target = $region33
    $region32: #{tpu_custom_call.1} parent=1 // pred_region
      _
    $region33: #{tpu_custom_call.1} parent=1 // pred_fallthru
      _
    // Predicated region
    $region34: #{tpu_custom_call.1} parent=1 // pred_check
      _
    $region35: #{tpu_custom_call.1} parent=1 // pred_check_branch
      %34 = sbr.rel (0) target = $region37
    $region36: #{tpu_custom_call.1} parent=1 // pred_region
      _
    $region37: #{tpu_custom_call.1} parent=1 // pred_fallthru
      _
    // Predicated region
    $region38: #{tpu_custom_call.1} parent=1 // pred_check
      _
    $region39: #{tpu_custom_call.1} parent=1 // pred_check_branch
      %36 = sbr.rel (0) target = $region41
    $region40: #{tpu_custom_call.1} parent=1 // pred_region
      _
    $region41: #{tpu_custom_call.1} parent=1 // pred_fallthru
      _
    // Predicated region
    $region42: #{tpu_custom_call.1} parent=1 // pred_check
      _
    $region43: #{tpu_custom_call.1} parent=1 // pred_check_branch
      %38 = sbr.rel (0) target = $region45
    $region44: #{tpu_custom_call.1} parent=1 // pred_region
      _
    $region45: #{tpu_custom_call.1} parent=1 // pred_fallthru
      _
    %v39 = vld [vmem:[%s0] sm:$0xff]
    %v40 = vld [vmem:[%s0 + $0x8] sm:$0xff]
    %v41 = vld [vmem:[%s0 + $0x10] sm:$0xff]
    %v42 = vld [vmem:[%s0 + $0x18] sm:$0xff]
    %v43 = vld [vmem:[%s0 + $0x20] sm:$0xff]
    %v44 = vld [vmem:[%s0 + $0x28] sm:$0xff]
    %v45 = vld [vmem:[%s0 + $0x30] sm:$0xff]
    %v46 = vld [vmem:[%s0 + $0x38] sm:$0xff]
    %v47 = vld [vmem:[%s0 + $0x40] sm:$0xff]
    %v48 = vld [vmem:[%s0 + $0x48] sm:$0xff]
    %v49 = vld [vmem:[%s0 + $0x50] sm:$0xff]
    %v50 = vld [vmem:[%s0 + $0x58] sm:$0xff]
    %v51 = vld [vmem:[%s0 + $0x60] sm:$0xff]
    %v52 = vld [vmem:[%s0 + $0x68] sm:$0xff]
    %v53 = vld [vmem:[%s0 + $0x70] sm:$0xff]
    %v54 = vld [vmem:[%s0 + $0x78] sm:$0xff]
    %v55 = vld [vmem:[%s0 + $0x80] sm:$0xff]
    %v56 = vld [vmem:[%s0 + $0x88] sm:$0xff]
    %v57 = vld [vmem:[%s0 + $0x90] sm:$0xff]
    %v58 = vld [vmem:[%s0 + $0x98] sm:$0xff]
    %v59 = vld [vmem:[%s0 + $0xa0] sm:$0xff]
    %v60 = vld [vmem:[%s0 + $0xa8] sm:$0xff]
    %v61 = vld [vmem:[%s0 + $0xb0] sm:$0xff]
    %v62 = vld [vmem:[%s0 + $0xb8] sm:$0xff]
    %v63 = vld [vmem:[%s0 + $0xc0] sm:$0xff]
    %v64 = vld [vmem:[%s0 + $0xc8] sm:$0xff]
    %v65 = vld [vmem:[%s0 + $0xd0] sm:$0xff]
    %v66 = vld [vmem:[%s0 + $0xd8] sm:$0xff]
    %v67 = vld [vmem:[%s0 + $0xe0] sm:$0xff]
    %v68 = vld [vmem:[%s0 + $0xe8] sm:$0xff]
    %v69 = vld [vmem:[%s0 + $0xf0] sm:$0xff]
    %v70 = vld [vmem:[%s0 + $0xf8] sm:$0xff]
    %v71 = vld [vmem:[%s1] sm:$0xff]
    %v72 = vld [vmem:[%s1 + $0x8] sm:$0xff]
    %v73 = vld [vmem:[%s1 + $0x10] sm:$0xff]
    %v74 = vld [vmem:[%s1 + $0x18] sm:$0xff]
    %v75 = vld [vmem:[%s1 + $0x20] sm:$0xff]
    %v76 = vld [vmem:[%s1 + $0x28] sm:$0xff]
    %v77 = vld [vmem:[%s1 + $0x30] sm:$0xff]
    %v78 = vld [vmem:[%s1 + $0x38] sm:$0xff]
    %v79 = vld [vmem:[%s1 + $0x40] sm:$0xff]
    %v80 = vld [vmem:[%s1 + $0x48] sm:$0xff]
    %v81 = vld [vmem:[%s1 + $0x50] sm:$0xff]
    %v82 = vld [vmem:[%s1 + $0x58] sm:$0xff]
    %v83 = vld [vmem:[%s1 + $0x60] sm:$0xff]
    %v84 = vld [vmem:[%s1 + $0x68] sm:$0xff]
    %v85 = vld [vmem:[%s1 + $0x70] sm:$0xff]
    %v86 = vld [vmem:[%s1 + $0x78] sm:$0xff]
    %v87 = vld [vmem:[%s1 + $0x80] sm:$0xff]
    %v88 = vld [vmem:[%s1 + $0x88] sm:$0xff]
    %v89 = vld [vmem:[%s1 + $0x90] sm:$0xff]
    %v90 = vld [vmem:[%s1 + $0x98] sm:$0xff]
    %v91 = vld [vmem:[%s1 + $0xa0] sm:$0xff]
    %v92 = vld [vmem:[%s1 + $0xa8] sm:$0xff]
    %v93 = vld [vmem:[%s1 + $0xb0] sm:$0xff]
    %v94 = vld [vmem:[%s1 + $0xb8] sm:$0xff]
    %v95 = vld [vmem:[%s1 + $0xc0] sm:$0xff]
    %v96 = vld [vmem:[%s1 + $0xc8] sm:$0xff]
    %v97 = vld [vmem:[%s1 + $0xd0] sm:$0xff]
    %v98 = vld [vmem:[%s1 + $0xd8] sm:$0xff]
    %v99 = vld [vmem:[%s1 + $0xe0] sm:$0xff]
    %v100 = vld [vmem:[%s1 + $0xe8] sm:$0xff]
    %v101 = vld [vmem:[%s1 + $0xf0] sm:$0xff]
    %v102 = vld [vmem:[%s1 + $0xf8] sm:$0xff]
    %103 = vmatprep.subr.mxu0 0.0
    %104 = vmatpush1.msra.mxu0 %v71
    %105 = vmatprep.subr.mxu0 0.0
    %106 = vmatpush1.msra.mxu0 %v72
    %107 = vmatprep.subr.mxu0 0.0
    %108 = vmatpush1.msra.mxu0 %v73
    %109 = vmatprep.subr.mxu0 0.0
    %110 = vmatpush1.msra.mxu0 %v74
    %111 = vmatprep.subr.mxu0 0.0
    %112 = vmatpush1.msra.mxu0 %v75
    %113 = vmatprep.subr.mxu0 0.0
    %114 = vmatpush1.msra.mxu0 %v76
    %115 = vmatprep.subr.mxu0 0.0
    %116 = vmatpush1.msra.mxu0 %v77
    %117 = vmatprep.subr.mxu0 0.0
    %118 = vmatpush1.msra.mxu0 %v78
    %119 = vmatprep.subr.mxu0 0.0
    %120 = vmatpush1.msra.mxu0 %v79
    %121 = vmatprep.subr.mxu0 0.0
    %122 = vmatpush1.msra.mxu0 %v80
    %123 = vmatprep.subr.mxu0 0.0
    %124 = vmatpush1.msra.mxu0 %v81
    %125 = vmatprep.subr.mxu0 0.0
    %126 = vmatpush1.msra.mxu0 %v82
    %127 = vmatprep.subr.mxu0 0.0
    %128 = vmatpush1.msra.mxu0 %v83
    %129 = vmatprep.subr.mxu0 0.0
    %130 = vmatpush1.msra.mxu0 %v84
    %131 = vmatprep.subr.mxu0 0.0
    %132 = vmatpush1.msra.mxu0 %v85
    %133 = vmatprep.subr.mxu0 0.0
    %134 = vmatpush1.msra.mxu0 %v86
    %135 = vmatprep.subr.mxu0 0.0
    %136 = vmatpush1.msra.mxu0 %v87
    %137 = vmatprep.subr.mxu0 0.0
    %138 = vmatpush1.msra.mxu0 %v88
    %139 = vmatprep.subr.mxu0 0.0
    %140 = vmatpush1.msra.mxu0 %v89
    %141 = vmatprep.subr.mxu0 0.0
    %142 = vmatpush1.msra.mxu0 %v90
    %143 = vmatprep.subr.mxu0 0.0
    %144 = vmatpush1.msra.mxu0 %v91
    %145 = vmatprep.subr.mxu0 0.0
    %146 = vmatpush1.msra.mxu0 %v92
    %147 = vmatprep.subr.mxu0 0.0
    %148 = vmatpush1.msra.mxu0 %v93
    %149 = vmatprep.subr.mxu0 0.0
    %150 = vmatpush1.msra.mxu0 %v94
    %151 = vmatprep.subr.mxu0 0.0
    %152 = vmatpush1.msra.mxu0 %v95
    %153 = vmatprep.subr.mxu0 0.0
    %154 = vmatpush1.msra.mxu0 %v96
    %155 = vmatprep.subr.mxu0 0.0
    %156 = vmatpush1.msra.mxu0 %v97
    %157 = vmatprep.subr.mxu0 0.0
    %158 = vmatpush1.msra.mxu0 %v98
    %159 = vmatprep.subr.mxu0 0.0
    %160 = vmatpush1.msra.mxu0 %v99
    %161 = vmatprep.subr.mxu0 0.0
    %162 = vmatpush1.msra.mxu0 %v100
    %163 = vmatprep.subr.mxu0 0.0
    %164 = vmatpush1.msra.mxu0 %v101
    %165 = vmatprep.subr.mxu0 0.0
    %166 = vmatpush1.msra.mxu0 %v102
    %167 = vmatprep.mubr.f32.mxu0 %v40
    %168 = vmatmul.mubr.f32.gmra.mrb[0].mxu0 %v39
    %v169 = vpop.f32.mrb[0].mxu0
    %v170 = vadd.f32 0.0, %v169
    %v171 = vpop.f32.mrb[0].mxu0
    %172 = vmatprep.mubr.f32.mxu0 %v42
    %173 = vmatmul.mubr.f32.gmra.mrb[0].mxu0 %v41
    %v174 = vpop.f32.mrb[0].mxu0
    %v175 = vadd.f32 0.0, %v174
    %v176 = vpop.f32.mrb[0].mxu0
    %177 = vmatprep.mubr.f32.mxu0 %v44
    %178 = vmatmul.mubr.f32.gmra.mrb[0].mxu0 %v43
    %v179 = vpop.f32.mrb[0].mxu0
    %v180 = vadd.f32 0.0, %v179
    %v181 = vpop.f32.mrb[0].mxu0
    %182 = vmatprep.mubr.f32.mxu0 %v46
    %183 = vmatmul.mubr.f32.gmra.mrb[0].mxu0 %v45
    %v184 = vpop.f32.mrb[0].mxu0
    %v185 = vadd.f32 0.0, %v184
    %v186 = vpop.f32.mrb[0].mxu0
    %187 = vmatprep.mubr.f32.mxu0 %v48
    %188 = vmatmul.mubr.f32.gmra.mrb[0].mxu0 %v47
    %v189 = vpop.f32.mrb[0].mxu0
    %v190 = vadd.f32 0.0, %v189
    %v191 = vpop.f32.mrb[0].mxu0
    %192 = vmatprep.mubr.f32.mxu0 %v50
    %193 = vmatmul.mubr.f32.gmra.mrb[0].mxu0 %v49
    %v194 = vpop.f32.mrb[0].mxu0
    %v195 = vadd.f32 0.0, %v194
    %v196 = vpop.f32.mrb[0].mxu0
    %197 = vmatprep.mubr.f32.mxu0 %v52
    %198 = vmatmul.mubr.f32.gmra.mrb[0].mxu0 %v51
    %v199 = vpop.f32.mrb[0].mxu0
    %v200 = vadd.f32 0.0, %v199
    %v201 = vpop.f32.mrb[0].mxu0
    %202 = vmatprep.mubr.f32.mxu0 %v54
    %203 = vmatmul.mubr.f32.gmra.mrb[0].mxu0 %v53
    %v204 = vpop.f32.mrb[0].mxu0
    %v205 = vadd.f32 0.0, %v204
    %v206 = vpop.f32.mrb[0].mxu0
    %207 = vmatprep.mubr.f32.mxu0 %v56
    %208 = vmatmul.mubr.f32.gmra.mrb[0].mxu0 %v55
    %v209 = vpop.f32.mrb[0].mxu0
    %v210 = vadd.f32 0.0, %v209
    %v211 = vpop.f32.mrb[0].mxu0
    %212 = vmatprep.mubr.f32.mxu0 %v58
    %213 = vmatmul.mubr.f32.gmra.mrb[0].mxu0 %v57
    %v214 = vpop.f32.mrb[0].mxu0
    %v215 = vadd.f32 0.0, %v214
    %v216 = vpop.f32.mrb[0].mxu0
    %217 = vmatprep.mubr.f32.mxu0 %v60
    %218 = vmatmul.mubr.f32.gmra.mrb[0].mxu0 %v59
    %v219 = vpop.f32.mrb[0].mxu0
    %v220 = vadd.f32 0.0, %v219
    %v221 = vpop.f32.mrb[0].mxu0
    %222 = vmatprep.mubr.f32.mxu0 %v62
    %223 = vmatmul.mubr.f32.gmra.mrb[0].mxu0 %v61
    %v224 = vpop.f32.mrb[0].mxu0
    %v225 = vadd.f32 0.0, %v224
    %v226 = vpop.f32.mrb[0].mxu0
    %227 = vmatprep.mubr.f32.mxu0 %v64
    %228 = vmatmul.mubr.f32.gmra.mrb[0].mxu0 %v63
    %v229 = vpop.f32.mrb[0].mxu0
    %v230 = vadd.f32 0.0, %v229
    %v231 = vpop.f32.mrb[0].mxu0
    %232 = vmatprep.mubr.f32.mxu0 %v66
    %233 = vmatmul.mubr.f32.gmra.mrb[0].mxu0 %v65
    %v234 = vpop.f32.mrb[0].mxu0
    %v235 = vadd.f32 0.0, %v234
    %v236 = vpop.f32.mrb[0].mxu0
    %237 = vmatprep.mubr.f32.mxu0 %v68
    %238 = vmatmul.mubr.f32.gmra.mrb[0].mxu0 %v67
    %v239 = vpop.f32.mrb[0].mxu0
    %v240 = vadd.f32 0.0, %v239
    %v241 = vpop.f32.mrb[0].mxu0
    %242 = vmatprep.mubr.f32.mxu0 %v70
    %243 = vmatmul.mubr.f32.gmra.mrb[0].mxu0 %v69
    %v244 = vpop.f32.mrb[0].mxu0
    %v245 = vadd.f32 0.0, %v244
    %v246 = vpop.f32.mrb[0].mxu0
    %247 = vdwg.mxu0
    %v248 = vld [vmem:[%s8] sm:$0xff]
    %v249 = vld [vmem:[%s8 + $0x8] sm:$0xff]
    %v250 = vld [vmem:[%s8 + $0x10] sm:$0xff]
    %v251 = vld [vmem:[%s8 + $0x18] sm:$0xff]
    %v252 = vld [vmem:[%s8 + $0x20] sm:$0xff]
    %v253 = vld [vmem:[%s8 + $0x28] sm:$0xff]
    %v254 = vld [vmem:[%s8 + $0x30] sm:$0xff]
    %v255 = vld [vmem:[%s8 + $0x38] sm:$0xff]
    %v256 = vld [vmem:[%s8 + $0x40] sm:$0xff]
    %v257 = vld [vmem:[%s8 + $0x48] sm:$0xff]
    %v258 = vld [vmem:[%s8 + $0x50] sm:$0xff]
    %v259 = vld [vmem:[%s8 + $0x58] sm:$0xff]
    %v260 = vld [vmem:[%s8 + $0x60] sm:$0xff]
    %v261 = vld [vmem:[%s8 + $0x68] sm:$0xff]
    %v262 = vld [vmem:[%s8 + $0x70] sm:$0xff]
    %v263 = vld [vmem:[%s8 + $0x78] sm:$0xff]
    %v264 = vld [vmem:[%s7] sm:$0xff]
    %v265 = vld [vmem:[%s7 + $0x8] sm:$0xff]
    %v266 = vld [vmem:[%s7 + $0x10] sm:$0xff]
    %v267 = vld [vmem:[%s7 + $0x18] sm:$0xff]
    %vm268 = vcmask 261120
    %v270 = vsel %vm268, %v170, 0
    %v273 = vsel %vm268, %v175, 0
    %v276 = vsel %vm268, %v180, 0
    %v279 = vsel %vm268, %v185, 0
    %v282 = vsel %vm268, %v190, 0
    %v285 = vsel %vm268, %v195, 0
    %v288 = vsel %vm268, %v200, 0
    %v291 = vsel %vm268, %v205, 0
    %v294 = vsel %vm268, %v210, 0
    %v297 = vsel %vm268, %v215, 0
    %v300 = vsel %vm268, %v220, 0
    %v303 = vsel %vm268, %v225, 0
    %v306 = vsel %vm268, %v230, 0
    %v309 = vsel %vm268, %v235, 0
    %v312 = vsel %vm268, %v240, 0
    %v315 = vsel %vm268, %v245, 0
    %317 = vmatprep.subr.mxu0 0.0
    %318 = vmatpush1.msra.mxu0 %v264
    %319 = vmatprep.subr.mxu0 0.0
    %320 = vmatpush1.msra.mxu0 %v265
    %321 = vmatprep.subr.mxu0 0.0
    %322 = vmatpush1.msra.mxu0 %v266
    %323 = vmatprep.subr.mxu0 0.0
    %324 = vmatpush1.msra.mxu0 %v267
    %325 = vmatprep.subr.mxu0 0.0
    %326 = vmatpush1.msra.mxu0 0.0
    %327 = vmatprep.subr.mxu0 0.0
    %328 = vmatpush1.msra.mxu0 0.0
    %329 = vmatprep.subr.mxu0 0.0
    %330 = vmatpush1.msra.mxu0 0.0
    %331 = vmatprep.subr.mxu0 0.0
    %332 = vmatpush1.msra.mxu0 0.0
    %333 = vmatprep.subr.mxu0 0.0
    %334 = vmatpush1.msra.mxu0 0.0
    %335 = vmatprep.subr.mxu0 0.0
    %336 = vmatpush1.msra.mxu0 0.0
    %337 = vmatprep.subr.mxu0 0.0
    %338 = vmatpush1.msra.mxu0 0.0
    %339 = vmatprep.subr.mxu0 0.0
    %340 = vmatpush1.msra.mxu0 0.0
    %341 = vmatprep.subr.mxu0 0.0
    %342 = vmatpush1.msra.mxu0 0.0
    %343 = vmatprep.subr.mxu0 0.0
    %344 = vmatpush1.msra.mxu0 0.0
    %345 = vmatprep.subr.mxu0 0.0
    %346 = vmatpush1.msra.mxu0 0.0
    %347 = vmatprep.subr.mxu0 0.0
    %348 = vmatpush1.msra.mxu0 0.0
    %349 = vmatprep.subr.mxu0 0.0
    %350 = vmatpush1.msra.mxu0 0.0
    %351 = vmatprep.subr.mxu0 0.0
    %352 = vmatpush1.msra.mxu0 0.0
    %353 = vmatprep.subr.mxu0 0.0
    %354 = vmatpush1.msra.mxu0 0.0
    %355 = vmatprep.subr.mxu0 0.0
    %356 = vmatpush1.msra.mxu0 0.0
    %357 = vmatprep.subr.mxu0 0.0
    %358 = vmatpush1.msra.mxu0 0.0
    %359 = vmatprep.subr.mxu0 0.0
    %360 = vmatpush1.msra.mxu0 0.0
    %361 = vmatprep.subr.mxu0 0.0
    %362 = vmatpush1.msra.mxu0 0.0
    %363 = vmatprep.subr.mxu0 0.0
    %364 = vmatpush1.msra.mxu0 0.0
    %365 = vmatprep.subr.mxu0 0.0
    %366 = vmatpush1.msra.mxu0 0.0
    %367 = vmatprep.subr.mxu0 0.0
    %368 = vmatpush1.msra.mxu0 0.0
    %369 = vmatprep.subr.mxu0 0.0
    %370 = vmatpush1.msra.mxu0 0.0
    %371 = vmatprep.subr.mxu0 0.0
    %372 = vmatpush1.msra.mxu0 0.0
    %373 = vmatprep.subr.mxu0 0.0
    %374 = vmatpush1.msra.mxu0 0.0
    %375 = vmatprep.subr.mxu0 0.0
    %376 = vmatpush1.msra.mxu0 0.0
    %377 = vmatprep.subr.mxu0 0.0
    %378 = vmatpush1.msra.mxu0 0.0
    %379 = vmatprep.subr.mxu0 0.0
    %380 = vmatpush1.msra.mxu0 0.0
    %381 = vmatprep.mubr.f32.mxu0 0.0
    %382 = vmatmul.mubr.f32.gmra.mrb[0].mxu0 %v270
    %v383 = vpop.f32.mrb[0].mxu0
    %v384 = vadd.f32 0.0, %v383
    %v385 = vpop.f32.mrb[0].mxu0
    %386 = vmatprep.mubr.f32.mxu0 0.0
    %387 = vmatmul.mubr.f32.gmra.mrb[0].mxu0 %v273
    %v388 = vpop.f32.mrb[0].mxu0
    %v389 = vadd.f32 0.0, %v388
    %v390 = vpop.f32.mrb[0].mxu0
    %391 = vmatprep.mubr.f32.mxu0 0.0
    %392 = vmatmul.mubr.f32.gmra.mrb[0].mxu0 %v276
    %v393 = vpop.f32.mrb[0].mxu0
    %v394 = vadd.f32 0.0, %v393
    %v395 = vpop.f32.mrb[0].mxu0
    %396 = vmatprep.mubr.f32.mxu0 0.0
    %397 = vmatmul.mubr.f32.gmra.mrb[0].mxu0 %v279
    %v398 = vpop.f32.mrb[0].mxu0
    %v399 = vadd.f32 0.0, %v398
    %v400 = vpop.f32.mrb[0].mxu0
    %401 = vmatprep.mubr.f32.mxu0 0.0
    %402 = vmatmul.mubr.f32.gmra.mrb[0].mxu0 %v282
    %v403 = vpop.f32.mrb[0].mxu0
    %v404 = vadd.f32 0.0, %v403
    %v405 = vpop.f32.mrb[0].mxu0
    %406 = vmatprep.mubr.f32.mxu0 0.0
    %407 = vmatmul.mubr.f32.gmra.mrb[0].mxu0 %v285
    %v408 = vpop.f32.mrb[0].mxu0
    %v409 = vadd.f32 0.0, %v408
    %v410 = vpop.f32.mrb[0].mxu0
    %411 = vmatprep.mubr.f32.mxu0 0.0
    %412 = vmatmul.mubr.f32.gmra.mrb[0].mxu0 %v288
    %v413 = vpop.f32.mrb[0].mxu0
    %v414 = vadd.f32 0.0, %v413
    %v415 = vpop.f32.mrb[0].mxu0
    %416 = vmatprep.mubr.f32.mxu0 0.0
    %417 = vmatmul.mubr.f32.gmra.mrb[0].mxu0 %v291
    %v418 = vpop.f32.mrb[0].mxu0
    %v419 = vadd.f32 0.0, %v418
    %v420 = vpop.f32.mrb[0].mxu0
    %421 = vmatprep.mubr.f32.mxu0 0.0
    %422 = vmatmul.mubr.f32.gmra.mrb[0].mxu0 %v294
    %v423 = vpop.f32.mrb[0].mxu0
    %v424 = vadd.f32 0.0, %v423
    %v425 = vpop.f32.mrb[0].mxu0
    %426 = vmatprep.mubr.f32.mxu0 0.0
    %427 = vmatmul.mubr.f32.gmra.mrb[0].mxu0 %v297
    %v428 = vpop.f32.mrb[0].mxu0
    %v429 = vadd.f32 0.0, %v428
    %v430 = vpop.f32.mrb[0].mxu0
    %431 = vmatprep.mubr.f32.mxu0 0.0
    %432 = vmatmul.mubr.f32.gmra.mrb[0].mxu0 %v300
    %v433 = vpop.f32.mrb[0].mxu0
    %v434 = vadd.f32 0.0, %v433
    %v435 = vpop.f32.mrb[0].mxu0
    %436 = vmatprep.mubr.f32.mxu0 0.0
    %437 = vmatmul.mubr.f32.gmra.mrb[0].mxu0 %v303
    %v438 = vpop.f32.mrb[0].mxu0
    %v439 = vadd.f32 0.0, %v438
    %v440 = vpop.f32.mrb[0].mxu0
    %441 = vmatprep.mubr.f32.mxu0 0.0
    %442 = vmatmul.mubr.f32.gmra.mrb[0].mxu0 %v306
    %v443 = vpop.f32.mrb[0].mxu0
    %v444 = vadd.f32 0.0, %v443
    %v445 = vpop.f32.mrb[0].mxu0
    %446 = vmatprep.mubr.f32.mxu0 0.0
    %447 = vmatmul.mubr.f32.gmra.mrb[0].mxu0 %v309
    %v448 = vpop.f32.mrb[0].mxu0
    %v449 = vadd.f32 0.0, %v448
    %v450 = vpop.f32.mrb[0].mxu0
    %451 = vmatprep.mubr.f32.mxu0 0.0
    %452 = vmatmul.mubr.f32.gmra.mrb[0].mxu0 %v312
    %v453 = vpop.f32.mrb[0].mxu0
    %v454 = vadd.f32 0.0, %v453
    %v455 = vpop.f32.mrb[0].mxu0
    %456 = vmatprep.mubr.f32.mxu0 0.0
    %457 = vmatmul.mubr.f32.gmra.mrb[0].mxu0 %v315
    %v458 = vpop.f32.mrb[0].mxu0
    %v459 = vadd.f32 0.0, %v458
    %v460 = vpop.f32.mrb[0].mxu0
    %461 = vdwg.mxu0
    %463 = vset.pattern.permute.xlu0 0
    %464 = vperm.xlu0 %463, %v248
    %v465 = vpop.permute.xlu0 %464
    %468 = vset.pattern.permute.xlu0 0
    %469 = vperm.xlu0 %468, %v249
    %v470 = vpop.permute.xlu0 %469
    %473 = vset.pattern.permute.xlu0 0
    %474 = vperm.xlu0 %473, %v250
    %v475 = vpop.permute.xlu0 %474
    %478 = vset.pattern.permute.xlu0 0
    %479 = vperm.xlu0 %478, %v251
    %v480 = vpop.permute.xlu0 %479
    %483 = vset.pattern.permute.xlu0 0
    %484 = vperm.xlu0 %483, %v252
    %v485 = vpop.permute.xlu0 %484
    %488 = vset.pattern.permute.xlu0 0
    %489 = vperm.xlu0 %488, %v253
    %v490 = vpop.permute.xlu0 %489
    %493 = vset.pattern.permute.xlu0 0
    %494 = vperm.xlu0 %493, %v254
    %v495 = vpop.permute.xlu0 %494
    %498 = vset.pattern.permute.xlu0 0
    %499 = vperm.xlu0 %498, %v255
    %v500 = vpop.permute.xlu0 %499
    %503 = vset.pattern.permute.xlu0 0
    %504 = vperm.xlu0 %503, %v256
    %v505 = vpop.permute.xlu0 %504
    %508 = vset.pattern.permute.xlu0 0
    %509 = vperm.xlu0 %508, %v257
    %v510 = vpop.permute.xlu0 %509
    %513 = vset.pattern.permute.xlu0 0
    %514 = vperm.xlu0 %513, %v258
    %v515 = vpop.permute.xlu0 %514
    %518 = vset.pattern.permute.xlu0 0
    %519 = vperm.xlu0 %518, %v259
    %v520 = vpop.permute.xlu0 %519
    %523 = vset.pattern.permute.xlu0 0
    %524 = vperm.xlu0 %523, %v260
    %v525 = vpop.permute.xlu0 %524
    %528 = vset.pattern.permute.xlu0 0
    %529 = vperm.xlu0 %528, %v261
    %v530 = vpop.permute.xlu0 %529
    %533 = vset.pattern.permute.xlu0 0
    %534 = vperm.xlu0 %533, %v262
    %v535 = vpop.permute.xlu0 %534
    %538 = vset.pattern.permute.xlu0 0
    %539 = vperm.xlu0 %538, %v263
    %v540 = vpop.permute.xlu0 %539
    %v542 = vmul.f32 %v465, %v384
    %v543 = vmul.f32 %v470, %v389
    %v544 = vmul.f32 %v475, %v394
    %v545 = vmul.f32 %v480, %v399
    %v546 = vmul.f32 %v485, %v404
    %v547 = vmul.f32 %v490, %v409
    %v548 = vmul.f32 %v495, %v414
    %v549 = vmul.f32 %v500, %v419
    %v550 = vmul.f32 %v505, %v424
    %v551 = vmul.f32 %v510, %v429
    %v552 = vmul.f32 %v515, %v434
    %v553 = vmul.f32 %v520, %v439
    %v554 = vmul.f32 %v525, %v444
    %v555 = vmul.f32 %v530, %v449
    %v556 = vmul.f32 %v535, %v454
    %v557 = vmul.f32 %v540, %v459
    %v558 = vadd.f32 %v542, 0.0
    %v559 = vadd.f32 %v543, 0.0
    %v560 = vadd.f32 %v544, 0.0
    %v561 = vadd.f32 %v545, 0.0
    %v562 = vadd.f32 %v546, 0.0
    %v563 = vadd.f32 %v547, 0.0
    %v564 = vadd.f32 %v548, 0.0
    %v565 = vadd.f32 %v549, 0.0
    %v566 = vadd.f32 %v550, 0.0
    %v567 = vadd.f32 %v551, 0.0
    %v568 = vadd.f32 %v552, 0.0
    %v569 = vadd.f32 %v553, 0.0
    %v570 = vadd.f32 %v554, 0.0
    %v571 = vadd.f32 %v555, 0.0
    %v572 = vadd.f32 %v556, 0.0
    %v573 = vadd.f32 %v557, 0.0
    %s574 = scalar_lea.vmem %s8, 128
    %v575 = vld [vmem:[%s574] sm:$0xff]
    %v576 = vld [vmem:[%s574 + $0x8] sm:$0xff]
    %v577 = vld [vmem:[%s574 + $0x10] sm:$0xff]
    %v578 = vld [vmem:[%s574 + $0x18] sm:$0xff]
    %v579 = vld [vmem:[%s574 + $0x20] sm:$0xff]
    %v580 = vld [vmem:[%s574 + $0x28] sm:$0xff]
    %v581 = vld [vmem:[%s574 + $0x30] sm:$0xff]
    %v582 = vld [vmem:[%s574 + $0x38] sm:$0xff]
    %v583 = vld [vmem:[%s574 + $0x40] sm:$0xff]
    %v584 = vld [vmem:[%s574 + $0x48] sm:$0xff]
    %v585 = vld [vmem:[%s574 + $0x50] sm:$0xff]
    %v586 = vld [vmem:[%s574 + $0x58] sm:$0xff]
    %v587 = vld [vmem:[%s574 + $0x60] sm:$0xff]
    %v588 = vld [vmem:[%s574 + $0x68] sm:$0xff]
    %v589 = vld [vmem:[%s574 + $0x70] sm:$0xff]
    %v590 = vld [vmem:[%s574 + $0x78] sm:$0xff]
    %s591 = scalar_lea.vmem %s7, 32
    %v592 = vld [vmem:[%s591] sm:$0xff]
    %v593 = vld [vmem:[%s591 + $0x8] sm:$0xff]
    %v594 = vld [vmem:[%s591 + $0x10] sm:$0xff]
    %v595 = vld [vmem:[%s591 + $0x18] sm:$0xff]
    %596 = vmatprep.subr.mxu0 0.0
    %597 = vmatpush1.msra.mxu0 %v592
    %598 = vmatprep.subr.mxu0 0.0
    %599 = vmatpush1.msra.mxu0 %v593
    %600 = vmatprep.subr.mxu0 0.0
    %601 = vmatpush1.msra.mxu0 %v594
    %602 = vmatprep.subr.mxu0 0.0
    %603 = vmatpush1.msra.mxu0 %v595
    %604 = vmatprep.subr.mxu0 0.0
    %605 = vmatpush1.msra.mxu0 0.0
    %606 = vmatprep.subr.mxu0 0.0
    %607 = vmatpush1.msra.mxu0 0.0
    %608 = vmatprep.subr.mxu0 0.0
    %609 = vmatpush1.msra.mxu0 0.0
    %610 = vmatprep.subr.mxu0 0.0
    %611 = vmatpush1.msra.mxu0 0.0
    %612 = vmatprep.subr.mxu0 0.0
    %613 = vmatpush1.msra.mxu0 0.0
    %614 = vmatprep.subr.mxu0 0.0
    %615 = vmatpush1.msra.mxu0 0.0
    %616 = vmatprep.subr.mxu0 0.0
    %617 = vmatpush1.msra.mxu0 0.0
    %618 = vmatprep.subr.mxu0 0.0
    %619 = vmatpush1.msra.mxu0 0.0
    %620 = vmatprep.subr.mxu0 0.0
    %621 = vmatpush1.msra.mxu0 0.0
    %622 = vmatprep.subr.mxu0 0.0
    %623 = vmatpush1.msra.mxu0 0.0
    %624 = vmatprep.subr.mxu0 0.0
    %625 = vmatpush1.msra.mxu0 0.0
    %626 = vmatprep.subr.mxu0 0.0
    %627 = vmatpush1.msra.mxu0 0.0
    %628 = vmatprep.subr.mxu0 0.0
    %629 = vmatpush1.msra.mxu0 0.0
    %630 = vmatprep.subr.mxu0 0.0
    %631 = vmatpush1.msra.mxu0 0.0
    %632 = vmatprep.subr.mxu0 0.0
    %633 = vmatpush1.msra.mxu0 0.0
    %634 = vmatprep.subr.mxu0 0.0
    %635 = vmatpush1.msra.mxu0 0.0
    %636 = vmatprep.subr.mxu0 0.0
    %637 = vmatpush1.msra.mxu0 0.0
    %638 = vmatprep.subr.mxu0 0.0
    %639 = vmatpush1.msra.mxu0 0.0
    %640 = vmatprep.subr.mxu0 0.0
    %641 = vmatpush1.msra.mxu0 0.0
    %642 = vmatprep.subr.mxu0 0.0
    %643 = vmatpush1.msra.mxu0 0.0
    %644 = vmatprep.subr.mxu0 0.0
    %645 = vmatpush1.msra.mxu0 0.0
    %646 = vmatprep.subr.mxu0 0.0
    %647 = vmatpush1.msra.mxu0 0.0
    %648 = vmatprep.subr.mxu0 0.0
    %649 = vmatpush1.msra.mxu0 0.0
    %650 = vmatprep.subr.mxu0 0.0
    %651 = vmatpush1.msra.mxu0 0.0
    %652 = vmatprep.subr.mxu0 0.0
    %653 = vmatpush1.msra.mxu0 0.0
    %654 = vmatprep.subr.mxu0 0.0
    %655 = vmatpush1.msra.mxu0 0.0
    %656 = vmatprep.subr.mxu0 0.0
    %657 = vmatpush1.msra.mxu0 0.0
    %658 = vmatprep.subr.mxu0 0.0
    %659 = vmatpush1.msra.mxu0 0.0
    %660 = vmatprep.mubr.f32.mxu0 0.0
    %661 = vmatmul.mubr.f32.gmra.mrb[0].mxu0 %v270
    %v662 = vpop.f32.mrb[0].mxu0
    %v663 = vadd.f32 0.0, %v662
    %v664 = vpop.f32.mrb[0].mxu0
    %665 = vmatprep.mubr.f32.mxu0 0.0
    %666 = vmatmul.mubr.f32.gmra.mrb[0].mxu0 %v273
    %v667 = vpop.f32.mrb[0].mxu0
    %v668 = vadd.f32 0.0, %v667
    %v669 = vpop.f32.mrb[0].mxu0
    %670 = vmatprep.mubr.f32.mxu0 0.0
    %671 = vmatmul.mubr.f32.gmra.mrb[0].mxu0 %v276
    %v672 = vpop.f32.mrb[0].mxu0
    %v673 = vadd.f32 0.0, %v672
    %v674 = vpop.f32.mrb[0].mxu0
    %675 = vmatprep.mubr.f32.mxu0 0.0
    %676 = vmatmul.mubr.f32.gmra.mrb[0].mxu0 %v279
    %v677 = vpop.f32.mrb[0].mxu0
    %v678 = vadd.f32 0.0, %v677
    %v679 = vpop.f32.mrb[0].mxu0
    %680 = vmatprep.mubr.f32.mxu0 0.0
    %681 = vmatmul.mubr.f32.gmra.mrb[0].mxu0 %v282
    %v682 = vpop.f32.mrb[0].mxu0
    %v683 = vadd.f32 0.0, %v682
    %v684 = vpop.f32.mrb[0].mxu0
    %685 = vmatprep.mubr.f32.mxu0 0.0
    %686 = vmatmul.mubr.f32.gmra.mrb[0].mxu0 %v285
    %v687 = vpop.f32.mrb[0].mxu0
    %v688 = vadd.f32 0.0, %v687
    %v689 = vpop.f32.mrb[0].mxu0
    %690 = vmatprep.mubr.f32.mxu0 0.0
    %691 = vmatmul.mubr.f32.gmra.mrb[0].mxu0 %v288
    %v692 = vpop.f32.mrb[0].mxu0
    %v693 = vadd.f32 0.0, %v692
    %v694 = vpop.f32.mrb[0].mxu0
    %695 = vmatprep.mubr.f32.mxu0 0.0
    %696 = vmatmul.mubr.f32.gmra.mrb[0].mxu0 %v291
    %v697 = vpop.f32.mrb[0].mxu0
    %v698 = vadd.f32 0.0, %v697
    %v699 = vpop.f32.mrb[0].mxu0
    %700 = vmatprep.mubr.f32.mxu0 0.0
    %701 = vmatmul.mubr.f32.gmra.mrb[0].mxu0 %v294
    %v702 = vpop.f32.mrb[0].mxu0
    %v703 = vadd.f32 0.0, %v702
    %v704 = vpop.f32.mrb[0].mxu0
    %705 = vmatprep.mubr.f32.mxu0 0.0
    %706 = vmatmul.mubr.f32.gmra.mrb[0].mxu0 %v297
    %v707 = vpop.f32.mrb[0].mxu0
    %v708 = vadd.f32 0.0, %v707
    %v709 = vpop.f32.mrb[0].mxu0
    %710 = vmatprep.mubr.f32.mxu0 0.0
    %711 = vmatmul.mubr.f32.gmra.mrb[0].mxu0 %v300
    %v712 = vpop.f32.mrb[0].mxu0
    %v713 = vadd.f32 0.0, %v712
    %v714 = vpop.f32.mrb[0].mxu0
    %715 = vmatprep.mubr.f32.mxu0 0.0
    %716 = vmatmul.mubr.f32.gmra.mrb[0].mxu0 %v303
    %v717 = vpop.f32.mrb[0].mxu0
    %v718 = vadd.f32 0.0, %v717
    %v719 = vpop.f32.mrb[0].mxu0
    %720 = vmatprep.mubr.f32.mxu0 0.0
    %721 = vmatmul.mubr.f32.gmra.mrb[0].mxu0 %v306
    %v722 = vpop.f32.mrb[0].mxu0
    %v723 = vadd.f32 0.0, %v722
    %v724 = vpop.f32.mrb[0].mxu0
    %725 = vmatprep.mubr.f32.mxu0 0.0
    %726 = vmatmul.mubr.f32.gmra.mrb[0].mxu0 %v309
    %v727 = vpop.f32.mrb[0].mxu0
    %v728 = vadd.f32 0.0, %v727
    %v729 = vpop.f32.mrb[0].mxu0
    %730 = vmatprep.mubr.f32.mxu0 0.0
    %731 = vmatmul.mubr.f32.gmra.mrb[0].mxu0 %v312
    %v732 = vpop.f32.mrb[0].mxu0
    %v733 = vadd.f32 0.0, %v732
    %v734 = vpop.f32.mrb[0].mxu0
    %735 = vmatprep.mubr.f32.mxu0 0.0
    %736 = vmatmul.mubr.f32.gmra.mrb[0].mxu0 %v315
    %v737 = vpop.f32.mrb[0].mxu0
    %v738 = vadd.f32 0.0, %v737
    %v739 = vpop.f32.mrb[0].mxu0
    %740 = vdwg.mxu0
    %742 = vset.pattern.permute.xlu0 0
    %743 = vperm.xlu0 %742, %v575
    %v744 = vpop.permute.xlu0 %743
    %747 = vset.pattern.permute.xlu0 0
    %748 = vperm.xlu0 %747, %v576
    %v749 = vpop.permute.xlu0 %748
    %752 = vset.pattern.permute.xlu0 0
    %753 = vperm.xlu0 %752, %v577
    %v754 = vpop.permute.xlu0 %753
    %757 = vset.pattern.permute.xlu0 0
    %758 = vperm.xlu0 %757, %v578
    %v759 = vpop.permute.xlu0 %758
    %762 = vset.pattern.permute.xlu0 0
    %763 = vperm.xlu0 %762, %v579
    %v764 = vpop.permute.xlu0 %763
    %767 = vset.pattern.permute.xlu0 0
    %768 = vperm.xlu0 %767, %v580
    %v769 = vpop.permute.xlu0 %768
    %772 = vset.pattern.permute.xlu0 0
    %773 = vperm.xlu0 %772, %v581
    %v774 = vpop.permute.xlu0 %773
    %777 = vset.pattern.permute.xlu0 0
    %778 = vperm.xlu0 %777, %v582
    %v779 = vpop.permute.xlu0 %778
    %782 = vset.pattern.permute.xlu0 0
    %783 = vperm.xlu0 %782, %v583
    %v784 = vpop.permute.xlu0 %783
    %787 = vset.pattern.permute.xlu0 0
    %788 = vperm.xlu0 %787, %v584
    %v789 = vpop.permute.xlu0 %788
    %792 = vset.pattern.permute.xlu0 0
    %793 = vperm.xlu0 %792, %v585
    %v794 = vpop.permute.xlu0 %793
    %797 = vset.pattern.permute.xlu0 0
    %798 = vperm.xlu0 %797, %v586
    %v799 = vpop.permute.xlu0 %798
    %802 = vset.pattern.permute.xlu0 0
    %803 = vperm.xlu0 %802, %v587
    %v804 = vpop.permute.xlu0 %803
    %807 = vset.pattern.permute.xlu0 0
    %808 = vperm.xlu0 %807, %v588
    %v809 = vpop.permute.xlu0 %808
    %812 = vset.pattern.permute.xlu0 0
    %813 = vperm.xlu0 %812, %v589
    %v814 = vpop.permute.xlu0 %813
    %817 = vset.pattern.permute.xlu0 0
    %818 = vperm.xlu0 %817, %v590
    %v819 = vpop.permute.xlu0 %818
    %v821 = vmul.f32 %v744, %v663
    %v822 = vmul.f32 %v749, %v668
    %v823 = vmul.f32 %v754, %v673
    %v824 = vmul.f32 %v759, %v678
    %v825 = vmul.f32 %v764, %v683
    %v826 = vmul.f32 %v769, %v688
    %v827 = vmul.f32 %v774, %v693
    %v828 = vmul.f32 %v779, %v698
    %v829 = vmul.f32 %v784, %v703
    %v830 = vmul.f32 %v789, %v708
    %v831 = vmul.f32 %v794, %v713
    %v832 = vmul.f32 %v799, %v718
    %v833 = vmul.f32 %v804, %v723
    %v834 = vmul.f32 %v809, %v728
    %v835 = vmul.f32 %v814, %v733
    %v836 = vmul.f32 %v819, %v738
    %v837 = vadd.f32 %v558, %v821
    %v838 = vadd.f32 %v559, %v822
    %v839 = vadd.f32 %v560, %v823
    %v840 = vadd.f32 %v561, %v824
    %v841 = vadd.f32 %v562, %v825
    %v842 = vadd.f32 %v563, %v826
    %v843 = vadd.f32 %v564, %v827
    %v844 = vadd.f32 %v565, %v828
    %v845 = vadd.f32 %v566, %v829
    %v846 = vadd.f32 %v567, %v830
    %v847 = vadd.f32 %v568, %v831
    %v848 = vadd.f32 %v569, %v832
    %v849 = vadd.f32 %v570, %v833
    %v850 = vadd.f32 %v571, %v834
    %v851 = vadd.f32 %v572, %v835
    %v852 = vadd.f32 %v573, %v836
    %s853 = scalar_lea.vmem %s8, 256
    %v854 = vld [vmem:[%s853] sm:$0xff]
    %v855 = vld [vmem:[%s853 + $0x8] sm:$0xff]
    %v856 = vld [vmem:[%s853 + $0x10] sm:$0xff]
    %v857 = vld [vmem:[%s853 + $0x18] sm:$0xff]
    %v858 = vld [vmem:[%s853 + $0x20] sm:$0xff]
    %v859 = vld [vmem:[%s853 + $0x28] sm:$0xff]
    %v860 = vld [vmem:[%s853 + $0x30] sm:$0xff]
    %v861 = vld [vmem:[%s853 + $0x38] sm:$0xff]
    %v862 = vld [vmem:[%s853 + $0x40] sm:$0xff]
    %v863 = vld [vmem:[%s853 + $0x48] sm:$0xff]
    %v864 = vld [vmem:[%s853 + $0x50] sm:$0xff]
    %v865 = vld [vmem:[%s853 + $0x58] sm:$0xff]
    %v866 = vld [vmem:[%s853 + $0x60] sm:$0xff]
    %v867 = vld [vmem:[%s853 + $0x68] sm:$0xff]
    %v868 = vld [vmem:[%s853 + $0x70] sm:$0xff]
    %v869 = vld [vmem:[%s853 + $0x78] sm:$0xff]
    %s870 = scalar_lea.vmem %s7, 64
    %v871 = vld [vmem:[%s870] sm:$0xff]
    %v872 = vld [vmem:[%s870 + $0x8] sm:$0xff]
    %v873 = vld [vmem:[%s870 + $0x10] sm:$0xff]
    %v874 = vld [vmem:[%s870 + $0x18] sm:$0xff]
    %875 = vmatprep.subr.mxu0 0.0
    %876 = vmatpush1.msra.mxu0 %v871
    %877 = vmatprep.subr.mxu0 0.0
    %878 = vmatpush1.msra.mxu0 %v872
    %879 = vmatprep.subr.mxu0 0.0
    %880 = vmatpush1.msra.mxu0 %v873
    %881 = vmatprep.subr.mxu0 0.0
    %882 = vmatpush1.msra.mxu0 %v874
    %883 = vmatprep.subr.mxu0 0.0
    %884 = vmatpush1.msra.mxu0 0.0
    %885 = vmatprep.subr.mxu0 0.0
    %886 = vmatpush1.msra.mxu0 0.0
    %887 = vmatprep.subr.mxu0 0.0
    %888 = vmatpush1.msra.mxu0 0.0
    %889 = vmatprep.subr.mxu0 0.0
    %890 = vmatpush1.msra.mxu0 0.0
    %891 = vmatprep.subr.mxu0 0.0
    %892 = vmatpush1.msra.mxu0 0.0
    %893 = vmatprep.subr.mxu0 0.0
    %894 = vmatpush1.msra.mxu0 0.0
    %895 = vmatprep.subr.mxu0 0.0
    %896 = vmatpush1.msra.mxu0 0.0
    %897 = vmatprep.subr.mxu0 0.0
    %898 = vmatpush1.msra.mxu0 0.0
    %899 = vmatprep.subr.mxu0 0.0
    %900 = vmatpush1.msra.mxu0 0.0
    %901 = vmatprep.subr.mxu0 0.0
    %902 = vmatpush1.msra.mxu0 0.0
    %903 = vmatprep.subr.mxu0 0.0
    %904 = vmatpush1.msra.mxu0 0.0
    %905 = vmatprep.subr.mxu0 0.0
    %906 = vmatpush1.msra.mxu0 0.0
    %907 = vmatprep.subr.mxu0 0.0
    %908 = vmatpush1.msra.mxu0 0.0
    %909 = vmatprep.subr.mxu0 0.0
    %910 = vmatpush1.msra.mxu0 0.0
    %911 = vmatprep.subr.mxu0 0.0
    %912 = vmatpush1.msra.mxu0 0.0
    %913 = vmatprep.subr.mxu0 0.0
    %914 = vmatpush1.msra.mxu0 0.0
    %915 = vmatprep.subr.mxu0 0.0
    %916 = vmatpush1.msra.mxu0 0.0
    %917 = vmatprep.subr.mxu0 0.0
    %918 = vmatpush1.msra.mxu0 0.0
    %919 = vmatprep.subr.mxu0 0.0
    %920 = vmatpush1.msra.mxu0 0.0
    %921 = vmatprep.subr.mxu0 0.0
    %922 = vmatpush1.msra.mxu0 0.0
    %923 = vmatprep.subr.mxu0 0.0
    %924 = vmatpush1.msra.mxu0 0.0
    %925 = vmatprep.subr.mxu0 0.0
    %926 = vmatpush1.msra.mxu0 0.0
    %927 = vmatprep.subr.mxu0 0.0
    %928 = vmatpush1.msra.mxu0 0.0
    %929 = vmatprep.subr.mxu0 0.0
    %930 = vmatpush1.msra.mxu0 0.0
    %931 = vmatprep.subr.mxu0 0.0
    %932 = vmatpush1.msra.mxu0 0.0
    %933 = vmatprep.subr.mxu0 0.0
    %934 = vmatpush1.msra.mxu0 0.0
    %935 = vmatprep.subr.mxu0 0.0
    %936 = vmatpush1.msra.mxu0 0.0
    %937 = vmatprep.subr.mxu0 0.0
    %938 = vmatpush1.msra.mxu0 0.0
    %939 = vmatprep.mubr.f32.mxu0 0.0
    %940 = vmatmul.mubr.f32.gmra.mrb[0].mxu0 %v270
    %v941 = vpop.f32.mrb[0].mxu0
    %v942 = vadd.f32 0.0, %v941
    %v943 = vpop.f32.mrb[0].mxu0
    %944 = vmatprep.mubr.f32.mxu0 0.0
    %945 = vmatmul.mubr.f32.gmra.mrb[0].mxu0 %v273
    %v946 = vpop.f32.mrb[0].mxu0
    %v947 = vadd.f32 0.0, %v946
    %v948 = vpop.f32.mrb[0].mxu0
    %949 = vmatprep.mubr.f32.mxu0 0.0
    %950 = vmatmul.mubr.f32.gmra.mrb[0].mxu0 %v276
    %v951 = vpop.f32.mrb[0].mxu0
    %v952 = vadd.f32 0.0, %v951
    %v953 = vpop.f32.mrb[0].mxu0
    %954 = vmatprep.mubr.f32.mxu0 0.0
    %955 = vmatmul.mubr.f32.gmra.mrb[0].mxu0 %v279
    %v956 = vpop.f32.mrb[0].mxu0
    %v957 = vadd.f32 0.0, %v956
    %v958 = vpop.f32.mrb[0].mxu0
    %959 = vmatprep.mubr.f32.mxu0 0.0
    %960 = vmatmul.mubr.f32.gmra.mrb[0].mxu0 %v282
    %v961 = vpop.f32.mrb[0].mxu0
    %v962 = vadd.f32 0.0, %v961
    %v963 = vpop.f32.mrb[0].mxu0
    %964 = vmatprep.mubr.f32.mxu0 0.0
    %965 = vmatmul.mubr.f32.gmra.mrb[0].mxu0 %v285
    %v966 = vpop.f32.mrb[0].mxu0
    %v967 = vadd.f32 0.0, %v966
    %v968 = vpop.f32.mrb[0].mxu0
    %969 = vmatprep.mubr.f32.mxu0 0.0
    %970 = vmatmul.mubr.f32.gmra.mrb[0].mxu0 %v288
    %v971 = vpop.f32.mrb[0].mxu0
    %v972 = vadd.f32 0.0, %v971
    %v973 = vpop.f32.mrb[0].mxu0
    %974 = vmatprep.mubr.f32.mxu0 0.0
    %975 = vmatmul.mubr.f32.gmra.mrb[0].mxu0 %v291
    %v976 = vpop.f32.mrb[0].mxu0
    %v977 = vadd.f32 0.0, %v976
    %v978 = vpop.f32.mrb[0].mxu0
    %979 = vmatprep.mubr.f32.mxu0 0.0
    %980 = vmatmul.mubr.f32.gmra.mrb[0].mxu0 %v294
    %v981 = vpop.f32.mrb[0].mxu0
    %v982 = vadd.f32 0.0, %v981
    %v983 = vpop.f32.mrb[0].mxu0
    %984 = vmatprep.mubr.f32.mxu0 0.0
    %985 = vmatmul.mubr.f32.gmra.mrb[0].mxu0 %v297
    %v986 = vpop.f32.mrb[0].mxu0
    %v987 = vadd.f32 0.0, %v986
    %v988 = vpop.f32.mrb[0].mxu0
    %989 = vmatprep.mubr.f32.mxu0 0.0
    %990 = vmatmul.mubr.f32.gmra.mrb[0].mxu0 %v300
    %v991 = vpop.f32.mrb[0].mxu0
    %v992 = vadd.f32 0.0, %v991
    %v993 = vpop.f32.mrb[0].mxu0
    %994 = vmatprep.mubr.f32.mxu0 0.0
    %995 = vmatmul.mubr.f32.gmra.mrb[0].mxu0 %v303
    %v996 = vpop.f32.mrb[0].mxu0
    %v997 = vadd.f32 0.0, %v996
    %v998 = vpop.f32.mrb[0].mxu0
    %999 = vmatprep.mubr.f32.mxu0 0.0
    %1000 = vmatmul.mubr.f32.gmra.mrb[0].mxu0 %v306
    %v1001 = vpop.f32.mrb[0].mxu0
    %v1002 = vadd.f32 0.0, %v1001
    %v1003 = vpop.f32.mrb[0].mxu0
    %1004 = vmatprep.mubr.f32.mxu0 0.0
    %1005 = vmatmul.mubr.f32.gmra.mrb[0].mxu0 %v309
    %v1006 = vpop.f32.mrb[0].mxu0
    %v1007 = vadd.f32 0.0, %v1006
    %v1008 = vpop.f32.mrb[0].mxu0
    %1009 = vmatprep.mubr.f32.mxu0 0.0
    %1010 = vmatmul.mubr.f32.gmra.mrb[0].mxu0 %v312
    %v1011 = vpop.f32.mrb[0].mxu0
    %v1012 = vadd.f32 0.0, %v1011
    %v1013 = vpop.f32.mrb[0].mxu0
    %1014 = vmatprep.mubr.f32.mxu0 0.0
    %1015 = vmatmul.mubr.f32.gmra.mrb[0].mxu0 %v315
    %v1016 = vpop.f32.mrb[0].mxu0
    %v1017 = vadd.f32 0.0, %v1016
    %v1018 = vpop.f32.mrb[0].mxu0
    %1019 = vdwg.mxu0
    %1021 = vset.pattern.permute.xlu0 0
    %1022 = vperm.xlu0 %1021, %v854
    %v1023 = vpop.permute.xlu0 %1022
    %1026 = vset.pattern.permute.xlu0 0
    %1027 = vperm.xlu0 %1026, %v855
    %v1028 = vpop.permute.xlu0 %1027
    %1031 = vset.pattern.permute.xlu0 0
    %1032 = vperm.xlu0 %1031, %v856
    %v1033 = vpop.permute.xlu0 %1032
    %1036 = vset.pattern.permute.xlu0 0
    %1037 = vperm.xlu0 %1036, %v857
    %v1038 = vpop.permute.xlu0 %1037
    %1041 = vset.pattern.permute.xlu0 0
    %1042 = vperm.xlu0 %1041, %v858
    %v1043 = vpop.permute.xlu0 %1042
    %1046 = vset.pattern.permute.xlu0 0
    %1047 = vperm.xlu0 %1046, %v859
    %v1048 = vpop.permute.xlu0 %1047
    %1051 = vset.pattern.permute.xlu0 0
    %1052 = vperm.xlu0 %1051, %v860
    %v1053 = vpop.permute.xlu0 %1052
    %1056 = vset.pattern.permute.xlu0 0
    %1057 = vperm.xlu0 %1056, %v861
    %v1058 = vpop.permute.xlu0 %1057
    %1061 = vset.pattern.permute.xlu0 0
    %1062 = vperm.xlu0 %1061, %v862
    %v1063 = vpop.permute.xlu0 %1062
    %1066 = vset.pattern.permute.xlu0 0
    %1067 = vperm.xlu0 %1066, %v863
    %v1068 = vpop.permute.xlu0 %1067
    %1071 = vset.pattern.permute.xlu0 0
    %1072 = vperm.xlu0 %1071, %v864
    %v1073 = vpop.permute.xlu0 %1072
    %1076 = vset.pattern.permute.xlu0 0
    %1077 = vperm.xlu0 %1076, %v865
    %v1078 = vpop.permute.xlu0 %1077
    %1081 = vset.pattern.permute.xlu0 0
    %1082 = vperm.xlu0 %1081, %v866
    %v1083 = vpop.permute.xlu0 %1082
    %1086 = vset.pattern.permute.xlu0 0
    %1087 = vperm.xlu0 %1086, %v867
    %v1088 = vpop.permute.xlu0 %1087
    %1091 = vset.pattern.permute.xlu0 0
    %1092 = vperm.xlu0 %1091, %v868
    %v1093 = vpop.permute.xlu0 %1092
    %1096 = vset.pattern.permute.xlu0 0
    %1097 = vperm.xlu0 %1096, %v869
    %v1098 = vpop.permute.xlu0 %1097
    %v1100 = vmul.f32 %v1023, %v942
    %v1101 = vmul.f32 %v1028, %v947
    %v1102 = vmul.f32 %v1033, %v952
    %v1103 = vmul.f32 %v1038, %v957
    %v1104 = vmul.f32 %v1043, %v962
    %v1105 = vmul.f32 %v1048, %v967
    %v1106 = vmul.f32 %v1053, %v972
    %v1107 = vmul.f32 %v1058, %v977
    %v1108 = vmul.f32 %v1063, %v982
    %v1109 = vmul.f32 %v1068, %v987
    %v1110 = vmul.f32 %v1073, %v992
    %v1111 = vmul.f32 %v1078, %v997
    %v1112 = vmul.f32 %v1083, %v1002
    %v1113 = vmul.f32 %v1088, %v1007
    %v1114 = vmul.f32 %v1093, %v1012
    %v1115 = vmul.f32 %v1098, %v1017
    %v1116 = vadd.f32 %v837, %v1100
    %v1117 = vadd.f32 %v838, %v1101
    %v1118 = vadd.f32 %v839, %v1102
    %v1119 = vadd.f32 %v840, %v1103
    %v1120 = vadd.f32 %v841, %v1104
    %v1121 = vadd.f32 %v842, %v1105
    %v1122 = vadd.f32 %v843, %v1106
    %v1123 = vadd.f32 %v844, %v1107
    %v1124 = vadd.f32 %v845, %v1108
    %v1125 = vadd.f32 %v846, %v1109
    %v1126 = vadd.f32 %v847, %v1110
    %v1127 = vadd.f32 %v848, %v1111
    %v1128 = vadd.f32 %v849, %v1112
    %v1129 = vadd.f32 %v850, %v1113
    %v1130 = vadd.f32 %v851, %v1114
    %v1131 = vadd.f32 %v852, %v1115
    %s1132 = scalar_lea.vmem %s8, 384
    %v1133 = vld [vmem:[%s1132] sm:$0xff]
    %v1134 = vld [vmem:[%s1132 + $0x8] sm:$0xff]
    %v1135 = vld [vmem:[%s1132 + $0x10] sm:$0xff]
    %v1136 = vld [vmem:[%s1132 + $0x18] sm:$0xff]
    %v1137 = vld [vmem:[%s1132 + $0x20] sm:$0xff]
    %v1138 = vld [vmem:[%s1132 + $0x28] sm:$0xff]
    %v1139 = vld [vmem:[%s1132 + $0x30] sm:$0xff]
    %v1140 = vld [vmem:[%s1132 + $0x38] sm:$0xff]
    %v1141 = vld [vmem:[%s1132 + $0x40] sm:$0xff]
    %v1142 = vld [vmem:[%s1132 + $0x48] sm:$0xff]
    %v1143 = vld [vmem:[%s1132 + $0x50] sm:$0xff]
    %v1144 = vld [vmem:[%s1132 + $0x58] sm:$0xff]
    %v1145 = vld [vmem:[%s1132 + $0x60] sm:$0xff]
    %v1146 = vld [vmem:[%s1132 + $0x68] sm:$0xff]
    %v1147 = vld [vmem:[%s1132 + $0x70] sm:$0xff]
    %v1148 = vld [vmem:[%s1132 + $0x78] sm:$0xff]
    %s1149 = scalar_lea.vmem %s7, 96
    %v1150 = vld [vmem:[%s1149] sm:$0xff]
    %v1151 = vld [vmem:[%s1149 + $0x8] sm:$0xff]
    %v1152 = vld [vmem:[%s1149 + $0x10] sm:$0xff]
    %v1153 = vld [vmem:[%s1149 + $0x18] sm:$0xff]
    %1154 = vmatprep.subr.mxu0 0.0
    %1155 = vmatpush1.msra.mxu0 %v1150
    %1156 = vmatprep.subr.mxu0 0.0
    %1157 = vmatpush1.msra.mxu0 %v1151
    %1158 = vmatprep.subr.mxu0 0.0
    %1159 = vmatpush1.msra.mxu0 %v1152
    %1160 = vmatprep.subr.mxu0 0.0
    %1161 = vmatpush1.msra.mxu0 %v1153
    %1162 = vmatprep.subr.mxu0 0.0
    %1163 = vmatpush1.msra.mxu0 0.0
    %1164 = vmatprep.subr.mxu0 0.0
    %1165 = vmatpush1.msra.mxu0 0.0
    %1166 = vmatprep.subr.mxu0 0.0
    %1167 = vmatpush1.msra.mxu0 0.0
    %1168 = vmatprep.subr.mxu0 0.0
    %1169 = vmatpush1.msra.mxu0 0.0
    %1170 = vmatprep.subr.mxu0 0.0
    %1171 = vmatpush1.msra.mxu0 0.0
    %1172 = vmatprep.subr.mxu0 0.0
    %1173 = vmatpush1.msra.mxu0 0.0
    %1174 = vmatprep.subr.mxu0 0.0
    %1175 = vmatpush1.msra.mxu0 0.0
    %1176 = vmatprep.subr.mxu0 0.0
    %1177 = vmatpush1.msra.mxu0 0.0
    %1178 = vmatprep.subr.mxu0 0.0
    %1179 = vmatpush1.msra.mxu0 0.0
    %1180 = vmatprep.subr.mxu0 0.0
    %1181 = vmatpush1.msra.mxu0 0.0
    %1182 = vmatprep.subr.mxu0 0.0
    %1183 = vmatpush1.msra.mxu0 0.0
    %1184 = vmatprep.subr.mxu0 0.0
    %1185 = vmatpush1.msra.mxu0 0.0
    %1186 = vmatprep.subr.mxu0 0.0
    %1187 = vmatpush1.msra.mxu0 0.0
    %1188 = vmatprep.subr.mxu0 0.0
    %1189 = vmatpush1.msra.mxu0 0.0
    %1190 = vmatprep.subr.mxu0 0.0
    %1191 = vmatpush1.msra.mxu0 0.0
    %1192 = vmatprep.subr.mxu0 0.0
    %1193 = vmatpush1.msra.mxu0 0.0
    %1194 = vmatprep.subr.mxu0 0.0
    %1195 = vmatpush1.msra.mxu0 0.0
    %1196 = vmatprep.subr.mxu0 0.0
    %1197 = vmatpush1.msra.mxu0 0.0
    %1198 = vmatprep.subr.mxu0 0.0
    %1199 = vmatpush1.msra.mxu0 0.0
    %1200 = vmatprep.subr.mxu0 0.0
    %1201 = vmatpush1.msra.mxu0 0.0
    %1202 = vmatprep.subr.mxu0 0.0
    %1203 = vmatpush1.msra.mxu0 0.0
    %1204 = vmatprep.subr.mxu0 0.0
    %1205 = vmatpush1.msra.mxu0 0.0
    %1206 = vmatprep.subr.mxu0 0.0
    %1207 = vmatpush1.msra.mxu0 0.0
    %1208 = vmatprep.subr.mxu0 0.0
    %1209 = vmatpush1.msra.mxu0 0.0
    %1210 = vmatprep.subr.mxu0 0.0
    %1211 = vmatpush1.msra.mxu0 0.0
    %1212 = vmatprep.subr.mxu0 0.0
    %1213 = vmatpush1.msra.mxu0 0.0
    %1214 = vmatprep.subr.mxu0 0.0
    %1215 = vmatpush1.msra.mxu0 0.0
    %1216 = vmatprep.subr.mxu0 0.0
    %1217 = vmatpush1.msra.mxu0 0.0
    %1218 = vmatprep.mubr.f32.mxu0 0.0
    %1219 = vmatmul.mubr.f32.gmra.mrb[0].mxu0 %v270
    %v1220 = vpop.f32.mrb[0].mxu0
    %v1221 = vadd.f32 0.0, %v1220
    %v1222 = vpop.f32.mrb[0].mxu0
    %1223 = vmatprep.mubr.f32.mxu0 0.0
    %1224 = vmatmul.mubr.f32.gmra.mrb[0].mxu0 %v273
    %v1225 = vpop.f32.mrb[0].mxu0
    %v1226 = vadd.f32 0.0, %v1225
    %v1227 = vpop.f32.mrb[0].mxu0
    %1228 = vmatprep.mubr.f32.mxu0 0.0
    %1229 = vmatmul.mubr.f32.gmra.mrb[0].mxu0 %v276
    %v1230 = vpop.f32.mrb[0].mxu0
    %v1231 = vadd.f32 0.0, %v1230
    %v1232 = vpop.f32.mrb[0].mxu0
    %1233 = vmatprep.mubr.f32.mxu0 0.0
    %1234 = vmatmul.mubr.f32.gmra.mrb[0].mxu0 %v279
    %v1235 = vpop.f32.mrb[0].mxu0
    %v1236 = vadd.f32 0.0, %v1235
    %v1237 = vpop.f32.mrb[0].mxu0
    %1238 = vmatprep.mubr.f32.mxu0 0.0
    %1239 = vmatmul.mubr.f32.gmra.mrb[0].mxu0 %v282
    %v1240 = vpop.f32.mrb[0].mxu0
    %v1241 = vadd.f32 0.0, %v1240
    %v1242 = vpop.f32.mrb[0].mxu0
    %1243 = vmatprep.mubr.f32.mxu0 0.0
    %1244 = vmatmul.mubr.f32.gmra.mrb[0].mxu0 %v285
    %v1245 = vpop.f32.mrb[0].mxu0
    %v1246 = vadd.f32 0.0, %v1245
    %v1247 = vpop.f32.mrb[0].mxu0
    %1248 = vmatprep.mubr.f32.mxu0 0.0
    %1249 = vmatmul.mubr.f32.gmra.mrb[0].mxu0 %v288
    %v1250 = vpop.f32.mrb[0].mxu0
    %v1251 = vadd.f32 0.0, %v1250
    %v1252 = vpop.f32.mrb[0].mxu0
    %1253 = vmatprep.mubr.f32.mxu0 0.0
    %1254 = vmatmul.mubr.f32.gmra.mrb[0].mxu0 %v291
    %v1255 = vpop.f32.mrb[0].mxu0
    %v1256 = vadd.f32 0.0, %v1255
    %v1257 = vpop.f32.mrb[0].mxu0
    %1258 = vmatprep.mubr.f32.mxu0 0.0
    %1259 = vmatmul.mubr.f32.gmra.mrb[0].mxu0 %v294
    %v1260 = vpop.f32.mrb[0].mxu0
    %v1261 = vadd.f32 0.0, %v1260
    %v1262 = vpop.f32.mrb[0].mxu0
    %1263 = vmatprep.mubr.f32.mxu0 0.0
    %1264 = vmatmul.mubr.f32.gmra.mrb[0].mxu0 %v297
    %v1265 = vpop.f32.mrb[0].mxu0
    %v1266 = vadd.f32 0.0, %v1265
    %v1267 = vpop.f32.mrb[0].mxu0
    %1268 = vmatprep.mubr.f32.mxu0 0.0
    %1269 = vmatmul.mubr.f32.gmra.mrb[0].mxu0 %v300
    %v1270 = vpop.f32.mrb[0].mxu0
    %v1271 = vadd.f32 0.0, %v1270
    %v1272 = vpop.f32.mrb[0].mxu0
    %1273 = vmatprep.mubr.f32.mxu0 0.0
    %1274 = vmatmul.mubr.f32.gmra.mrb[0].mxu0 %v303
    %v1275 = vpop.f32.mrb[0].mxu0
    %v1276 = vadd.f32 0.0, %v1275
    %v1277 = vpop.f32.mrb[0].mxu0
    %1278 = vmatprep.mubr.f32.mxu0 0.0
    %1279 = vmatmul.mubr.f32.gmra.mrb[0].mxu0 %v306
    %v1280 = vpop.f32.mrb[0].mxu0
    %v1281 = vadd.f32 0.0, %v1280
    %v1282 = vpop.f32.mrb[0].mxu0
    %1283 = vmatprep.mubr.f32.mxu0 0.0
    %1284 = vmatmul.mubr.f32.gmra.mrb[0].mxu0 %v309
    %v1285 = vpop.f32.mrb[0].mxu0
    %v1286 = vadd.f32 0.0, %v1285
    %v1287 = vpop.f32.mrb[0].mxu0
    %1288 = vmatprep.mubr.f32.mxu0 0.0
    %1289 = vmatmul.mubr.f32.gmra.mrb[0].mxu0 %v312
    %v1290 = vpop.f32.mrb[0].mxu0
    %v1291 = vadd.f32 0.0, %v1290
    %v1292 = vpop.f32.mrb[0].mxu0
    %1293 = vmatprep.mubr.f32.mxu0 0.0
    %1294 = vmatmul.mubr.f32.gmra.mrb[0].mxu0 %v315
    %v1295 = vpop.f32.mrb[0].mxu0
    %v1296 = vadd.f32 0.0, %v1295
    %v1297 = vpop.f32.mrb[0].mxu0
    %1298 = vdwg.mxu0
    %1300 = vset.pattern.permute.xlu0 0
    %1301 = vperm.xlu0 %1300, %v1133
    %v1302 = vpop.permute.xlu0 %1301
    %1305 = vset.pattern.permute.xlu0 0
    %1306 = vperm.xlu0 %1305, %v1134
    %v1307 = vpop.permute.xlu0 %1306
    %1310 = vset.pattern.permute.xlu0 0
    %1311 = vperm.xlu0 %1310, %v1135
    %v1312 = vpop.permute.xlu0 %1311
    %1315 = vset.pattern.permute.xlu0 0
    %1316 = vperm.xlu0 %1315, %v1136
    %v1317 = vpop.permute.xlu0 %1316
    %1320 = vset.pattern.permute.xlu0 0
    %1321 = vperm.xlu0 %1320, %v1137
    %v1322 = vpop.permute.xlu0 %1321
    %1325 = vset.pattern.permute.xlu0 0
    %1326 = vperm.xlu0 %1325, %v1138
    %v1327 = vpop.permute.xlu0 %1326
    %1330 = vset.pattern.permute.xlu0 0
    %1331 = vperm.xlu0 %1330, %v1139
    %v1332 = vpop.permute.xlu0 %1331
    %1335 = vset.pattern.permute.xlu0 0
    %1336 = vperm.xlu0 %1335, %v1140
    %v1337 = vpop.permute.xlu0 %1336
    %1340 = vset.pattern.permute.xlu0 0
    %1341 = vperm.xlu0 %1340, %v1141
    %v1342 = vpop.permute.xlu0 %1341
    %1345 = vset.pattern.permute.xlu0 0
    %1346 = vperm.xlu0 %1345, %v1142
    %v1347 = vpop.permute.xlu0 %1346
    %1350 = vset.pattern.permute.xlu0 0
    %1351 = vperm.xlu0 %1350, %v1143
    %v1352 = vpop.permute.xlu0 %1351
    %1355 = vset.pattern.permute.xlu0 0
    %1356 = vperm.xlu0 %1355, %v1144
    %v1357 = vpop.permute.xlu0 %1356
    %1360 = vset.pattern.permute.xlu0 0
    %1361 = vperm.xlu0 %1360, %v1145
    %v1362 = vpop.permute.xlu0 %1361
    %1365 = vset.pattern.permute.xlu0 0
    %1366 = vperm.xlu0 %1365, %v1146
    %v1367 = vpop.permute.xlu0 %1366
    %1370 = vset.pattern.permute.xlu0 0
    %1371 = vperm.xlu0 %1370, %v1147
    %v1372 = vpop.permute.xlu0 %1371
    %1375 = vset.pattern.permute.xlu0 0
    %1376 = vperm.xlu0 %1375, %v1148
    %v1377 = vpop.permute.xlu0 %1376
    %v1379 = vmul.f32 %v1302, %v1221
    %v1380 = vmul.f32 %v1307, %v1226
    %v1381 = vmul.f32 %v1312, %v1231
    %v1382 = vmul.f32 %v1317, %v1236
    %v1383 = vmul.f32 %v1322, %v1241
    %v1384 = vmul.f32 %v1327, %v1246
    %v1385 = vmul.f32 %v1332, %v1251
    %v1386 = vmul.f32 %v1337, %v1256
    %v1387 = vmul.f32 %v1342, %v1261
    %v1388 = vmul.f32 %v1347, %v1266
    %v1389 = vmul.f32 %v1352, %v1271
    %v1390 = vmul.f32 %v1357, %v1276
    %v1391 = vmul.f32 %v1362, %v1281
    %v1392 = vmul.f32 %v1367, %v1286
    %v1393 = vmul.f32 %v1372, %v1291
    %v1394 = vmul.f32 %v1377, %v1296
    %v1395 = vadd.f32 %v1116, %v1379
    %v1396 = vadd.f32 %v1117, %v1380
    %v1397 = vadd.f32 %v1118, %v1381
    %v1398 = vadd.f32 %v1119, %v1382
    %v1399 = vadd.f32 %v1120, %v1383
    %v1400 = vadd.f32 %v1121, %v1384
    %v1401 = vadd.f32 %v1122, %v1385
    %v1402 = vadd.f32 %v1123, %v1386
    %v1403 = vadd.f32 %v1124, %v1387
    %v1404 = vadd.f32 %v1125, %v1388
    %v1405 = vadd.f32 %v1126, %v1389
    %v1406 = vadd.f32 %v1127, %v1390
    %v1407 = vadd.f32 %v1128, %v1391
    %v1408 = vadd.f32 %v1129, %v1392
    %v1409 = vadd.f32 %v1130, %v1393
    %v1410 = vadd.f32 %v1131, %v1394
    %s1411 = scalar_lea.vmem %s8, 512
    %v1412 = vld [vmem:[%s1411] sm:$0xff]
    %v1413 = vld [vmem:[%s1411 + $0x8] sm:$0xff]
    %v1414 = vld [vmem:[%s1411 + $0x10] sm:$0xff]
    %v1415 = vld [vmem:[%s1411 + $0x18] sm:$0xff]
    %v1416 = vld [vmem:[%s1411 + $0x20] sm:$0xff]
    %v1417 = vld [vmem:[%s1411 + $0x28] sm:$0xff]
    %v1418 = vld [vmem:[%s1411 + $0x30] sm:$0xff]
    %v1419 = vld [vmem:[%s1411 + $0x38] sm:$0xff]
    %v1420 = vld [vmem:[%s1411 + $0x40] sm:$0xff]
    %v1421 = vld [vmem:[%s1411 + $0x48] sm:$0xff]
    %v1422 = vld [vmem:[%s1411 + $0x50] sm:$0xff]
    %v1423 = vld [vmem:[%s1411 + $0x58] sm:$0xff]
    %v1424 = vld [vmem:[%s1411 + $0x60] sm:$0xff]
    %v1425 = vld [vmem:[%s1411 + $0x68] sm:$0xff]
    %v1426 = vld [vmem:[%s1411 + $0x70] sm:$0xff]
    %v1427 = vld [vmem:[%s1411 + $0x78] sm:$0xff]
    %s1428 = scalar_lea.vmem %s7, 128
    %v1429 = vld [vmem:[%s1428] sm:$0xff]
    %v1430 = vld [vmem:[%s1428 + $0x8] sm:$0xff]
    %v1431 = vld [vmem:[%s1428 + $0x10] sm:$0xff]
    %v1432 = vld [vmem:[%s1428 + $0x18] sm:$0xff]
    %1433 = vmatprep.subr.mxu0 0.0
    %1434 = vmatpush1.msra.mxu0 %v1429
    %1435 = vmatprep.subr.mxu0 0.0
    %1436 = vmatpush1.msra.mxu0 %v1430
    %1437 = vmatprep.subr.mxu0 0.0
    %1438 = vmatpush1.msra.mxu0 %v1431
    %1439 = vmatprep.subr.mxu0 0.0
    %1440 = vmatpush1.msra.mxu0 %v1432
    %1441 = vmatprep.subr.mxu0 0.0
    %1442 = vmatpush1.msra.mxu0 0.0
    %1443 = vmatprep.subr.mxu0 0.0
    %1444 = vmatpush1.msra.mxu0 0.0
    %1445 = vmatprep.subr.mxu0 0.0
    %1446 = vmatpush1.msra.mxu0 0.0
    %1447 = vmatprep.subr.mxu0 0.0
    %1448 = vmatpush1.msra.mxu0 0.0
    %1449 = vmatprep.subr.mxu0 0.0
    %1450 = vmatpush1.msra.mxu0 0.0
    %1451 = vmatprep.subr.mxu0 0.0
    %1452 = vmatpush1.msra.mxu0 0.0
    %1453 = vmatprep.subr.mxu0 0.0
    %1454 = vmatpush1.msra.mxu0 0.0
    %1455 = vmatprep.subr.mxu0 0.0
    %1456 = vmatpush1.msra.mxu0 0.0
    %1457 = vmatprep.subr.mxu0 0.0
    %1458 = vmatpush1.msra.mxu0 0.0
    %1459 = vmatprep.subr.mxu0 0.0
    %1460 = vmatpush1.msra.mxu0 0.0
    %1461 = vmatprep.subr.mxu0 0.0
    %1462 = vmatpush1.msra.mxu0 0.0
    %1463 = vmatprep.subr.mxu0 0.0
    %1464 = vmatpush1.msra.mxu0 0.0
    %1465 = vmatprep.subr.mxu0 0.0
    %1466 = vmatpush1.msra.mxu0 0.0
    %1467 = vmatprep.subr.mxu0 0.0
    %1468 = vmatpush1.msra.mxu0 0.0
    %1469 = vmatprep.subr.mxu0 0.0
    %1470 = vmatpush1.msra.mxu0 0.0
    %1471 = vmatprep.subr.mxu0 0.0
    %1472 = vmatpush1.msra.mxu0 0.0
    %1473 = vmatprep.subr.mxu0 0.0
    %1474 = vmatpush1.msra.mxu0 0.0
    %1475 = vmatprep.subr.mxu0 0.0
    %1476 = vmatpush1.msra.mxu0 0.0
    %1477 = vmatprep.subr.mxu0 0.0
    %1478 = vmatpush1.msra.mxu0 0.0
    %1479 = vmatprep.subr.mxu0 0.0
    %1480 = vmatpush1.msra.mxu0 0.0
    %1481 = vmatprep.subr.mxu0 0.0
    %1482 = vmatpush1.msra.mxu0 0.0
    %1483 = vmatprep.subr.mxu0 0.0
    %1484 = vmatpush1.msra.mxu0 0.0
    %1485 = vmatprep.subr.mxu0 0.0
    %1486 = vmatpush1.msra.mxu0 0.0
    %1487 = vmatprep.subr.mxu0 0.0
    %1488 = vmatpush1.msra.mxu0 0.0
    %1489 = vmatprep.subr.mxu0 0.0
    %1490 = vmatpush1.msra.mxu0 0.0
    %1491 = vmatprep.subr.mxu0 0.0
    %1492 = vmatpush1.msra.mxu0 0.0
    %1493 = vmatprep.subr.mxu0 0.0
    %1494 = vmatpush1.msra.mxu0 0.0
    %1495 = vmatprep.subr.mxu0 0.0
    %1496 = vmatpush1.msra.mxu0 0.0
    %1497 = vmatprep.mubr.f32.mxu0 0.0
    %1498 = vmatmul.mubr.f32.gmra.mrb[0].mxu0 %v270
    %v1499 = vpop.f32.mrb[0].mxu0
    %v1500 = vadd.f32 0.0, %v1499
    %v1501 = vpop.f32.mrb[0].mxu0
    %1502 = vmatprep.mubr.f32.mxu0 0.0
    %1503 = vmatmul.mubr.f32.gmra.mrb[0].mxu0 %v273
    %v1504 = vpop.f32.mrb[0].mxu0
    %v1505 = vadd.f32 0.0, %v1504
    %v1506 = vpop.f32.mrb[0].mxu0
    %1507 = vmatprep.mubr.f32.mxu0 0.0
    %1508 = vmatmul.mubr.f32.gmra.mrb[0].mxu0 %v276
    %v1509 = vpop.f32.mrb[0].mxu0
    %v1510 = vadd.f32 0.0, %v1509
    %v1511 = vpop.f32.mrb[0].mxu0
    %1512 = vmatprep.mubr.f32.mxu0 0.0
    %1513 = vmatmul.mubr.f32.gmra.mrb[0].mxu0 %v279
    %v1514 = vpop.f32.mrb[0].mxu0
    %v1515 = vadd.f32 0.0, %v1514
    %v1516 = vpop.f32.mrb[0].mxu0
    %1517 = vmatprep.mubr.f32.mxu0 0.0
    %1518 = vmatmul.mubr.f32.gmra.mrb[0].mxu0 %v282
    %v1519 = vpop.f32.mrb[0].mxu0
    %v1520 = vadd.f32 0.0, %v1519
    %v1521 = vpop.f32.mrb[0].mxu0
    %1522 = vmatprep.mubr.f32.mxu0 0.0
    %1523 = vmatmul.mubr.f32.gmra.mrb[0].mxu0 %v285
    %v1524 = vpop.f32.mrb[0].mxu0
    %v1525 = vadd.f32 0.0, %v1524
    %v1526 = vpop.f32.mrb[0].mxu0
    %1527 = vmatprep.mubr.f32.mxu0 0.0
    %1528 = vmatmul.mubr.f32.gmra.mrb[0].mxu0 %v288
    %v1529 = vpop.f32.mrb[0].mxu0
    %v1530 = vadd.f32 0.0, %v1529
    %v1531 = vpop.f32.mrb[0].mxu0
    %1532 = vmatprep.mubr.f32.mxu0 0.0
    %1533 = vmatmul.mubr.f32.gmra.mrb[0].mxu0 %v291
    %v1534 = vpop.f32.mrb[0].mxu0
    %v1535 = vadd.f32 0.0, %v1534
    %v1536 = vpop.f32.mrb[0].mxu0
    %1537 = vmatprep.mubr.f32.mxu0 0.0
    %1538 = vmatmul.mubr.f32.gmra.mrb[0].mxu0 %v294
    %v1539 = vpop.f32.mrb[0].mxu0
    %v1540 = vadd.f32 0.0, %v1539
    %v1541 = vpop.f32.mrb[0].mxu0
    %1542 = vmatprep.mubr.f32.mxu0 0.0
    %1543 = vmatmul.mubr.f32.gmra.mrb[0].mxu0 %v297
    %v1544 = vpop.f32.mrb[0].mxu0
    %v1545 = vadd.f32 0.0, %v1544
    %v1546 = vpop.f32.mrb[0].mxu0
    %1547 = vmatprep.mubr.f32.mxu0 0.0
    %1548 = vmatmul.mubr.f32.gmra.mrb[0].mxu0 %v300
    %v1549 = vpop.f32.mrb[0].mxu0
    %v1550 = vadd.f32 0.0, %v1549
    %v1551 = vpop.f32.mrb[0].mxu0
    %1552 = vmatprep.mubr.f32.mxu0 0.0
    %1553 = vmatmul.mubr.f32.gmra.mrb[0].mxu0 %v303
    %v1554 = vpop.f32.mrb[0].mxu0
    %v1555 = vadd.f32 0.0, %v1554
    %v1556 = vpop.f32.mrb[0].mxu0
    %1557 = vmatprep.mubr.f32.mxu0 0.0
    %1558 = vmatmul.mubr.f32.gmra.mrb[0].mxu0 %v306
    %v1559 = vpop.f32.mrb[0].mxu0
    %v1560 = vadd.f32 0.0, %v1559
    %v1561 = vpop.f32.mrb[0].mxu0
    %1562 = vmatprep.mubr.f32.mxu0 0.0
    %1563 = vmatmul.mubr.f32.gmra.mrb[0].mxu0 %v309
    %v1564 = vpop.f32.mrb[0].mxu0
    %v1565 = vadd.f32 0.0, %v1564
    %v1566 = vpop.f32.mrb[0].mxu0
    %1567 = vmatprep.mubr.f32.mxu0 0.0
    %1568 = vmatmul.mubr.f32.gmra.mrb[0].mxu0 %v312
    %v1569 = vpop.f32.mrb[0].mxu0
    %v1570 = vadd.f32 0.0, %v1569
    %v1571 = vpop.f32.mrb[0].mxu0
    %1572 = vmatprep.mubr.f32.mxu0 0.0
    %1573 = vmatmul.mubr.f32.gmra.mrb[0].mxu0 %v315
    %v1574 = vpop.f32.mrb[0].mxu0
    %v1575 = vadd.f32 0.0, %v1574
    %v1576 = vpop.f32.mrb[0].mxu0
    %1577 = vdwg.mxu0
    %1579 = vset.pattern.permute.xlu0 0
    %1580 = vperm.xlu0 %1579, %v1412
    %v1581 = vpop.permute.xlu0 %1580
    %1584 = vset.pattern.permute.xlu0 0
    %1585 = vperm.xlu0 %1584, %v1413
    %v1586 = vpop.permute.xlu0 %1585
    %1589 = vset.pattern.permute.xlu0 0
    %1590 = vperm.xlu0 %1589, %v1414
    %v1591 = vpop.permute.xlu0 %1590
    %1594 = vset.pattern.permute.xlu0 0
    %1595 = vperm.xlu0 %1594, %v1415
    %v1596 = vpop.permute.xlu0 %1595
    %1599 = vset.pattern.permute.xlu0 0
    %1600 = vperm.xlu0 %1599, %v1416
    %v1601 = vpop.permute.xlu0 %1600
    %1604 = vset.pattern.permute.xlu0 0
    %1605 = vperm.xlu0 %1604, %v1417
    %v1606 = vpop.permute.xlu0 %1605
    %1609 = vset.pattern.permute.xlu0 0
    %1610 = vperm.xlu0 %1609, %v1418
    %v1611 = vpop.permute.xlu0 %1610
    %1614 = vset.pattern.permute.xlu0 0
    %1615 = vperm.xlu0 %1614, %v1419
    %v1616 = vpop.permute.xlu0 %1615
    %1619 = vset.pattern.permute.xlu0 0
    %1620 = vperm.xlu0 %1619, %v1420
    %v1621 = vpop.permute.xlu0 %1620
    %1624 = vset.pattern.permute.xlu0 0
    %1625 = vperm.xlu0 %1624, %v1421
    %v1626 = vpop.permute.xlu0 %1625
    %1629 = vset.pattern.permute.xlu0 0
    %1630 = vperm.xlu0 %1629, %v1422
    %v1631 = vpop.permute.xlu0 %1630
    %1634 = vset.pattern.permute.xlu0 0
    %1635 = vperm.xlu0 %1634, %v1423
    %v1636 = vpop.permute.xlu0 %1635
    %1639 = vset.pattern.permute.xlu0 0
    %1640 = vperm.xlu0 %1639, %v1424
    %v1641 = vpop.permute.xlu0 %1640
    %1644 = vset.pattern.permute.xlu0 0
    %1645 = vperm.xlu0 %1644, %v1425
    %v1646 = vpop.permute.xlu0 %1645
    %1649 = vset.pattern.permute.xlu0 0
    %1650 = vperm.xlu0 %1649, %v1426
    %v1651 = vpop.permute.xlu0 %1650
    %1654 = vset.pattern.permute.xlu0 0
    %1655 = vperm.xlu0 %1654, %v1427
    %v1656 = vpop.permute.xlu0 %1655
    %v1658 = vmul.f32 %v1581, %v1500
    %v1659 = vmul.f32 %v1586, %v1505
    %v1660 = vmul.f32 %v1591, %v1510
    %v1661 = vmul.f32 %v1596, %v1515
    %v1662 = vmul.f32 %v1601, %v1520
    %v1663 = vmul.f32 %v1606, %v1525
    %v1664 = vmul.f32 %v1611, %v1530
    %v1665 = vmul.f32 %v1616, %v1535
    %v1666 = vmul.f32 %v1621, %v1540
    %v1667 = vmul.f32 %v1626, %v1545
    %v1668 = vmul.f32 %v1631, %v1550
    %v1669 = vmul.f32 %v1636, %v1555
    %v1670 = vmul.f32 %v1641, %v1560
    %v1671 = vmul.f32 %v1646, %v1565
    %v1672 = vmul.f32 %v1651, %v1570
    %v1673 = vmul.f32 %v1656, %v1575
    %v1674 = vadd.f32 %v1395, %v1658
    %v1675 = vadd.f32 %v1396, %v1659
    %v1676 = vadd.f32 %v1397, %v1660
    %v1677 = vadd.f32 %v1398, %v1661
    %v1678 = vadd.f32 %v1399, %v1662
    %v1679 = vadd.f32 %v1400, %v1663
    %v1680 = vadd.f32 %v1401, %v1664
    %v1681 = vadd.f32 %v1402, %v1665
    %v1682 = vadd.f32 %v1403, %v1666
    %v1683 = vadd.f32 %v1404, %v1667
    %v1684 = vadd.f32 %v1405, %v1668
    %v1685 = vadd.f32 %v1406, %v1669
    %v1686 = vadd.f32 %v1407, %v1670
    %v1687 = vadd.f32 %v1408, %v1671
    %v1688 = vadd.f32 %v1409, %v1672
    %v1689 = vadd.f32 %v1410, %v1673
    %v1690 = vld [vmem:[%s2] sm:$0xff]
    %v1691 = vld [vmem:[%s2 + $0x8] sm:$0xff]
    %v1692 = vld [vmem:[%s2 + $0x10] sm:$0xff]
    %v1693 = vld [vmem:[%s2 + $0x18] sm:$0xff]
    %v1694 = vld [vmem:[%s3] sm:$0x3]
    %v1695 = vld [vmem:[%s4] sm:$0xff]
    %v1696 = vld [vmem:[%s4 + $0x8] sm:$0xff]
    %v1697 = vld [vmem:[%s4 + $0x10] sm:$0xff]
    %v1698 = vld [vmem:[%s4 + $0x18] sm:$0xff]
    %v1699 = vld [vmem:[%s4 + $0x20] sm:$0xff]
    %v1700 = vld [vmem:[%s4 + $0x28] sm:$0xff]
    %v1701 = vld [vmem:[%s4 + $0x30] sm:$0xff]
    %v1702 = vld [vmem:[%s4 + $0x38] sm:$0xff]
    %v1703 = vld [vmem:[%s5] sm:$0xff]
    %v1704 = vld [vmem:[%s5 + $0x8] sm:$0xff]
    %v1705 = vld [vmem:[%s5 + $0x10] sm:$0xff]
    %v1706 = vld [vmem:[%s5 + $0x18] sm:$0xff]
    %v1707 = vld [vmem:[%s5 + $0x20] sm:$0xff]
    %v1708 = vld [vmem:[%s5 + $0x28] sm:$0xff]
    %v1709 = vld [vmem:[%s5 + $0x30] sm:$0xff]
    %v1710 = vld [vmem:[%s5 + $0x38] sm:$0xff]
    %v1711 = vld [vmem:[%s5 + $0x40] sm:$0xff]
    %v1712 = vld [vmem:[%s5 + $0x48] sm:$0xff]
    %v1713 = vld [vmem:[%s5 + $0x50] sm:$0xff]
    %v1714 = vld [vmem:[%s5 + $0x58] sm:$0xff]
    %v1715 = vld [vmem:[%s5 + $0x60] sm:$0xff]
    %v1716 = vld [vmem:[%s5 + $0x68] sm:$0xff]
    %v1717 = vld [vmem:[%s5 + $0x70] sm:$0xff]
    %v1718 = vld [vmem:[%s5 + $0x78] sm:$0xff]
    %v1720 = vsel %vm268, %v1674, 0
    %v1723 = vsel %vm268, %v1675, 0
    %v1726 = vsel %vm268, %v1676, 0
    %v1729 = vsel %vm268, %v1677, 0
    %v1732 = vsel %vm268, %v1678, 0
    %v1735 = vsel %vm268, %v1679, 0
    %v1738 = vsel %vm268, %v1680, 0
    %v1741 = vsel %vm268, %v1681, 0
    %v1744 = vsel %vm268, %v1682, 0
    %v1747 = vsel %vm268, %v1683, 0
    %v1750 = vsel %vm268, %v1684, 0
    %v1753 = vsel %vm268, %v1685, 0
    %v1756 = vsel %vm268, %v1686, 0
    %v1759 = vsel %vm268, %v1687, 0
    %v1762 = vsel %vm268, %v1688, 0
    %v1765 = vsel %vm268, %v1689, 0
    %1767 = vmatprep.subr.mxu0 0.0
    %1768 = vmatpush1.msra.mxu0 %v1690
    %1769 = vmatprep.subr.mxu0 0.0
    %1770 = vmatpush1.msra.mxu0 %v1691
    %1771 = vmatprep.subr.mxu0 0.0
    %1772 = vmatpush1.msra.mxu0 %v1692
    %1773 = vmatprep.subr.mxu0 0.0
    %1774 = vmatpush1.msra.mxu0 %v1693
    %1775 = vmatprep.subr.mxu0 0.0
    %1776 = vmatpush1.msra.mxu0 0.0
    %1777 = vmatprep.subr.mxu0 0.0
    %1778 = vmatpush1.msra.mxu0 0.0
    %1779 = vmatprep.subr.mxu0 0.0
    %1780 = vmatpush1.msra.mxu0 0.0
    %1781 = vmatprep.subr.mxu0 0.0
    %1782 = vmatpush1.msra.mxu0 0.0
    %1783 = vmatprep.subr.mxu0 0.0
    %1784 = vmatpush1.msra.mxu0 0.0
    %1785 = vmatprep.subr.mxu0 0.0
    %1786 = vmatpush1.msra.mxu0 0.0
    %1787 = vmatprep.subr.mxu0 0.0
    %1788 = vmatpush1.msra.mxu0 0.0
    %1789 = vmatprep.subr.mxu0 0.0
    %1790 = vmatpush1.msra.mxu0 0.0
    %1791 = vmatprep.subr.mxu0 0.0
    %1792 = vmatpush1.msra.mxu0 0.0
    %1793 = vmatprep.subr.mxu0 0.0
    %1794 = vmatpush1.msra.mxu0 0.0
    %1795 = vmatprep.subr.mxu0 0.0
    %1796 = vmatpush1.msra.mxu0 0.0
    %1797 = vmatprep.subr.mxu0 0.0
    %1798 = vmatpush1.msra.mxu0 0.0
    %1799 = vmatprep.subr.mxu0 0.0
    %1800 = vmatpush1.msra.mxu0 0.0
    %1801 = vmatprep.subr.mxu0 0.0
    %1802 = vmatpush1.msra.mxu0 0.0
    %1803 = vmatprep.subr.mxu0 0.0
    %1804 = vmatpush1.msra.mxu0 0.0
    %1805 = vmatprep.subr.mxu0 0.0
    %1806 = vmatpush1.msra.mxu0 0.0
    %1807 = vmatprep.subr.mxu0 0.0
    %1808 = vmatpush1.msra.mxu0 0.0
    %1809 = vmatprep.subr.mxu0 0.0
    %1810 = vmatpush1.msra.mxu0 0.0
    %1811 = vmatprep.subr.mxu0 0.0
    %1812 = vmatpush1.msra.mxu0 0.0
    %1813 = vmatprep.subr.mxu0 0.0
    %1814 = vmatpush1.msra.mxu0 0.0
    %1815 = vmatprep.subr.mxu0 0.0
    %1816 = vmatpush1.msra.mxu0 0.0
    %1817 = vmatprep.subr.mxu0 0.0
    %1818 = vmatpush1.msra.mxu0 0.0
    %1819 = vmatprep.subr.mxu0 0.0
    %1820 = vmatpush1.msra.mxu0 0.0
    %1821 = vmatprep.subr.mxu0 0.0
    %1822 = vmatpush1.msra.mxu0 0.0
    %1823 = vmatprep.subr.mxu0 0.0
    %1824 = vmatpush1.msra.mxu0 0.0
    %1825 = vmatprep.subr.mxu0 0.0
    %1826 = vmatpush1.msra.mxu0 0.0
    %1827 = vmatprep.subr.mxu0 0.0
    %1828 = vmatpush1.msra.mxu0 0.0
    %1829 = vmatprep.subr.mxu0 0.0
    %1830 = vmatpush1.msra.mxu0 0.0
    %1831 = vmatprep.mubr.f32.mxu0 0.0
    %1832 = vmatmul.mubr.f32.gmra.mrb[0].mxu0 %v1720
    %v1833 = vpop.f32.mrb[0].mxu0
    %v1834 = vadd.f32 0.0, %v1833
    %v1835 = vpop.f32.mrb[0].mxu0
    %1836 = vmatprep.mubr.f32.mxu0 0.0
    %1837 = vmatmul.mubr.f32.gmra.mrb[0].mxu0 %v1723
    %v1838 = vpop.f32.mrb[0].mxu0
    %v1839 = vadd.f32 0.0, %v1838
    %v1840 = vpop.f32.mrb[0].mxu0
    %1841 = vmatprep.mubr.f32.mxu0 0.0
    %1842 = vmatmul.mubr.f32.gmra.mrb[0].mxu0 %v1726
    %v1843 = vpop.f32.mrb[0].mxu0
    %v1844 = vadd.f32 0.0, %v1843
    %v1845 = vpop.f32.mrb[0].mxu0
    %1846 = vmatprep.mubr.f32.mxu0 0.0
    %1847 = vmatmul.mubr.f32.gmra.mrb[0].mxu0 %v1729
    %v1848 = vpop.f32.mrb[0].mxu0
    %v1849 = vadd.f32 0.0, %v1848
    %v1850 = vpop.f32.mrb[0].mxu0
    %1851 = vmatprep.mubr.f32.mxu0 0.0
    %1852 = vmatmul.mubr.f32.gmra.mrb[0].mxu0 %v1732
    %v1853 = vpop.f32.mrb[0].mxu0
    %v1854 = vadd.f32 0.0, %v1853
    %v1855 = vpop.f32.mrb[0].mxu0
    %1856 = vmatprep.mubr.f32.mxu0 0.0
    %1857 = vmatmul.mubr.f32.gmra.mrb[0].mxu0 %v1735
    %v1858 = vpop.f32.mrb[0].mxu0
    %v1859 = vadd.f32 0.0, %v1858
    %v1860 = vpop.f32.mrb[0].mxu0
    %1861 = vmatprep.mubr.f32.mxu0 0.0
    %1862 = vmatmul.mubr.f32.gmra.mrb[0].mxu0 %v1738
    %v1863 = vpop.f32.mrb[0].mxu0
    %v1864 = vadd.f32 0.0, %v1863
    %v1865 = vpop.f32.mrb[0].mxu0
    %1866 = vmatprep.mubr.f32.mxu0 0.0
    %1867 = vmatmul.mubr.f32.gmra.mrb[0].mxu0 %v1741
    %v1868 = vpop.f32.mrb[0].mxu0
    %v1869 = vadd.f32 0.0, %v1868
    %v1870 = vpop.f32.mrb[0].mxu0
    %1871 = vmatprep.mubr.f32.mxu0 0.0
    %1872 = vmatmul.mubr.f32.gmra.mrb[0].mxu0 %v1744
    %v1873 = vpop.f32.mrb[0].mxu0
    %v1874 = vadd.f32 0.0, %v1873
    %v1875 = vpop.f32.mrb[0].mxu0
    %1876 = vmatprep.mubr.f32.mxu0 0.0
    %1877 = vmatmul.mubr.f32.gmra.mrb[0].mxu0 %v1747
    %v1878 = vpop.f32.mrb[0].mxu0
    %v1879 = vadd.f32 0.0, %v1878
    %v1880 = vpop.f32.mrb[0].mxu0
    %1881 = vmatprep.mubr.f32.mxu0 0.0
    %1882 = vmatmul.mubr.f32.gmra.mrb[0].mxu0 %v1750
    %v1883 = vpop.f32.mrb[0].mxu0
    %v1884 = vadd.f32 0.0, %v1883
    %v1885 = vpop.f32.mrb[0].mxu0
    %1886 = vmatprep.mubr.f32.mxu0 0.0
    %1887 = vmatmul.mubr.f32.gmra.mrb[0].mxu0 %v1753
    %v1888 = vpop.f32.mrb[0].mxu0
    %v1889 = vadd.f32 0.0, %v1888
    %v1890 = vpop.f32.mrb[0].mxu0
    %1891 = vmatprep.mubr.f32.mxu0 0.0
    %1892 = vmatmul.mubr.f32.gmra.mrb[0].mxu0 %v1756
    %v1893 = vpop.f32.mrb[0].mxu0
    %v1894 = vadd.f32 0.0, %v1893
    %v1895 = vpop.f32.mrb[0].mxu0
    %1896 = vmatprep.mubr.f32.mxu0 0.0
    %1897 = vmatmul.mubr.f32.gmra.mrb[0].mxu0 %v1759
    %v1898 = vpop.f32.mrb[0].mxu0
    %v1899 = vadd.f32 0.0, %v1898
    %v1900 = vpop.f32.mrb[0].mxu0
    %1901 = vmatprep.mubr.f32.mxu0 0.0
    %1902 = vmatmul.mubr.f32.gmra.mrb[0].mxu0 %v1762
    %v1903 = vpop.f32.mrb[0].mxu0
    %v1904 = vadd.f32 0.0, %v1903
    %v1905 = vpop.f32.mrb[0].mxu0
    %1906 = vmatprep.mubr.f32.mxu0 0.0
    %1907 = vmatmul.mubr.f32.gmra.mrb[0].mxu0 %v1765
    %v1908 = vpop.f32.mrb[0].mxu0
    %v1909 = vadd.f32 0.0, %v1908
    %v1910 = vpop.f32.mrb[0].mxu0
    %1911 = vdwg.mxu0
    %1912 = vmatprep.subr.mxu0 0.0
    %1913 = vmatpush1.msra.mxu0 %v1834
    %1914 = vmatprep.subr.mxu0 0.0
    %1915 = vmatpush1.msra.mxu0 %v1839
    %1916 = vmatprep.subr.mxu0 0.0
    %1917 = vmatpush1.msra.mxu0 %v1844
    %1918 = vmatprep.subr.mxu0 0.0
    %1919 = vmatpush1.msra.mxu0 %v1849
    %1920 = vmatprep.subr.mxu0 0.0
    %1921 = vmatpush1.msra.mxu0 %v1854
    %1922 = vmatprep.subr.mxu0 0.0
    %1923 = vmatpush1.msra.mxu0 %v1859
    %1924 = vmatprep.subr.mxu0 0.0
    %1925 = vmatpush1.msra.mxu0 %v1864
    %1926 = vmatprep.subr.mxu0 0.0
    %1927 = vmatpush1.msra.mxu0 %v1869
    %1928 = vmatprep.subr.mxu0 0.0
    %1929 = vmatpush1.msra.mxu0 %v1874
    %1930 = vmatprep.subr.mxu0 0.0
    %1931 = vmatpush1.msra.mxu0 %v1879
    %1932 = vmatprep.subr.mxu0 0.0
    %1933 = vmatpush1.msra.mxu0 %v1884
    %1934 = vmatprep.subr.mxu0 0.0
    %1935 = vmatpush1.msra.mxu0 %v1889
    %1936 = vmatprep.subr.mxu0 0.0
    %1937 = vmatpush1.msra.mxu0 %v1894
    %1938 = vmatprep.subr.mxu0 0.0
    %1939 = vmatpush1.msra.mxu0 %v1899
    %1940 = vmatprep.subr.mxu0 0.0
    %1941 = vmatpush1.msra.mxu0 %v1904
    %1942 = vmatprep.subr.mxu0 0.0
    %1943 = vmatpush1.msra.mxu0 %v1909
    %1944 = vmatprep.subr.mxu0 0.0
    %1945 = vmatpush1.msra.mxu0 0.0
    %1946 = vmatprep.subr.mxu0 0.0
    %1947 = vmatpush1.msra.mxu0 0.0
    %1948 = vmatprep.subr.mxu0 0.0
    %1949 = vmatpush1.msra.mxu0 0.0
    %1950 = vmatprep.subr.mxu0 0.0
    %1951 = vmatpush1.msra.mxu0 0.0
    %1952 = vmatprep.subr.mxu0 0.0
    %1953 = vmatpush1.msra.mxu0 0.0
    %1954 = vmatprep.subr.mxu0 0.0
    %1955 = vmatpush1.msra.mxu0 0.0
    %1956 = vmatprep.subr.mxu0 0.0
    %1957 = vmatpush1.msra.mxu0 0.0
    %1958 = vmatprep.subr.mxu0 0.0
    %1959 = vmatpush1.msra.mxu0 0.0
    %1960 = vmatprep.subr.mxu0 0.0
    %1961 = vmatpush1.msra.mxu0 0.0
    %1962 = vmatprep.subr.mxu0 0.0
    %1963 = vmatpush1.msra.mxu0 0.0
    %1964 = vmatprep.subr.mxu0 0.0
    %1965 = vmatpush1.msra.mxu0 0.0
    %1966 = vmatprep.subr.mxu0 0.0
    %1967 = vmatpush1.msra.mxu0 0.0
    %1968 = vmatprep.subr.mxu0 0.0
    %1969 = vmatpush1.msra.mxu0 0.0
    %1970 = vmatprep.subr.mxu0 0.0
    %1971 = vmatpush1.msra.mxu0 0.0
    %1972 = vmatprep.subr.mxu0 0.0
    %1973 = vmatpush1.msra.mxu0 0.0
    %1974 = vmatprep.subr.mxu0 0.0
    %1975 = vmatpush1.msra.mxu0 0.0
    %1976 = vmatprep.mubr.f32.mxu0 0.0
    %1977 = vmatmul.mubr.f32.gmra.mrb[0].mxu0 %v1695
    %v1978 = vpop.f32.mrb[0].mxu0
    %v1979 = vadd.f32 0.0, %v1978
    %v1980 = vpop.f32.mrb[0].mxu0
    %1981 = vmatprep.mubr.f32.mxu0 0.0
    %1982 = vmatmul.mubr.f32.gmra.mrb[0].mxu0 %v1696
    %v1983 = vpop.f32.mrb[0].mxu0
    %v1984 = vadd.f32 0.0, %v1983
    %v1985 = vpop.f32.mrb[0].mxu0
    %1986 = vmatprep.mubr.f32.mxu0 0.0
    %1987 = vmatmul.mubr.f32.gmra.mrb[0].mxu0 %v1697
    %v1988 = vpop.f32.mrb[0].mxu0
    %v1989 = vadd.f32 0.0, %v1988
    %v1990 = vpop.f32.mrb[0].mxu0
    %1991 = vmatprep.mubr.f32.mxu0 0.0
    %1992 = vmatmul.mubr.f32.gmra.mrb[0].mxu0 %v1698
    %v1993 = vpop.f32.mrb[0].mxu0
    %v1994 = vadd.f32 0.0, %v1993
    %v1995 = vpop.f32.mrb[0].mxu0
    %1996 = vmatprep.mubr.f32.mxu0 0.0
    %1997 = vmatmul.mubr.f32.gmra.mrb[0].mxu0 %v1699
    %v1998 = vpop.f32.mrb[0].mxu0
    %v1999 = vadd.f32 0.0, %v1998
    %v2000 = vpop.f32.mrb[0].mxu0
    %2001 = vmatprep.mubr.f32.mxu0 0.0
    %2002 = vmatmul.mubr.f32.gmra.mrb[0].mxu0 %v1700
    %v2003 = vpop.f32.mrb[0].mxu0
    %v2004 = vadd.f32 0.0, %v2003
    %v2005 = vpop.f32.mrb[0].mxu0
    %2006 = vmatprep.mubr.f32.mxu0 0.0
    %2007 = vmatmul.mubr.f32.gmra.mrb[0].mxu0 %v1701
    %v2008 = vpop.f32.mrb[0].mxu0
    %v2009 = vadd.f32 0.0, %v2008
    %v2010 = vpop.f32.mrb[0].mxu0
    %2011 = vmatprep.mubr.f32.mxu0 0.0
    %2012 = vmatmul.mubr.f32.gmra.mrb[0].mxu0 %v1702
    %v2013 = vpop.f32.mrb[0].mxu0
    %v2014 = vadd.f32 0.0, %v2013
    %v2015 = vpop.f32.mrb[0].mxu0
    %2016 = vdwg.mxu0
    %vm2017 = vcmask 523264
    %v2019 = vsel %vm2017, %v1703, 0
    %v2022 = vsel %vm2017, %v1704, 0
    %v2025 = vsel %vm2017, %v1705, 0
    %v2028 = vsel %vm2017, %v1706, 0
    %v2031 = vsel %vm2017, %v1707, 0
    %v2034 = vsel %vm2017, %v1708, 0
    %v2037 = vsel %vm2017, %v1709, 0
    %v2040 = vsel %vm2017, %v1710, 0
    %v2043 = vsel %vm2017, %v1711, 0
    %v2046 = vsel %vm2017, %v1712, 0
    %v2049 = vsel %vm2017, %v1713, 0
    %v2052 = vsel %vm2017, %v1714, 0
    %v2055 = vsel %vm2017, %v1715, 0
    %v2058 = vsel %vm2017, %v1716, 0
    %v2061 = vsel %vm2017, %v1717, 0
    %v2064 = vsel %vm2017, %v1718, 0
    %2066 = vmatprep.subr.mxu0 0.0
    %2067 = vmatpush1.msra.mxu0 %v1979
    %2068 = vmatprep.subr.mxu0 0.0
    %2069 = vmatpush1.msra.mxu0 %v1984
    %2070 = vmatprep.subr.mxu0 0.0
    %2071 = vmatpush1.msra.mxu0 %v1989
    %2072 = vmatprep.subr.mxu0 0.0
    %2073 = vmatpush1.msra.mxu0 %v1994
    %2074 = vmatprep.subr.mxu0 0.0
    %2075 = vmatpush1.msra.mxu0 %v1999
    %2076 = vmatprep.subr.mxu0 0.0
    %2077 = vmatpush1.msra.mxu0 %v2004
    %2078 = vmatprep.subr.mxu0 0.0
    %2079 = vmatpush1.msra.mxu0 %v2009
    %2080 = vmatprep.subr.mxu0 0.0
    %2081 = vmatpush1.msra.mxu0 %v2014
    %2082 = vmatprep.subr.mxu0 0.0
    %2083 = vmatpush1.msra.mxu0 0.0
    %2084 = vmatprep.subr.mxu0 0.0
    %2085 = vmatpush1.msra.mxu0 0.0
    %2086 = vmatprep.subr.mxu0 0.0
    %2087 = vmatpush1.msra.mxu0 0.0
    %2088 = vmatprep.subr.mxu0 0.0
    %2089 = vmatpush1.msra.mxu0 0.0
    %2090 = vmatprep.subr.mxu0 0.0
    %2091 = vmatpush1.msra.mxu0 0.0
    %2092 = vmatprep.subr.mxu0 0.0
    %2093 = vmatpush1.msra.mxu0 0.0
    %2094 = vmatprep.subr.mxu0 0.0
    %2095 = vmatpush1.msra.mxu0 0.0
    %2096 = vmatprep.subr.mxu0 0.0
    %2097 = vmatpush1.msra.mxu0 0.0
    %2098 = vmatprep.subr.mxu0 0.0
    %2099 = vmatpush1.msra.mxu0 0.0
    %2100 = vmatprep.subr.mxu0 0.0
    %2101 = vmatpush1.msra.mxu0 0.0
    %2102 = vmatprep.subr.mxu0 0.0
    %2103 = vmatpush1.msra.mxu0 0.0
    %2104 = vmatprep.subr.mxu0 0.0
    %2105 = vmatpush1.msra.mxu0 0.0
    %2106 = vmatprep.subr.mxu0 0.0
    %2107 = vmatpush1.msra.mxu0 0.0
    %2108 = vmatprep.subr.mxu0 0.0
    %2109 = vmatpush1.msra.mxu0 0.0
    %2110 = vmatprep.subr.mxu0 0.0
    %2111 = vmatpush1.msra.mxu0 0.0
    %2112 = vmatprep.subr.mxu0 0.0
    %2113 = vmatpush1.msra.mxu0 0.0
    %2114 = vmatprep.subr.mxu0 0.0
    %2115 = vmatpush1.msra.mxu0 0.0
    %2116 = vmatprep.subr.mxu0 0.0
    %2117 = vmatpush1.msra.mxu0 0.0
    %2118 = vmatprep.subr.mxu0 0.0
    %2119 = vmatpush1.msra.mxu0 0.0
    %2120 = vmatprep.subr.mxu0 0.0
    %2121 = vmatpush1.msra.mxu0 0.0
    %2122 = vmatprep.subr.mxu0 0.0
    %2123 = vmatpush1.msra.mxu0 0.0
    %2124 = vmatprep.subr.mxu0 0.0
    %2125 = vmatpush1.msra.mxu0 0.0
    %2126 = vmatprep.subr.mxu0 0.0
    %2127 = vmatpush1.msra.mxu0 0.0
    %2128 = vmatprep.subr.mxu0 0.0
    %2129 = vmatpush1.msra.mxu0 0.0
    %2130 = vmatprep.mubr.f32.mxu0 0.0
    %2131 = vmatmul.mubr.f32.gmra.mrb[0].mxu0 %v2019
    %v2132 = vpop.f32.mrb[0].mxu0
    %v2133 = vadd.f32 0.0, %v2132
    %v2134 = vpop.f32.mrb[0].mxu0
    %2135 = vmatprep.mubr.f32.mxu0 0.0
    %2136 = vmatmul.mubr.f32.gmra.mrb[0].mxu0 %v2022
    %v2137 = vpop.f32.mrb[0].mxu0
    %v2138 = vadd.f32 0.0, %v2137
    %v2139 = vpop.f32.mrb[0].mxu0
    %2140 = vmatprep.mubr.f32.mxu0 0.0
    %2141 = vmatmul.mubr.f32.gmra.mrb[0].mxu0 %v2025
    %v2142 = vpop.f32.mrb[0].mxu0
    %v2143 = vadd.f32 0.0, %v2142
    %v2144 = vpop.f32.mrb[0].mxu0
    %2145 = vmatprep.mubr.f32.mxu0 0.0
    %2146 = vmatmul.mubr.f32.gmra.mrb[0].mxu0 %v2028
    %v2147 = vpop.f32.mrb[0].mxu0
    %v2148 = vadd.f32 0.0, %v2147
    %v2149 = vpop.f32.mrb[0].mxu0
    %2150 = vmatprep.mubr.f32.mxu0 0.0
    %2151 = vmatmul.mubr.f32.gmra.mrb[0].mxu0 %v2031
    %v2152 = vpop.f32.mrb[0].mxu0
    %v2153 = vadd.f32 0.0, %v2152
    %v2154 = vpop.f32.mrb[0].mxu0
    %2155 = vmatprep.mubr.f32.mxu0 0.0
    %2156 = vmatmul.mubr.f32.gmra.mrb[0].mxu0 %v2034
    %v2157 = vpop.f32.mrb[0].mxu0
    %v2158 = vadd.f32 0.0, %v2157
    %v2159 = vpop.f32.mrb[0].mxu0
    %2160 = vmatprep.mubr.f32.mxu0 0.0
    %2161 = vmatmul.mubr.f32.gmra.mrb[0].mxu0 %v2037
    %v2162 = vpop.f32.mrb[0].mxu0
    %v2163 = vadd.f32 0.0, %v2162
    %v2164 = vpop.f32.mrb[0].mxu0
    %2165 = vmatprep.mubr.f32.mxu0 0.0
    %2166 = vmatmul.mubr.f32.gmra.mrb[0].mxu0 %v2040
    %v2167 = vpop.f32.mrb[0].mxu0
    %v2168 = vadd.f32 0.0, %v2167
    %v2169 = vpop.f32.mrb[0].mxu0
    %2170 = vmatprep.mubr.f32.mxu0 0.0
    %2171 = vmatmul.mubr.f32.gmra.mrb[0].mxu0 %v2043
    %v2172 = vpop.f32.mrb[0].mxu0
    %v2173 = vadd.f32 0.0, %v2172
    %v2174 = vpop.f32.mrb[0].mxu0
    %2175 = vmatprep.mubr.f32.mxu0 0.0
    %2176 = vmatmul.mubr.f32.gmra.mrb[0].mxu0 %v2046
    %v2177 = vpop.f32.mrb[0].mxu0
    %v2178 = vadd.f32 0.0, %v2177
    %v2179 = vpop.f32.mrb[0].mxu0
    %2180 = vmatprep.mubr.f32.mxu0 0.0
    %2181 = vmatmul.mubr.f32.gmra.mrb[0].mxu0 %v2049
    %v2182 = vpop.f32.mrb[0].mxu0
    %v2183 = vadd.f32 0.0, %v2182
    %v2184 = vpop.f32.mrb[0].mxu0
    %2185 = vmatprep.mubr.f32.mxu0 0.0
    %2186 = vmatmul.mubr.f32.gmra.mrb[0].mxu0 %v2052
    %v2187 = vpop.f32.mrb[0].mxu0
    %v2188 = vadd.f32 0.0, %v2187
    %v2189 = vpop.f32.mrb[0].mxu0
    %2190 = vmatprep.mubr.f32.mxu0 0.0
    %2191 = vmatmul.mubr.f32.gmra.mrb[0].mxu0 %v2055
    %v2192 = vpop.f32.mrb[0].mxu0
    %v2193 = vadd.f32 0.0, %v2192
    %v2194 = vpop.f32.mrb[0].mxu0
    %2195 = vmatprep.mubr.f32.mxu0 0.0
    %2196 = vmatmul.mubr.f32.gmra.mrb[0].mxu0 %v2058
    %v2197 = vpop.f32.mrb[0].mxu0
    %v2198 = vadd.f32 0.0, %v2197
    %v2199 = vpop.f32.mrb[0].mxu0
    %2200 = vmatprep.mubr.f32.mxu0 0.0
    %2201 = vmatmul.mubr.f32.gmra.mrb[0].mxu0 %v2061
    %v2202 = vpop.f32.mrb[0].mxu0
    %v2203 = vadd.f32 0.0, %v2202
    %v2204 = vpop.f32.mrb[0].mxu0
    %2205 = vmatprep.mubr.f32.mxu0 0.0
    %2206 = vmatmul.mubr.f32.gmra.mrb[0].mxu0 %v2064
    %v2207 = vpop.f32.mrb[0].mxu0
    %v2208 = vadd.f32 0.0, %v2207
    %v2209 = vpop.f32.mrb[0].mxu0
    %2210 = vdwg.mxu0
    %vm2211 = vcmask 15360
    %v2213 = vsel %vm2211, %v2133, 0
    %v2216 = vsel %vm2211, %v2138, 0
    %v2219 = vsel %vm2211, %v2143, 0
    %v2222 = vsel %vm2211, %v2148, 0
    %v2225 = vsel %vm2211, %v2153, 0
    %v2228 = vsel %vm2211, %v2158, 0
    %v2231 = vsel %vm2211, %v2163, 0
    %v2234 = vsel %vm2211, %v2168, 0
    %v2237 = vsel %vm2211, %v2173, 0
    %v2240 = vsel %vm2211, %v2178, 0
    %v2243 = vsel %vm2211, %v2183, 0
    %v2246 = vsel %vm2211, %v2188, 0
    %v2249 = vsel %vm2211, %v2193, 0
    %v2252 = vsel %vm2211, %v2198, 0
    %v2255 = vsel %vm2211, %v2203, 0
    %v2258 = vsel %vm2211, %v2208, 0
    %vm2260 = vcmask 1041408
    %v2262 = vsel %vm2260, %v1694, 0
    %2264 = vmatprep.subr.mxu0 0.0
    %2265 = vmatpush1.msra.mxu0 %v2262
    %2266 = vmatprep.subr.mxu0 0.0
    %2267 = vmatpush1.msra.mxu0 0.0
    %2268 = vmatprep.subr.mxu0 0.0
    %2269 = vmatpush1.msra.mxu0 0.0
    %2270 = vmatprep.subr.mxu0 0.0
    %2271 = vmatpush1.msra.mxu0 0.0
    %2272 = vmatprep.subr.mxu0 0.0
    %2273 = vmatpush1.msra.mxu0 0.0
    %2274 = vmatprep.subr.mxu0 0.0
    %2275 = vmatpush1.msra.mxu0 0.0
    %2276 = vmatprep.subr.mxu0 0.0
    %2277 = vmatpush1.msra.mxu0 0.0
    %2278 = vmatprep.subr.mxu0 0.0
    %2279 = vmatpush1.msra.mxu0 0.0
    %2280 = vmatprep.subr.mxu0 0.0
    %2281 = vmatpush1.msra.mxu0 0.0
    %2282 = vmatprep.subr.mxu0 0.0
    %2283 = vmatpush1.msra.mxu0 0.0
    %2284 = vmatprep.subr.mxu0 0.0
    %2285 = vmatpush1.msra.mxu0 0.0
    %2286 = vmatprep.subr.mxu0 0.0
    %2287 = vmatpush1.msra.mxu0 0.0
    %2288 = vmatprep.subr.mxu0 0.0
    %2289 = vmatpush1.msra.mxu0 0.0
    %2290 = vmatprep.subr.mxu0 0.0
    %2291 = vmatpush1.msra.mxu0 0.0
    %2292 = vmatprep.subr.mxu0 0.0
    %2293 = vmatpush1.msra.mxu0 0.0
    %2294 = vmatprep.subr.mxu0 0.0
    %2295 = vmatpush1.msra.mxu0 0.0
    %2296 = vmatprep.subr.mxu0 0.0
    %2297 = vmatpush1.msra.mxu0 0.0
    %2298 = vmatprep.subr.mxu0 0.0
    %2299 = vmatpush1.msra.mxu0 0.0
    %2300 = vmatprep.subr.mxu0 0.0
    %2301 = vmatpush1.msra.mxu0 0.0
    %2302 = vmatprep.subr.mxu0 0.0
    %2303 = vmatpush1.msra.mxu0 0.0
    %2304 = vmatprep.subr.mxu0 0.0
    %2305 = vmatpush1.msra.mxu0 0.0
    %2306 = vmatprep.subr.mxu0 0.0
    %2307 = vmatpush1.msra.mxu0 0.0
    %2308 = vmatprep.subr.mxu0 0.0
    %2309 = vmatpush1.msra.mxu0 0.0
    %2310 = vmatprep.subr.mxu0 0.0
    %2311 = vmatpush1.msra.mxu0 0.0
    %2312 = vmatprep.subr.mxu0 0.0
    %2313 = vmatpush1.msra.mxu0 0.0
    %2314 = vmatprep.subr.mxu0 0.0
    %2315 = vmatpush1.msra.mxu0 0.0
    %2316 = vmatprep.subr.mxu0 0.0
    %2317 = vmatpush1.msra.mxu0 0.0
    %2318 = vmatprep.subr.mxu0 0.0
    %2319 = vmatpush1.msra.mxu0 0.0
    %2320 = vmatprep.subr.mxu0 0.0
    %2321 = vmatpush1.msra.mxu0 0.0
    %2322 = vmatprep.subr.mxu0 0.0
    %2323 = vmatpush1.msra.mxu0 0.0
    %2324 = vmatprep.subr.mxu0 0.0
    %2325 = vmatpush1.msra.mxu0 0.0
    %2326 = vmatprep.subr.mxu0 0.0
    %2327 = vmatpush1.msra.mxu0 0.0
    %2328 = vmatprep.mubr.f32.mxu0 0.0
    %2329 = vmatmul.mubr.f32.gmra.mrb[0].mxu0 %v2213
    %v2330 = vpop.f32.mrb[0].mxu0
    %v2331 = vadd.f32 0.0, %v2330
    %v2332 = vpop.f32.mrb[0].mxu0
    %2333 = vmatprep.mubr.f32.mxu0 0.0
    %2334 = vmatmul.mubr.f32.gmra.mrb[0].mxu0 %v2216
    %v2335 = vpop.f32.mrb[0].mxu0
    %v2336 = vadd.f32 0.0, %v2335
    %v2337 = vpop.f32.mrb[0].mxu0
    %2338 = vmatprep.mubr.f32.mxu0 0.0
    %2339 = vmatmul.mubr.f32.gmra.mrb[0].mxu0 %v2219
    %v2340 = vpop.f32.mrb[0].mxu0
    %v2341 = vadd.f32 0.0, %v2340
    %v2342 = vpop.f32.mrb[0].mxu0
    %2343 = vmatprep.mubr.f32.mxu0 0.0
    %2344 = vmatmul.mubr.f32.gmra.mrb[0].mxu0 %v2222
    %v2345 = vpop.f32.mrb[0].mxu0
    %v2346 = vadd.f32 0.0, %v2345
    %v2347 = vpop.f32.mrb[0].mxu0
    %2348 = vmatprep.mubr.f32.mxu0 0.0
    %2349 = vmatmul.mubr.f32.gmra.mrb[0].mxu0 %v2225
    %v2350 = vpop.f32.mrb[0].mxu0
    %v2351 = vadd.f32 0.0, %v2350
    %v2352 = vpop.f32.mrb[0].mxu0
    %2353 = vmatprep.mubr.f32.mxu0 0.0
    %2354 = vmatmul.mubr.f32.gmra.mrb[0].mxu0 %v2228
    %v2355 = vpop.f32.mrb[0].mxu0
    %v2356 = vadd.f32 0.0, %v2355
    %v2357 = vpop.f32.mrb[0].mxu0
    %2358 = vmatprep.mubr.f32.mxu0 0.0
    %2359 = vmatmul.mubr.f32.gmra.mrb[0].mxu0 %v2231
    %v2360 = vpop.f32.mrb[0].mxu0
    %v2361 = vadd.f32 0.0, %v2360
    %v2362 = vpop.f32.mrb[0].mxu0
    %2363 = vmatprep.mubr.f32.mxu0 0.0
    %2364 = vmatmul.mubr.f32.gmra.mrb[0].mxu0 %v2234
    %v2365 = vpop.f32.mrb[0].mxu0
    %v2366 = vadd.f32 0.0, %v2365
    %v2367 = vpop.f32.mrb[0].mxu0
    %2368 = vmatprep.mubr.f32.mxu0 0.0
    %2369 = vmatmul.mubr.f32.gmra.mrb[0].mxu0 %v2237
    %v2370 = vpop.f32.mrb[0].mxu0
    %v2371 = vadd.f32 0.0, %v2370
    %v2372 = vpop.f32.mrb[0].mxu0
    %2373 = vmatprep.mubr.f32.mxu0 0.0
    %2374 = vmatmul.mubr.f32.gmra.mrb[0].mxu0 %v2240
    %v2375 = vpop.f32.mrb[0].mxu0
    %v2376 = vadd.f32 0.0, %v2375
    %v2377 = vpop.f32.mrb[0].mxu0
    %2378 = vmatprep.mubr.f32.mxu0 0.0
    %2379 = vmatmul.mubr.f32.gmra.mrb[0].mxu0 %v2243
    %v2380 = vpop.f32.mrb[0].mxu0
    %v2381 = vadd.f32 0.0, %v2380
    %v2382 = vpop.f32.mrb[0].mxu0
    %2383 = vmatprep.mubr.f32.mxu0 0.0
    %2384 = vmatmul.mubr.f32.gmra.mrb[0].mxu0 %v2246
    %v2385 = vpop.f32.mrb[0].mxu0
    %v2386 = vadd.f32 0.0, %v2385
    %v2387 = vpop.f32.mrb[0].mxu0
    %2388 = vmatprep.mubr.f32.mxu0 0.0
    %2389 = vmatmul.mubr.f32.gmra.mrb[0].mxu0 %v2249
    %v2390 = vpop.f32.mrb[0].mxu0
    %v2391 = vadd.f32 0.0, %v2390
    %v2392 = vpop.f32.mrb[0].mxu0
    %2393 = vmatprep.mubr.f32.mxu0 0.0
    %2394 = vmatmul.mubr.f32.gmra.mrb[0].mxu0 %v2252
    %v2395 = vpop.f32.mrb[0].mxu0
    %v2396 = vadd.f32 0.0, %v2395
    %v2397 = vpop.f32.mrb[0].mxu0
    %2398 = vmatprep.mubr.f32.mxu0 0.0
    %2399 = vmatmul.mubr.f32.gmra.mrb[0].mxu0 %v2255
    %v2400 = vpop.f32.mrb[0].mxu0
    %v2401 = vadd.f32 0.0, %v2400
    %v2402 = vpop.f32.mrb[0].mxu0
    %2403 = vmatprep.mubr.f32.mxu0 0.0
    %2404 = vmatmul.mubr.f32.gmra.mrb[0].mxu0 %v2258
    %v2405 = vpop.f32.mrb[0].mxu0
    %v2406 = vadd.f32 0.0, %v2405
    %v2407 = vpop.f32.mrb[0].mxu0
    %2408 = vdwg.mxu0
    %v2409 = vsub.f32 %v1674, %v2331
    %v2410 = vsub.f32 %v1675, %v2336
    %v2411 = vsub.f32 %v1676, %v2341
    %v2412 = vsub.f32 %v1677, %v2346
    %v2413 = vsub.f32 %v1678, %v2351
    %v2414 = vsub.f32 %v1679, %v2356
    %v2415 = vsub.f32 %v1680, %v2361
    %v2416 = vsub.f32 %v1681, %v2366
    %v2417 = vsub.f32 %v1682, %v2371
    %v2418 = vsub.f32 %v1683, %v2376
    %v2419 = vsub.f32 %v1684, %v2381
    %v2420 = vsub.f32 %v1685, %v2386
    %v2421 = vsub.f32 %v1686, %v2391
    %v2422 = vsub.f32 %v1687, %v2396
    %v2423 = vsub.f32 %v1688, %v2401
    %v2424 = vsub.f32 %v1689, %v2406
    %v2425 = vmul.f32 %v2409, %v2409
    %v2426 = vmul.f32 %v2410, %v2410
    %v2427 = vmul.f32 %v2411, %v2411
    %v2428 = vmul.f32 %v2412, %v2412
    %v2429 = vmul.f32 %v2413, %v2413
    %v2430 = vmul.f32 %v2414, %v2414
    %v2431 = vmul.f32 %v2415, %v2415
    %v2432 = vmul.f32 %v2416, %v2416
    %v2433 = vmul.f32 %v2417, %v2417
    %v2434 = vmul.f32 %v2418, %v2418
    %v2435 = vmul.f32 %v2419, %v2419
    %v2436 = vmul.f32 %v2420, %v2420
    %v2437 = vmul.f32 %v2421, %v2421
    %v2438 = vmul.f32 %v2422, %v2422
    %v2439 = vmul.f32 %v2423, %v2423
    %v2440 = vmul.f32 %v2424, %v2424
    %v2442 = vsel %vm268, %v2425, 0
    %v2445 = vsel %vm268, %v2426, 0
    %v2448 = vsel %vm268, %v2427, 0
    %v2451 = vsel %vm268, %v2428, 0
    %v2454 = vsel %vm268, %v2429, 0
    %v2457 = vsel %vm268, %v2430, 0
    %v2460 = vsel %vm268, %v2431, 0
    %v2463 = vsel %vm268, %v2432, 0
    %v2466 = vsel %vm268, %v2433, 0
    %v2469 = vsel %vm268, %v2434, 0
    %v2472 = vsel %vm268, %v2435, 0
    %v2475 = vsel %vm268, %v2436, 0
    %v2478 = vsel %vm268, %v2437, 0
    %v2481 = vsel %vm268, %v2438, 0
    %v2484 = vsel %vm268, %v2439, 0
    %v2487 = vsel %vm268, %v2440, 0
    %2489 = vmatprep.subr.mxu0 0.0
    %2490 = vmatpush1.msra.mxu0 %v1690
    %2491 = vmatprep.subr.mxu0 0.0
    %2492 = vmatpush1.msra.mxu0 %v1691
    %2493 = vmatprep.subr.mxu0 0.0
    %2494 = vmatpush1.msra.mxu0 %v1692
    %2495 = vmatprep.subr.mxu0 0.0
    %2496 = vmatpush1.msra.mxu0 %v1693
    %2497 = vmatprep.subr.mxu0 0.0
    %2498 = vmatpush1.msra.mxu0 0.0
    %2499 = vmatprep.subr.mxu0 0.0
    %2500 = vmatpush1.msra.mxu0 0.0
    %2501 = vmatprep.subr.mxu0 0.0
    %2502 = vmatpush1.msra.mxu0 0.0
    %2503 = vmatprep.subr.mxu0 0.0
    %2504 = vmatpush1.msra.mxu0 0.0
    %2505 = vmatprep.subr.mxu0 0.0
    %2506 = vmatpush1.msra.mxu0 0.0
    %2507 = vmatprep.subr.mxu0 0.0
    %2508 = vmatpush1.msra.mxu0 0.0
    %2509 = vmatprep.subr.mxu0 0.0
    %2510 = vmatpush1.msra.mxu0 0.0
    %2511 = vmatprep.subr.mxu0 0.0
    %2512 = vmatpush1.msra.mxu0 0.0
    %2513 = vmatprep.subr.mxu0 0.0
    %2514 = vmatpush1.msra.mxu0 0.0
    %2515 = vmatprep.subr.mxu0 0.0
    %2516 = vmatpush1.msra.mxu0 0.0
    %2517 = vmatprep.subr.mxu0 0.0
    %2518 = vmatpush1.msra.mxu0 0.0
    %2519 = vmatprep.subr.mxu0 0.0
    %2520 = vmatpush1.msra.mxu0 0.0
    %2521 = vmatprep.subr.mxu0 0.0
    %2522 = vmatpush1.msra.mxu0 0.0
    %2523 = vmatprep.subr.mxu0 0.0
    %2524 = vmatpush1.msra.mxu0 0.0
    %2525 = vmatprep.subr.mxu0 0.0
    %2526 = vmatpush1.msra.mxu0 0.0
    %2527 = vmatprep.subr.mxu0 0.0
    %2528 = vmatpush1.msra.mxu0 0.0
    %2529 = vmatprep.subr.mxu0 0.0
    %2530 = vmatpush1.msra.mxu0 0.0
    %2531 = vmatprep.subr.mxu0 0.0
    %2532 = vmatpush1.msra.mxu0 0.0
    %2533 = vmatprep.subr.mxu0 0.0
    %2534 = vmatpush1.msra.mxu0 0.0
    %2535 = vmatprep.subr.mxu0 0.0
    %2536 = vmatpush1.msra.mxu0 0.0
    %2537 = vmatprep.subr.mxu0 0.0
    %2538 = vmatpush1.msra.mxu0 0.0
    %2539 = vmatprep.subr.mxu0 0.0
    %2540 = vmatpush1.msra.mxu0 0.0
    %2541 = vmatprep.subr.mxu0 0.0
    %2542 = vmatpush1.msra.mxu0 0.0
    %2543 = vmatprep.subr.mxu0 0.0
    %2544 = vmatpush1.msra.mxu0 0.0
    %2545 = vmatprep.subr.mxu0 0.0
    %2546 = vmatpush1.msra.mxu0 0.0
    %2547 = vmatprep.subr.mxu0 0.0
    %2548 = vmatpush1.msra.mxu0 0.0
    %2549 = vmatprep.subr.mxu0 0.0
    %2550 = vmatpush1.msra.mxu0 0.0
    %2551 = vmatprep.subr.mxu0 0.0
    %2552 = vmatpush1.msra.mxu0 0.0
    %2553 = vmatprep.mubr.f32.mxu0 0.0
    %2554 = vmatmul.mubr.f32.gmra.mrb[0].mxu0 %v2442
    %v2555 = vpop.f32.mrb[0].mxu0
    %v2556 = vadd.f32 0.0, %v2555
    %v2557 = vpop.f32.mrb[0].mxu0
    %2558 = vmatprep.mubr.f32.mxu0 0.0
    %2559 = vmatmul.mubr.f32.gmra.mrb[0].mxu0 %v2445
    %v2560 = vpop.f32.mrb[0].mxu0
    %v2561 = vadd.f32 0.0, %v2560
    %v2562 = vpop.f32.mrb[0].mxu0
    %2563 = vmatprep.mubr.f32.mxu0 0.0
    %2564 = vmatmul.mubr.f32.gmra.mrb[0].mxu0 %v2448
    %v2565 = vpop.f32.mrb[0].mxu0
    %v2566 = vadd.f32 0.0, %v2565
    %v2567 = vpop.f32.mrb[0].mxu0
    %2568 = vmatprep.mubr.f32.mxu0 0.0
    %2569 = vmatmul.mubr.f32.gmra.mrb[0].mxu0 %v2451
    %v2570 = vpop.f32.mrb[0].mxu0
    %v2571 = vadd.f32 0.0, %v2570
    %v2572 = vpop.f32.mrb[0].mxu0
    %2573 = vmatprep.mubr.f32.mxu0 0.0
    %2574 = vmatmul.mubr.f32.gmra.mrb[0].mxu0 %v2454
    %v2575 = vpop.f32.mrb[0].mxu0
    %v2576 = vadd.f32 0.0, %v2575
    %v2577 = vpop.f32.mrb[0].mxu0
    %2578 = vmatprep.mubr.f32.mxu0 0.0
    %2579 = vmatmul.mubr.f32.gmra.mrb[0].mxu0 %v2457
    %v2580 = vpop.f32.mrb[0].mxu0
    %v2581 = vadd.f32 0.0, %v2580
    %v2582 = vpop.f32.mrb[0].mxu0
    %2583 = vmatprep.mubr.f32.mxu0 0.0
    %2584 = vmatmul.mubr.f32.gmra.mrb[0].mxu0 %v2460
    %v2585 = vpop.f32.mrb[0].mxu0
    %v2586 = vadd.f32 0.0, %v2585
    %v2587 = vpop.f32.mrb[0].mxu0
    %2588 = vmatprep.mubr.f32.mxu0 0.0
    %2589 = vmatmul.mubr.f32.gmra.mrb[0].mxu0 %v2463
    %v2590 = vpop.f32.mrb[0].mxu0
    %v2591 = vadd.f32 0.0, %v2590
    %v2592 = vpop.f32.mrb[0].mxu0
    %2593 = vmatprep.mubr.f32.mxu0 0.0
    %2594 = vmatmul.mubr.f32.gmra.mrb[0].mxu0 %v2466
    %v2595 = vpop.f32.mrb[0].mxu0
    %v2596 = vadd.f32 0.0, %v2595
    %v2597 = vpop.f32.mrb[0].mxu0
    %2598 = vmatprep.mubr.f32.mxu0 0.0
    %2599 = vmatmul.mubr.f32.gmra.mrb[0].mxu0 %v2469
    %v2600 = vpop.f32.mrb[0].mxu0
    %v2601 = vadd.f32 0.0, %v2600
    %v2602 = vpop.f32.mrb[0].mxu0
    %2603 = vmatprep.mubr.f32.mxu0 0.0
    %2604 = vmatmul.mubr.f32.gmra.mrb[0].mxu0 %v2472
    %v2605 = vpop.f32.mrb[0].mxu0
    %v2606 = vadd.f32 0.0, %v2605
    %v2607 = vpop.f32.mrb[0].mxu0
    %2608 = vmatprep.mubr.f32.mxu0 0.0
    %2609 = vmatmul.mubr.f32.gmra.mrb[0].mxu0 %v2475
    %v2610 = vpop.f32.mrb[0].mxu0
    %v2611 = vadd.f32 0.0, %v2610
    %v2612 = vpop.f32.mrb[0].mxu0
    %2613 = vmatprep.mubr.f32.mxu0 0.0
    %2614 = vmatmul.mubr.f32.gmra.mrb[0].mxu0 %v2478
    %v2615 = vpop.f32.mrb[0].mxu0
    %v2616 = vadd.f32 0.0, %v2615
    %v2617 = vpop.f32.mrb[0].mxu0
    %2618 = vmatprep.mubr.f32.mxu0 0.0
    %2619 = vmatmul.mubr.f32.gmra.mrb[0].mxu0 %v2481
    %v2620 = vpop.f32.mrb[0].mxu0
    %v2621 = vadd.f32 0.0, %v2620
    %v2622 = vpop.f32.mrb[0].mxu0
    %2623 = vmatprep.mubr.f32.mxu0 0.0
    %2624 = vmatmul.mubr.f32.gmra.mrb[0].mxu0 %v2484
    %v2625 = vpop.f32.mrb[0].mxu0
    %v2626 = vadd.f32 0.0, %v2625
    %v2627 = vpop.f32.mrb[0].mxu0
    %2628 = vmatprep.mubr.f32.mxu0 0.0
    %2629 = vmatmul.mubr.f32.gmra.mrb[0].mxu0 %v2487
    %v2630 = vpop.f32.mrb[0].mxu0
    %v2631 = vadd.f32 0.0, %v2630
    %v2632 = vpop.f32.mrb[0].mxu0
    %2633 = vdwg.mxu0
    %2634 = vmatprep.subr.mxu0 0.0
    %2635 = vmatpush1.msra.mxu0 %v2556
    %2636 = vmatprep.subr.mxu0 0.0
    %2637 = vmatpush1.msra.mxu0 %v2561
    %2638 = vmatprep.subr.mxu0 0.0
    %2639 = vmatpush1.msra.mxu0 %v2566
    %2640 = vmatprep.subr.mxu0 0.0
    %2641 = vmatpush1.msra.mxu0 %v2571
    %2642 = vmatprep.subr.mxu0 0.0
    %2643 = vmatpush1.msra.mxu0 %v2576
    %2644 = vmatprep.subr.mxu0 0.0
    %2645 = vmatpush1.msra.mxu0 %v2581
    %2646 = vmatprep.subr.mxu0 0.0
    %2647 = vmatpush1.msra.mxu0 %v2586
    %2648 = vmatprep.subr.mxu0 0.0
    %2649 = vmatpush1.msra.mxu0 %v2591
    %2650 = vmatprep.subr.mxu0 0.0
    %2651 = vmatpush1.msra.mxu0 %v2596
    %2652 = vmatprep.subr.mxu0 0.0
    %2653 = vmatpush1.msra.mxu0 %v2601
    %2654 = vmatprep.subr.mxu0 0.0
    %2655 = vmatpush1.msra.mxu0 %v2606
    %2656 = vmatprep.subr.mxu0 0.0
    %2657 = vmatpush1.msra.mxu0 %v2611
    %2658 = vmatprep.subr.mxu0 0.0
    %2659 = vmatpush1.msra.mxu0 %v2616
    %2660 = vmatprep.subr.mxu0 0.0
    %2661 = vmatpush1.msra.mxu0 %v2621
    %2662 = vmatprep.subr.mxu0 0.0
    %2663 = vmatpush1.msra.mxu0 %v2626
    %2664 = vmatprep.subr.mxu0 0.0
    %2665 = vmatpush1.msra.mxu0 %v2631
    %2666 = vmatprep.subr.mxu0 0.0
    %2667 = vmatpush1.msra.mxu0 0.0
    %2668 = vmatprep.subr.mxu0 0.0
    %2669 = vmatpush1.msra.mxu0 0.0
    %2670 = vmatprep.subr.mxu0 0.0
    %2671 = vmatpush1.msra.mxu0 0.0
    %2672 = vmatprep.subr.mxu0 0.0
    %2673 = vmatpush1.msra.mxu0 0.0
    %2674 = vmatprep.subr.mxu0 0.0
    %2675 = vmatpush1.msra.mxu0 0.0
    %2676 = vmatprep.subr.mxu0 0.0
    %2677 = vmatpush1.msra.mxu0 0.0
    %2678 = vmatprep.subr.mxu0 0.0
    %2679 = vmatpush1.msra.mxu0 0.0
    %2680 = vmatprep.subr.mxu0 0.0
    %2681 = vmatpush1.msra.mxu0 0.0
    %2682 = vmatprep.subr.mxu0 0.0
    %2683 = vmatpush1.msra.mxu0 0.0
    %2684 = vmatprep.subr.mxu0 0.0
    %2685 = vmatpush1.msra.mxu0 0.0
    %2686 = vmatprep.subr.mxu0 0.0
    %2687 = vmatpush1.msra.mxu0 0.0
    %2688 = vmatprep.subr.mxu0 0.0
    %2689 = vmatpush1.msra.mxu0 0.0
    %2690 = vmatprep.subr.mxu0 0.0
    %2691 = vmatpush1.msra.mxu0 0.0
    %2692 = vmatprep.subr.mxu0 0.0
    %2693 = vmatpush1.msra.mxu0 0.0
    %2694 = vmatprep.subr.mxu0 0.0
    %2695 = vmatpush1.msra.mxu0 0.0
    %2696 = vmatprep.subr.mxu0 0.0
    %2697 = vmatpush1.msra.mxu0 0.0
    %2698 = vmatprep.mubr.f32.mxu0 0.0
    %2699 = vmatmul.mubr.f32.gmra.mrb[0].mxu0 %v1695
    %v2700 = vpop.f32.mrb[0].mxu0
    %v2701 = vadd.f32 0.0, %v2700
    %v2702 = vpop.f32.mrb[0].mxu0
    %2703 = vmatprep.mubr.f32.mxu0 0.0
    %2704 = vmatmul.mubr.f32.gmra.mrb[0].mxu0 %v1696
    %v2705 = vpop.f32.mrb[0].mxu0
    %v2706 = vadd.f32 0.0, %v2705
    %v2707 = vpop.f32.mrb[0].mxu0
    %2708 = vmatprep.mubr.f32.mxu0 0.0
    %2709 = vmatmul.mubr.f32.gmra.mrb[0].mxu0 %v1697
    %v2710 = vpop.f32.mrb[0].mxu0
    %v2711 = vadd.f32 0.0, %v2710
    %v2712 = vpop.f32.mrb[0].mxu0
    %2713 = vmatprep.mubr.f32.mxu0 0.0
    %2714 = vmatmul.mubr.f32.gmra.mrb[0].mxu0 %v1698
    %v2715 = vpop.f32.mrb[0].mxu0
    %v2716 = vadd.f32 0.0, %v2715
    %v2717 = vpop.f32.mrb[0].mxu0
    %2718 = vmatprep.mubr.f32.mxu0 0.0
    %2719 = vmatmul.mubr.f32.gmra.mrb[0].mxu0 %v1699
    %v2720 = vpop.f32.mrb[0].mxu0
    %v2721 = vadd.f32 0.0, %v2720
    %v2722 = vpop.f32.mrb[0].mxu0
    %2723 = vmatprep.mubr.f32.mxu0 0.0
    %2724 = vmatmul.mubr.f32.gmra.mrb[0].mxu0 %v1700
    %v2725 = vpop.f32.mrb[0].mxu0
    %v2726 = vadd.f32 0.0, %v2725
    %v2727 = vpop.f32.mrb[0].mxu0
    %2728 = vmatprep.mubr.f32.mxu0 0.0
    %2729 = vmatmul.mubr.f32.gmra.mrb[0].mxu0 %v1701
    %v2730 = vpop.f32.mrb[0].mxu0
    %v2731 = vadd.f32 0.0, %v2730
    %v2732 = vpop.f32.mrb[0].mxu0
    %2733 = vmatprep.mubr.f32.mxu0 0.0
    %2734 = vmatmul.mubr.f32.gmra.mrb[0].mxu0 %v1702
    %v2735 = vpop.f32.mrb[0].mxu0
    %v2736 = vadd.f32 0.0, %v2735
    %v2737 = vpop.f32.mrb[0].mxu0
    %2738 = vdwg.mxu0
    %2739 = vmatprep.subr.mxu0 0.0
    %2740 = vmatpush1.msra.mxu0 %v2701
    %2741 = vmatprep.subr.mxu0 0.0
    %2742 = vmatpush1.msra.mxu0 %v2706
    %2743 = vmatprep.subr.mxu0 0.0
    %2744 = vmatpush1.msra.mxu0 %v2711
    %2745 = vmatprep.subr.mxu0 0.0
    %2746 = vmatpush1.msra.mxu0 %v2716
    %2747 = vmatprep.subr.mxu0 0.0
    %2748 = vmatpush1.msra.mxu0 %v2721
    %2749 = vmatprep.subr.mxu0 0.0
    %2750 = vmatpush1.msra.mxu0 %v2726
    %2751 = vmatprep.subr.mxu0 0.0
    %2752 = vmatpush1.msra.mxu0 %v2731
    %2753 = vmatprep.subr.mxu0 0.0
    %2754 = vmatpush1.msra.mxu0 %v2736
    %2755 = vmatprep.subr.mxu0 0.0
    %2756 = vmatpush1.msra.mxu0 0.0
    %2757 = vmatprep.subr.mxu0 0.0
    %2758 = vmatpush1.msra.mxu0 0.0
    %2759 = vmatprep.subr.mxu0 0.0
    %2760 = vmatpush1.msra.mxu0 0.0
    %2761 = vmatprep.subr.mxu0 0.0
    %2762 = vmatpush1.msra.mxu0 0.0
    %2763 = vmatprep.subr.mxu0 0.0
    %2764 = vmatpush1.msra.mxu0 0.0
    %2765 = vmatprep.subr.mxu0 0.0
    %2766 = vmatpush1.msra.mxu0 0.0
    %2767 = vmatprep.subr.mxu0 0.0
    %2768 = vmatpush1.msra.mxu0 0.0
    %2769 = vmatprep.subr.mxu0 0.0
    %2770 = vmatpush1.msra.mxu0 0.0
    %2771 = vmatprep.subr.mxu0 0.0
    %2772 = vmatpush1.msra.mxu0 0.0
    %2773 = vmatprep.subr.mxu0 0.0
    %2774 = vmatpush1.msra.mxu0 0.0
    %2775 = vmatprep.subr.mxu0 0.0
    %2776 = vmatpush1.msra.mxu0 0.0
    %2777 = vmatprep.subr.mxu0 0.0
    %2778 = vmatpush1.msra.mxu0 0.0
    %2779 = vmatprep.subr.mxu0 0.0
    %2780 = vmatpush1.msra.mxu0 0.0
    %2781 = vmatprep.subr.mxu0 0.0
    %2782 = vmatpush1.msra.mxu0 0.0
    %2783 = vmatprep.subr.mxu0 0.0
    %2784 = vmatpush1.msra.mxu0 0.0
    %2785 = vmatprep.subr.mxu0 0.0
    %2786 = vmatpush1.msra.mxu0 0.0
    %2787 = vmatprep.subr.mxu0 0.0
    %2788 = vmatpush1.msra.mxu0 0.0
    %2789 = vmatprep.subr.mxu0 0.0
    %2790 = vmatpush1.msra.mxu0 0.0
    %2791 = vmatprep.subr.mxu0 0.0
    %2792 = vmatpush1.msra.mxu0 0.0
    %2793 = vmatprep.subr.mxu0 0.0
    %2794 = vmatpush1.msra.mxu0 0.0
    %2795 = vmatprep.subr.mxu0 0.0
    %2796 = vmatpush1.msra.mxu0 0.0
    %2797 = vmatprep.subr.mxu0 0.0
    %2798 = vmatpush1.msra.mxu0 0.0
    %2799 = vmatprep.subr.mxu0 0.0
    %2800 = vmatpush1.msra.mxu0 0.0
    %2801 = vmatprep.subr.mxu0 0.0
    %2802 = vmatpush1.msra.mxu0 0.0
    %2803 = vmatprep.mubr.f32.mxu0 0.0
    %2804 = vmatmul.mubr.f32.gmra.mrb[0].mxu0 %v2019
    %v2805 = vpop.f32.mrb[0].mxu0
    %v2806 = vadd.f32 0.0, %v2805
    %v2807 = vpop.f32.mrb[0].mxu0
    %2808 = vmatprep.mubr.f32.mxu0 0.0
    %2809 = vmatmul.mubr.f32.gmra.mrb[0].mxu0 %v2022
    %v2810 = vpop.f32.mrb[0].mxu0
    %v2811 = vadd.f32 0.0, %v2810
    %v2812 = vpop.f32.mrb[0].mxu0
    %2813 = vmatprep.mubr.f32.mxu0 0.0
    %2814 = vmatmul.mubr.f32.gmra.mrb[0].mxu0 %v2025
    %v2815 = vpop.f32.mrb[0].mxu0
    %v2816 = vadd.f32 0.0, %v2815
    %v2817 = vpop.f32.mrb[0].mxu0
    %2818 = vmatprep.mubr.f32.mxu0 0.0
    %2819 = vmatmul.mubr.f32.gmra.mrb[0].mxu0 %v2028
    %v2820 = vpop.f32.mrb[0].mxu0
    %v2821 = vadd.f32 0.0, %v2820
    %v2822 = vpop.f32.mrb[0].mxu0
    %2823 = vmatprep.mubr.f32.mxu0 0.0
    %2824 = vmatmul.mubr.f32.gmra.mrb[0].mxu0 %v2031
    %v2825 = vpop.f32.mrb[0].mxu0
    %v2826 = vadd.f32 0.0, %v2825
    %v2827 = vpop.f32.mrb[0].mxu0
    %2828 = vmatprep.mubr.f32.mxu0 0.0
    %2829 = vmatmul.mubr.f32.gmra.mrb[0].mxu0 %v2034
    %v2830 = vpop.f32.mrb[0].mxu0
    %v2831 = vadd.f32 0.0, %v2830
    %v2832 = vpop.f32.mrb[0].mxu0
    %2833 = vmatprep.mubr.f32.mxu0 0.0
    %2834 = vmatmul.mubr.f32.gmra.mrb[0].mxu0 %v2037
    %v2835 = vpop.f32.mrb[0].mxu0
    %v2836 = vadd.f32 0.0, %v2835
    %v2837 = vpop.f32.mrb[0].mxu0
    %2838 = vmatprep.mubr.f32.mxu0 0.0
    %2839 = vmatmul.mubr.f32.gmra.mrb[0].mxu0 %v2040
    %v2840 = vpop.f32.mrb[0].mxu0
    %v2841 = vadd.f32 0.0, %v2840
    %v2842 = vpop.f32.mrb[0].mxu0
    %2843 = vmatprep.mubr.f32.mxu0 0.0
    %2844 = vmatmul.mubr.f32.gmra.mrb[0].mxu0 %v2043
    %v2845 = vpop.f32.mrb[0].mxu0
    %v2846 = vadd.f32 0.0, %v2845
    %v2847 = vpop.f32.mrb[0].mxu0
    %2848 = vmatprep.mubr.f32.mxu0 0.0
    %2849 = vmatmul.mubr.f32.gmra.mrb[0].mxu0 %v2046
    %v2850 = vpop.f32.mrb[0].mxu0
    %v2851 = vadd.f32 0.0, %v2850
    %v2852 = vpop.f32.mrb[0].mxu0
    %2853 = vmatprep.mubr.f32.mxu0 0.0
    %2854 = vmatmul.mubr.f32.gmra.mrb[0].mxu0 %v2049
    %v2855 = vpop.f32.mrb[0].mxu0
    %v2856 = vadd.f32 0.0, %v2855
    %v2857 = vpop.f32.mrb[0].mxu0
    %2858 = vmatprep.mubr.f32.mxu0 0.0
    %2859 = vmatmul.mubr.f32.gmra.mrb[0].mxu0 %v2052
    %v2860 = vpop.f32.mrb[0].mxu0
    %v2861 = vadd.f32 0.0, %v2860
    %v2862 = vpop.f32.mrb[0].mxu0
    %2863 = vmatprep.mubr.f32.mxu0 0.0
    %2864 = vmatmul.mubr.f32.gmra.mrb[0].mxu0 %v2055
    %v2865 = vpop.f32.mrb[0].mxu0
    %v2866 = vadd.f32 0.0, %v2865
    %v2867 = vpop.f32.mrb[0].mxu0
    %2868 = vmatprep.mubr.f32.mxu0 0.0
    %2869 = vmatmul.mubr.f32.gmra.mrb[0].mxu0 %v2058
    %v2870 = vpop.f32.mrb[0].mxu0
    %v2871 = vadd.f32 0.0, %v2870
    %v2872 = vpop.f32.mrb[0].mxu0
    %2873 = vmatprep.mubr.f32.mxu0 0.0
    %2874 = vmatmul.mubr.f32.gmra.mrb[0].mxu0 %v2061
    %v2875 = vpop.f32.mrb[0].mxu0
    %v2876 = vadd.f32 0.0, %v2875
    %v2877 = vpop.f32.mrb[0].mxu0
    %2878 = vmatprep.mubr.f32.mxu0 0.0
    %2879 = vmatmul.mubr.f32.gmra.mrb[0].mxu0 %v2064
    %v2880 = vpop.f32.mrb[0].mxu0
    %v2881 = vadd.f32 0.0, %v2880
    %v2882 = vpop.f32.mrb[0].mxu0
    %2883 = vdwg.mxu0
    %v2885 = vsel %vm2211, %v2806, 0
    %v2888 = vsel %vm2211, %v2811, 0
    %v2891 = vsel %vm2211, %v2816, 0
    %v2894 = vsel %vm2211, %v2821, 0
    %v2897 = vsel %vm2211, %v2826, 0
    %v2900 = vsel %vm2211, %v2831, 0
    %v2903 = vsel %vm2211, %v2836, 0
    %v2906 = vsel %vm2211, %v2841, 0
    %v2909 = vsel %vm2211, %v2846, 0
    %v2912 = vsel %vm2211, %v2851, 0
    %v2915 = vsel %vm2211, %v2856, 0
    %v2918 = vsel %vm2211, %v2861, 0
    %v2921 = vsel %vm2211, %v2866, 0
    %v2924 = vsel %vm2211, %v2871, 0
    %v2927 = vsel %vm2211, %v2876, 0
    %v2930 = vsel %vm2211, %v2881, 0
    %2932 = vmatprep.subr.mxu0 0.0
    %2933 = vmatpush1.msra.mxu0 %v2262
    %2934 = vmatprep.subr.mxu0 0.0
    %2935 = vmatpush1.msra.mxu0 0.0
    %2936 = vmatprep.subr.mxu0 0.0
    %2937 = vmatpush1.msra.mxu0 0.0
    %2938 = vmatprep.subr.mxu0 0.0
    %2939 = vmatpush1.msra.mxu0 0.0
    %2940 = vmatprep.subr.mxu0 0.0
    %2941 = vmatpush1.msra.mxu0 0.0
    %2942 = vmatprep.subr.mxu0 0.0
    %2943 = vmatpush1.msra.mxu0 0.0
    %2944 = vmatprep.subr.mxu0 0.0
    %2945 = vmatpush1.msra.mxu0 0.0
    %2946 = vmatprep.subr.mxu0 0.0
    %2947 = vmatpush1.msra.mxu0 0.0
    %2948 = vmatprep.subr.mxu0 0.0
    %2949 = vmatpush1.msra.mxu0 0.0
    %2950 = vmatprep.subr.mxu0 0.0
    %2951 = vmatpush1.msra.mxu0 0.0
    %2952 = vmatprep.subr.mxu0 0.0
    %2953 = vmatpush1.msra.mxu0 0.0
    %2954 = vmatprep.subr.mxu0 0.0
    %2955 = vmatpush1.msra.mxu0 0.0
    %2956 = vmatprep.subr.mxu0 0.0
    %2957 = vmatpush1.msra.mxu0 0.0
    %2958 = vmatprep.subr.mxu0 0.0
    %2959 = vmatpush1.msra.mxu0 0.0
    %2960 = vmatprep.subr.mxu0 0.0
    %2961 = vmatpush1.msra.mxu0 0.0
    %2962 = vmatprep.subr.mxu0 0.0
    %2963 = vmatpush1.msra.mxu0 0.0
    %2964 = vmatprep.subr.mxu0 0.0
    %2965 = vmatpush1.msra.mxu0 0.0
    %2966 = vmatprep.subr.mxu0 0.0
    %2967 = vmatpush1.msra.mxu0 0.0
    %2968 = vmatprep.subr.mxu0 0.0
    %2969 = vmatpush1.msra.mxu0 0.0
    %2970 = vmatprep.subr.mxu0 0.0
    %2971 = vmatpush1.msra.mxu0 0.0
    %2972 = vmatprep.subr.mxu0 0.0
    %2973 = vmatpush1.msra.mxu0 0.0
    %2974 = vmatprep.subr.mxu0 0.0
    %2975 = vmatpush1.msra.mxu0 0.0
    %2976 = vmatprep.subr.mxu0 0.0
    %2977 = vmatpush1.msra.mxu0 0.0
    %2978 = vmatprep.subr.mxu0 0.0
    %2979 = vmatpush1.msra.mxu0 0.0
    %2980 = vmatprep.subr.mxu0 0.0
    %2981 = vmatpush1.msra.mxu0 0.0
    %2982 = vmatprep.subr.mxu0 0.0
    %2983 = vmatpush1.msra.mxu0 0.0
    %2984 = vmatprep.subr.mxu0 0.0
    %2985 = vmatpush1.msra.mxu0 0.0
    %2986 = vmatprep.subr.mxu0 0.0
    %2987 = vmatpush1.msra.mxu0 0.0
    %2988 = vmatprep.subr.mxu0 0.0
    %2989 = vmatpush1.msra.mxu0 0.0
    %2990 = vmatprep.subr.mxu0 0.0
    %2991 = vmatpush1.msra.mxu0 0.0
    %2992 = vmatprep.subr.mxu0 0.0
    %2993 = vmatpush1.msra.mxu0 0.0
    %2994 = vmatprep.subr.mxu0 0.0
    %2995 = vmatpush1.msra.mxu0 0.0
    %2996 = vmatprep.mubr.f32.mxu0 0.0
    %2997 = vmatmul.mubr.f32.gmra.mrb[0].mxu0 %v2885
    %v2998 = vpop.f32.mrb[0].mxu0
    %v2999 = vadd.f32 1e-05, %v2998
    %v3000 = vpop.f32.mrb[0].mxu0
    %3001 = vmatprep.mubr.f32.mxu0 0.0
    %3002 = vmatmul.mubr.f32.gmra.mrb[0].mxu0 %v2888
    %v3003 = vpop.f32.mrb[0].mxu0
    %v3004 = vadd.f32 1e-05, %v3003
    %v3005 = vpop.f32.mrb[0].mxu0
    %3006 = vmatprep.mubr.f32.mxu0 0.0
    %3007 = vmatmul.mubr.f32.gmra.mrb[0].mxu0 %v2891
    %v3008 = vpop.f32.mrb[0].mxu0
    %v3009 = vadd.f32 1e-05, %v3008
    %v3010 = vpop.f32.mrb[0].mxu0
    %3011 = vmatprep.mubr.f32.mxu0 0.0
    %3012 = vmatmul.mubr.f32.gmra.mrb[0].mxu0 %v2894
    %v3013 = vpop.f32.mrb[0].mxu0
    %v3014 = vadd.f32 1e-05, %v3013
    %v3015 = vpop.f32.mrb[0].mxu0
    %3016 = vmatprep.mubr.f32.mxu0 0.0
    %3017 = vmatmul.mubr.f32.gmra.mrb[0].mxu0 %v2897
    %v3018 = vpop.f32.mrb[0].mxu0
    %v3019 = vadd.f32 1e-05, %v3018
    %v3020 = vpop.f32.mrb[0].mxu0
    %3021 = vmatprep.mubr.f32.mxu0 0.0
    %3022 = vmatmul.mubr.f32.gmra.mrb[0].mxu0 %v2900
    %v3023 = vpop.f32.mrb[0].mxu0
    %v3024 = vadd.f32 1e-05, %v3023
    %v3025 = vpop.f32.mrb[0].mxu0
    %3026 = vmatprep.mubr.f32.mxu0 0.0
    %3027 = vmatmul.mubr.f32.gmra.mrb[0].mxu0 %v2903
    %v3028 = vpop.f32.mrb[0].mxu0
    %v3029 = vadd.f32 1e-05, %v3028
    %v3030 = vpop.f32.mrb[0].mxu0
    %3031 = vmatprep.mubr.f32.mxu0 0.0
    %3032 = vmatmul.mubr.f32.gmra.mrb[0].mxu0 %v2906
    %v3033 = vpop.f32.mrb[0].mxu0
    %v3034 = vadd.f32 1e-05, %v3033
    %v3035 = vpop.f32.mrb[0].mxu0
    %3036 = vmatprep.mubr.f32.mxu0 0.0
    %3037 = vmatmul.mubr.f32.gmra.mrb[0].mxu0 %v2909
    %v3038 = vpop.f32.mrb[0].mxu0
    %v3039 = vadd.f32 1e-05, %v3038
    %v3040 = vpop.f32.mrb[0].mxu0
    %3041 = vmatprep.mubr.f32.mxu0 0.0
    %3042 = vmatmul.mubr.f32.gmra.mrb[0].mxu0 %v2912
    %v3043 = vpop.f32.mrb[0].mxu0
    %v3044 = vadd.f32 1e-05, %v3043
    %v3045 = vpop.f32.mrb[0].mxu0
    %3046 = vmatprep.mubr.f32.mxu0 0.0
    %3047 = vmatmul.mubr.f32.gmra.mrb[0].mxu0 %v2915
    %v3048 = vpop.f32.mrb[0].mxu0
    %v3049 = vadd.f32 1e-05, %v3048
    %v3050 = vpop.f32.mrb[0].mxu0
    %3051 = vmatprep.mubr.f32.mxu0 0.0
    %3052 = vmatmul.mubr.f32.gmra.mrb[0].mxu0 %v2918
    %v3053 = vpop.f32.mrb[0].mxu0
    %v3054 = vadd.f32 1e-05, %v3053
    %v3055 = vpop.f32.mrb[0].mxu0
    %3056 = vmatprep.mubr.f32.mxu0 0.0
    %3057 = vmatmul.mubr.f32.gmra.mrb[0].mxu0 %v2921
    %v3058 = vpop.f32.mrb[0].mxu0
    %v3059 = vadd.f32 1e-05, %v3058
    %v3060 = vpop.f32.mrb[0].mxu0
    %3061 = vmatprep.mubr.f32.mxu0 0.0
    %3062 = vmatmul.mubr.f32.gmra.mrb[0].mxu0 %v2924
    %v3063 = vpop.f32.mrb[0].mxu0
    %v3064 = vadd.f32 1e-05, %v3063
    %v3065 = vpop.f32.mrb[0].mxu0
    %3066 = vmatprep.mubr.f32.mxu0 0.0
    %3067 = vmatmul.mubr.f32.gmra.mrb[0].mxu0 %v2927
    %v3068 = vpop.f32.mrb[0].mxu0
    %v3069 = vadd.f32 1e-05, %v3068
    %v3070 = vpop.f32.mrb[0].mxu0
    %3071 = vmatprep.mubr.f32.mxu0 0.0
    %3072 = vmatmul.mubr.f32.gmra.mrb[0].mxu0 %v2930
    %v3073 = vpop.f32.mrb[0].mxu0
    %v3074 = vadd.f32 1e-05, %v3073
    %v3075 = vpop.f32.mrb[0].mxu0
    %3076 = vdwg.mxu0
    %v3077 = vrsqrt.pop %v2999
    %v3078 = vrsqrt.pop %v3004
    %v3079 = vrsqrt.pop %v3009
    %v3080 = vrsqrt.pop %v3014
    %v3081 = vrsqrt.pop %v3019
    %v3082 = vrsqrt.pop %v3024
    %v3083 = vrsqrt.pop %v3029
    %v3084 = vrsqrt.pop %v3034
    %v3085 = vrsqrt.pop %v3039
    %v3086 = vrsqrt.pop %v3044
    %v3087 = vrsqrt.pop %v3049
    %v3088 = vrsqrt.pop %v3054
    %v3089 = vrsqrt.pop %v3059
    %v3090 = vrsqrt.pop %v3064
    %v3091 = vrsqrt.pop %v3069
    %v3092 = vrsqrt.pop %v3074
    %v3093 = vmul.f32 %v2409, %v3077
    %v3094 = vmul.f32 %v2410, %v3078
    %v3095 = vmul.f32 %v2411, %v3079
    %v3096 = vmul.f32 %v2412, %v3080
    %v3097 = vmul.f32 %v2413, %v3081
    %v3098 = vmul.f32 %v2414, %v3082
    %v3099 = vmul.f32 %v2415, %v3083
    %v3100 = vmul.f32 %v2416, %v3084
    %v3101 = vmul.f32 %v2417, %v3085
    %v3102 = vmul.f32 %v2418, %v3086
    %v3103 = vmul.f32 %v2419, %v3087
    %v3104 = vmul.f32 %v2420, %v3088
    %v3105 = vmul.f32 %v2421, %v3089
    %v3106 = vmul.f32 %v2422, %v3090
    %v3107 = vmul.f32 %v2423, %v3091
    %v3108 = vmul.f32 %v2424, %v3092
    %v3109 = vld [vmem:[%s9] sm:$0xff]
    %v3110 = vld [vmem:[%s9 + $0x8] sm:$0xff]
    %v3111 = vld [vmem:[%s9 + $0x10] sm:$0xff]
    %v3112 = vld [vmem:[%s9 + $0x18] sm:$0xff]
    %v3113 = vld [vmem:[%s9 + $0x20] sm:$0xff]
    %v3114 = vld [vmem:[%s9 + $0x28] sm:$0xff]
    %v3115 = vld [vmem:[%s9 + $0x30] sm:$0xff]
    %v3116 = vld [vmem:[%s9 + $0x38] sm:$0xff]
    %v3117 = vld [vmem:[%s9 + $0x40] sm:$0xff]
    %v3118 = vld [vmem:[%s9 + $0x48] sm:$0xff]
    %v3119 = vld [vmem:[%s9 + $0x50] sm:$0xff]
    %v3120 = vld [vmem:[%s9 + $0x58] sm:$0xff]
    %v3121 = vld [vmem:[%s9 + $0x60] sm:$0xff]
    %v3122 = vld [vmem:[%s9 + $0x68] sm:$0xff]
    %v3123 = vld [vmem:[%s9 + $0x70] sm:$0xff]
    %v3124 = vld [vmem:[%s9 + $0x78] sm:$0xff]
    %3126 = vset.pattern.permute.xlu0 0
    %3127 = vperm.xlu0 %3126, %v3109
    %v3128 = vpop.permute.xlu0 %3127
    %3131 = vset.pattern.permute.xlu0 0
    %3132 = vperm.xlu0 %3131, %v3110
    %v3133 = vpop.permute.xlu0 %3132
    %3136 = vset.pattern.permute.xlu0 0
    %3137 = vperm.xlu0 %3136, %v3111
    %v3138 = vpop.permute.xlu0 %3137
    %3141 = vset.pattern.permute.xlu0 0
    %3142 = vperm.xlu0 %3141, %v3112
    %v3143 = vpop.permute.xlu0 %3142
    %3146 = vset.pattern.permute.xlu0 0
    %3147 = vperm.xlu0 %3146, %v3113
    %v3148 = vpop.permute.xlu0 %3147
    %3151 = vset.pattern.permute.xlu0 0
    %3152 = vperm.xlu0 %3151, %v3114
    %v3153 = vpop.permute.xlu0 %3152
    %3156 = vset.pattern.permute.xlu0 0
    %3157 = vperm.xlu0 %3156, %v3115
    %v3158 = vpop.permute.xlu0 %3157
    %3161 = vset.pattern.permute.xlu0 0
    %3162 = vperm.xlu0 %3161, %v3116
    %v3163 = vpop.permute.xlu0 %3162
    %3166 = vset.pattern.permute.xlu0 0
    %3167 = vperm.xlu0 %3166, %v3117
    %v3168 = vpop.permute.xlu0 %3167
    %3171 = vset.pattern.permute.xlu0 0
    %3172 = vperm.xlu0 %3171, %v3118
    %v3173 = vpop.permute.xlu0 %3172
    %3176 = vset.pattern.permute.xlu0 0
    %3177 = vperm.xlu0 %3176, %v3119
    %v3178 = vpop.permute.xlu0 %3177
    %3181 = vset.pattern.permute.xlu0 0
    %3182 = vperm.xlu0 %3181, %v3120
    %v3183 = vpop.permute.xlu0 %3182
    %3186 = vset.pattern.permute.xlu0 0
    %3187 = vperm.xlu0 %3186, %v3121
    %v3188 = vpop.permute.xlu0 %3187
    %3191 = vset.pattern.permute.xlu0 0
    %3192 = vperm.xlu0 %3191, %v3122
    %v3193 = vpop.permute.xlu0 %3192
    %3196 = vset.pattern.permute.xlu0 0
    %3197 = vperm.xlu0 %3196, %v3123
    %v3198 = vpop.permute.xlu0 %3197
    %3201 = vset.pattern.permute.xlu0 0
    %3202 = vperm.xlu0 %3201, %v3124
    %v3203 = vpop.permute.xlu0 %3202
    %v3205 = vmul.f32 %v3093, %v3128
    %v3206 = vmul.f32 %v3094, %v3133
    %v3207 = vmul.f32 %v3095, %v3138
    %v3208 = vmul.f32 %v3096, %v3143
    %v3209 = vmul.f32 %v3097, %v3148
    %v3210 = vmul.f32 %v3098, %v3153
    %v3211 = vmul.f32 %v3099, %v3158
    %v3212 = vmul.f32 %v3100, %v3163
    %v3213 = vmul.f32 %v3101, %v3168
    %v3214 = vmul.f32 %v3102, %v3173
    %v3215 = vmul.f32 %v3103, %v3178
    %v3216 = vmul.f32 %v3104, %v3183
    %v3217 = vmul.f32 %v3105, %v3188
    %v3218 = vmul.f32 %v3106, %v3193
    %v3219 = vmul.f32 %v3107, %v3198
    %v3220 = vmul.f32 %v3108, %v3203
    %v3221 = vld [vmem:[%s10] sm:$0xff]
    %v3222 = vld [vmem:[%s10 + $0x8] sm:$0xff]
    %v3223 = vld [vmem:[%s10 + $0x10] sm:$0xff]
    %v3224 = vld [vmem:[%s10 + $0x18] sm:$0xff]
    %v3225 = vld [vmem:[%s10 + $0x20] sm:$0xff]
    %v3226 = vld [vmem:[%s10 + $0x28] sm:$0xff]
    %v3227 = vld [vmem:[%s10 + $0x30] sm:$0xff]
    %v3228 = vld [vmem:[%s10 + $0x38] sm:$0xff]
    %v3229 = vld [vmem:[%s10 + $0x40] sm:$0xff]
    %v3230 = vld [vmem:[%s10 + $0x48] sm:$0xff]
    %v3231 = vld [vmem:[%s10 + $0x50] sm:$0xff]
    %v3232 = vld [vmem:[%s10 + $0x58] sm:$0xff]
    %v3233 = vld [vmem:[%s10 + $0x60] sm:$0xff]
    %v3234 = vld [vmem:[%s10 + $0x68] sm:$0xff]
    %v3235 = vld [vmem:[%s10 + $0x70] sm:$0xff]
    %v3236 = vld [vmem:[%s10 + $0x78] sm:$0xff]
    %3238 = vset.pattern.permute.xlu0 0
    %3239 = vperm.xlu0 %3238, %v3221
    %v3240 = vpop.permute.xlu0 %3239
    %3243 = vset.pattern.permute.xlu0 0
    %3244 = vperm.xlu0 %3243, %v3222
    %v3245 = vpop.permute.xlu0 %3244
    %3248 = vset.pattern.permute.xlu0 0
    %3249 = vperm.xlu0 %3248, %v3223
    %v3250 = vpop.permute.xlu0 %3249
    %3253 = vset.pattern.permute.xlu0 0
    %3254 = vperm.xlu0 %3253, %v3224
    %v3255 = vpop.permute.xlu0 %3254
    %3258 = vset.pattern.permute.xlu0 0
    %3259 = vperm.xlu0 %3258, %v3225
    %v3260 = vpop.permute.xlu0 %3259
    %3263 = vset.pattern.permute.xlu0 0
    %3264 = vperm.xlu0 %3263, %v3226
    %v3265 = vpop.permute.xlu0 %3264
    %3268 = vset.pattern.permute.xlu0 0
    %3269 = vperm.xlu0 %3268, %v3227
    %v3270 = vpop.permute.xlu0 %3269
    %3273 = vset.pattern.permute.xlu0 0
    %3274 = vperm.xlu0 %3273, %v3228
    %v3275 = vpop.permute.xlu0 %3274
    %3278 = vset.pattern.permute.xlu0 0
    %3279 = vperm.xlu0 %3278, %v3229
    %v3280 = vpop.permute.xlu0 %3279
    %3283 = vset.pattern.permute.xlu0 0
    %3284 = vperm.xlu0 %3283, %v3230
    %v3285 = vpop.permute.xlu0 %3284
    %3288 = vset.pattern.permute.xlu0 0
    %3289 = vperm.xlu0 %3288, %v3231
    %v3290 = vpop.permute.xlu0 %3289
    %3293 = vset.pattern.permute.xlu0 0
    %3294 = vperm.xlu0 %3293, %v3232
    %v3295 = vpop.permute.xlu0 %3294
    %3298 = vset.pattern.permute.xlu0 0
    %3299 = vperm.xlu0 %3298, %v3233
    %v3300 = vpop.permute.xlu0 %3299
    %3303 = vset.pattern.permute.xlu0 0
    %3304 = vperm.xlu0 %3303, %v3234
    %v3305 = vpop.permute.xlu0 %3304
    %3308 = vset.pattern.permute.xlu0 0
    %3309 = vperm.xlu0 %3308, %v3235
    %v3310 = vpop.permute.xlu0 %3309
    %3313 = vset.pattern.permute.xlu0 0
    %3314 = vperm.xlu0 %3313, %v3236
    %v3315 = vpop.permute.xlu0 %3314
    %v3317 = vadd.f32 %v3205, %v3240
    %v3318 = vadd.f32 %v3206, %v3245
    %v3319 = vadd.f32 %v3207, %v3250
    %v3320 = vadd.f32 %v3208, %v3255
    %v3321 = vadd.f32 %v3209, %v3260
    %v3322 = vadd.f32 %v3210, %v3265
    %v3323 = vadd.f32 %v3211, %v3270
    %v3324 = vadd.f32 %v3212, %v3275
    %v3325 = vadd.f32 %v3213, %v3280
    %v3326 = vadd.f32 %v3214, %v3285
    %v3327 = vadd.f32 %v3215, %v3290
    %v3328 = vadd.f32 %v3216, %v3295
    %v3329 = vadd.f32 %v3217, %v3300
    %v3330 = vadd.f32 %v3218, %v3305
    %v3331 = vadd.f32 %v3219, %v3310
    %v3332 = vadd.f32 %v3220, %v3315
    %v3333 = vxor.u32 %v3317, 2147483648
    %v3334 = vxor.u32 %v3318, 2147483648
    %v3335 = vxor.u32 %v3319, 2147483648
    %v3336 = vxor.u32 %v3320, 2147483648
    %v3337 = vxor.u32 %v3321, 2147483648
    %v3338 = vxor.u32 %v3322, 2147483648
    %v3339 = vxor.u32 %v3323, 2147483648
    %v3340 = vxor.u32 %v3324, 2147483648
    %v3341 = vxor.u32 %v3325, 2147483648
    %v3342 = vxor.u32 %v3326, 2147483648
    %v3343 = vxor.u32 %v3327, 2147483648
    %v3344 = vxor.u32 %v3328, 2147483648
    %v3345 = vxor.u32 %v3329, 2147483648
    %v3346 = vxor.u32 %v3330, 2147483648
    %v3347 = vxor.u32 %v3331, 2147483648
    %v3348 = vxor.u32 %v3332, 2147483648
    %v3349 = vmul.f32 %v3333, 1.442695
    %v3350 = vpow.pop %v3349
    %v3351 = vmul.f32 %v3334, 1.442695
    %v3352 = vpow.pop %v3351
    %v3353 = vmul.f32 %v3335, 1.442695
    %v3354 = vpow.pop %v3353
    %v3355 = vmul.f32 %v3336, 1.442695
    %v3356 = vpow.pop %v3355
    %v3357 = vmul.f32 %v3337, 1.442695
    %v3358 = vpow.pop %v3357
    %v3359 = vmul.f32 %v3338, 1.442695
    %v3360 = vpow.pop %v3359
    %v3361 = vmul.f32 %v3339, 1.442695
    %v3362 = vpow.pop %v3361
    %v3363 = vmul.f32 %v3340, 1.442695
    %v3364 = vpow.pop %v3363
    %v3365 = vmul.f32 %v3341, 1.442695
    %v3366 = vpow.pop %v3365
    %v3367 = vmul.f32 %v3342, 1.442695
    %v3368 = vpow.pop %v3367
    %v3369 = vmul.f32 %v3343, 1.442695
    %v3370 = vpow.pop %v3369
    %v3371 = vmul.f32 %v3344, 1.442695
    %v3372 = vpow.pop %v3371
    %v3373 = vmul.f32 %v3345, 1.442695
    %v3374 = vpow.pop %v3373
    %v3375 = vmul.f32 %v3346, 1.442695
    %v3376 = vpow.pop %v3375
    %v3377 = vmul.f32 %v3347, 1.442695
    %v3378 = vpow.pop %v3377
    %v3379 = vmul.f32 %v3348, 1.442695
    %v3380 = vpow.pop %v3379
    %v3381 = vadd.f32 %v3350, 1.0
    %v3382 = vadd.f32 %v3352, 1.0
    %v3383 = vadd.f32 %v3354, 1.0
    %v3384 = vadd.f32 %v3356, 1.0
    %v3385 = vadd.f32 %v3358, 1.0
    %v3386 = vadd.f32 %v3360, 1.0
    %v3387 = vadd.f32 %v3362, 1.0
    %v3388 = vadd.f32 %v3364, 1.0
    %v3389 = vadd.f32 %v3366, 1.0
    %v3390 = vadd.f32 %v3368, 1.0
    %v3391 = vadd.f32 %v3370, 1.0
    %v3392 = vadd.f32 %v3372, 1.0
    %v3393 = vadd.f32 %v3374, 1.0
    %v3394 = vadd.f32 %v3376, 1.0
    %v3395 = vadd.f32 %v3378, 1.0
    %v3396 = vadd.f32 %v3380, 1.0
    %v3397 = vrcp.pop %v3381
    %v3398 = vmul.f32 1.0, %v3397
    %v3399 = vrcp.pop %v3382
    %v3400 = vmul.f32 1.0, %v3399
    %v3401 = vrcp.pop %v3383
    %v3402 = vmul.f32 1.0, %v3401
    %v3403 = vrcp.pop %v3384
    %v3404 = vmul.f32 1.0, %v3403
    %v3405 = vrcp.pop %v3385
    %v3406 = vmul.f32 1.0, %v3405
    %v3407 = vrcp.pop %v3386
    %v3408 = vmul.f32 1.0, %v3407
    %v3409 = vrcp.pop %v3387
    %v3410 = vmul.f32 1.0, %v3409
    %v3411 = vrcp.pop %v3388
    %v3412 = vmul.f32 1.0, %v3411
    %v3413 = vrcp.pop %v3389
    %v3414 = vmul.f32 1.0, %v3413
    %v3415 = vrcp.pop %v3390
    %v3416 = vmul.f32 1.0, %v3415
    %v3417 = vrcp.pop %v3391
    %v3418 = vmul.f32 1.0, %v3417
    %v3419 = vrcp.pop %v3392
    %v3420 = vmul.f32 1.0, %v3419
    %v3421 = vrcp.pop %v3393
    %v3422 = vmul.f32 1.0, %v3421
    %v3423 = vrcp.pop %v3394
    %v3424 = vmul.f32 1.0, %v3423
    %v3425 = vrcp.pop %v3395
    %v3426 = vmul.f32 1.0, %v3425
    %v3427 = vrcp.pop %v3396
    %v3428 = vmul.f32 1.0, %v3427
    %v3429 = vld [vmem:[%s6] sm:$0xff]
    %v3430 = vld [vmem:[%s6 + $0x8] sm:$0xff]
    %v3431 = vld [vmem:[%s6 + $0x10] sm:$0xff]
    %v3432 = vld [vmem:[%s6 + $0x18] sm:$0xff]
    %v3433 = vld [vmem:[%s6 + $0x20] sm:$0xff]
    %v3434 = vld [vmem:[%s6 + $0x28] sm:$0xff]
    %v3435 = vld [vmem:[%s6 + $0x30] sm:$0xff]
    %v3436 = vld [vmem:[%s6 + $0x38] sm:$0xff]
    %v3437 = vld [vmem:[%s6 + $0x40] sm:$0xff]
    %v3438 = vld [vmem:[%s6 + $0x48] sm:$0xff]
    %v3439 = vld [vmem:[%s6 + $0x50] sm:$0xff]
    %v3440 = vld [vmem:[%s6 + $0x58] sm:$0xff]
    %v3441 = vld [vmem:[%s6 + $0x60] sm:$0xff]
    %v3442 = vld [vmem:[%s6 + $0x68] sm:$0xff]
    %v3443 = vld [vmem:[%s6 + $0x70] sm:$0xff]
    %v3444 = vld [vmem:[%s6 + $0x78] sm:$0xff]
    %v3446 = vsel %vm268, %v3398, 0
    %v3449 = vsel %vm268, %v3400, 0
    %v3452 = vsel %vm268, %v3402, 0
    %v3455 = vsel %vm268, %v3404, 0
    %v3458 = vsel %vm268, %v3406, 0
    %v3461 = vsel %vm268, %v3408, 0
    %v3464 = vsel %vm268, %v3410, 0
    %v3467 = vsel %vm268, %v3412, 0
    %v3470 = vsel %vm268, %v3414, 0
    %v3473 = vsel %vm268, %v3416, 0
    %v3476 = vsel %vm268, %v3418, 0
    %v3479 = vsel %vm268, %v3420, 0
    %v3482 = vsel %vm268, %v3422, 0
    %v3485 = vsel %vm268, %v3424, 0
    %v3488 = vsel %vm268, %v3426, 0
    %v3491 = vsel %vm268, %v3428, 0
    %3493 = vmatprep.subr.mxu0 %v3430
    %3494 = vmatpush1.msra.mxu0 %v3429
    %3495 = vmatprep.subr.mxu0 %v3434
    %3496 = vmatpush1.msra.mxu0 %v3433
    %3497 = vmatprep.subr.mxu0 %v3438
    %3498 = vmatpush1.msra.mxu0 %v3437
    %3499 = vmatprep.subr.mxu0 %v3442
    %3500 = vmatpush1.msra.mxu0 %v3441
    %3501 = vmatprep.subr.mxu0 0.0
    %3502 = vmatpush1.msra.mxu0 0.0
    %3503 = vmatprep.subr.mxu0 0.0
    %3504 = vmatpush1.msra.mxu0 0.0
    %3505 = vmatprep.subr.mxu0 0.0
    %3506 = vmatpush1.msra.mxu0 0.0
    %3507 = vmatprep.subr.mxu0 0.0
    %3508 = vmatpush1.msra.mxu0 0.0
    %3509 = vmatprep.subr.mxu0 0.0
    %3510 = vmatpush1.msra.mxu0 0.0
    %3511 = vmatprep.subr.mxu0 0.0
    %3512 = vmatpush1.msra.mxu0 0.0
    %3513 = vmatprep.subr.mxu0 0.0
    %3514 = vmatpush1.msra.mxu0 0.0
    %3515 = vmatprep.subr.mxu0 0.0
    %3516 = vmatpush1.msra.mxu0 0.0
    %3517 = vmatprep.subr.mxu0 0.0
    %3518 = vmatpush1.msra.mxu0 0.0
    %3519 = vmatprep.subr.mxu0 0.0
    %3520 = vmatpush1.msra.mxu0 0.0
    %3521 = vmatprep.subr.mxu0 0.0
    %3522 = vmatpush1.msra.mxu0 0.0
    %3523 = vmatprep.subr.mxu0 0.0
    %3524 = vmatpush1.msra.mxu0 0.0
    %3525 = vmatprep.subr.mxu0 0.0
    %3526 = vmatpush1.msra.mxu0 0.0
    %3527 = vmatprep.subr.mxu0 0.0
    %3528 = vmatpush1.msra.mxu0 0.0
    %3529 = vmatprep.subr.mxu0 0.0
    %3530 = vmatpush1.msra.mxu0 0.0
    %3531 = vmatprep.subr.mxu0 0.0
    %3532 = vmatpush1.msra.mxu0 0.0
    %3533 = vmatprep.subr.mxu0 0.0
    %3534 = vmatpush1.msra.mxu0 0.0
    %3535 = vmatprep.subr.mxu0 0.0
    %3536 = vmatpush1.msra.mxu0 0.0
    %3537 = vmatprep.subr.mxu0 0.0
    %3538 = vmatpush1.msra.mxu0 0.0
    %3539 = vmatprep.subr.mxu0 0.0
    %3540 = vmatpush1.msra.mxu0 0.0
    %3541 = vmatprep.subr.mxu0 0.0
    %3542 = vmatpush1.msra.mxu0 0.0
    %3543 = vmatprep.subr.mxu0 0.0
    %3544 = vmatpush1.msra.mxu0 0.0
    %3545 = vmatprep.subr.mxu0 0.0
    %3546 = vmatpush1.msra.mxu0 0.0
    %3547 = vmatprep.subr.mxu0 0.0
    %3548 = vmatpush1.msra.mxu0 0.0
    %3549 = vmatprep.subr.mxu0 0.0
    %3550 = vmatpush1.msra.mxu0 0.0
    %3551 = vmatprep.subr.mxu0 0.0
    %3552 = vmatpush1.msra.mxu0 0.0
    %3553 = vmatprep.subr.mxu0 0.0
    %3554 = vmatpush1.msra.mxu0 0.0
    %3555 = vmatprep.subr.mxu0 0.0
    %3556 = vmatpush1.msra.mxu0 0.0
    %3557 = vmatprep.mubr.f32.mxu0 0.0
    %3558 = vmatmul.mubr.f32.gmra.mrb[0].mxu0 %v3446
    %v3559 = vpop.f32.mrb[0].mxu0
    %v3560 = vadd.f32 0.0, %v3559
    %v3561 = vpop.f32.mrb[0].mxu0
    %v3562 = vadd.f32 0.0, %v3561
    %3563 = vmatprep.mubr.f32.mxu0 0.0
    %3564 = vmatmul.mubr.f32.gmra.mrb[0].mxu0 %v3449
    %v3565 = vpop.f32.mrb[0].mxu0
    %v3566 = vadd.f32 0.0, %v3565
    %v3567 = vpop.f32.mrb[0].mxu0
    %v3568 = vadd.f32 0.0, %v3567
    %3569 = vmatprep.mubr.f32.mxu0 0.0
    %3570 = vmatmul.mubr.f32.gmra.mrb[0].mxu0 %v3452
    %v3571 = vpop.f32.mrb[0].mxu0
    %v3572 = vadd.f32 0.0, %v3571
    %v3573 = vpop.f32.mrb[0].mxu0
    %v3574 = vadd.f32 0.0, %v3573
    %3575 = vmatprep.mubr.f32.mxu0 0.0
    %3576 = vmatmul.mubr.f32.gmra.mrb[0].mxu0 %v3455
    %v3577 = vpop.f32.mrb[0].mxu0
    %v3578 = vadd.f32 0.0, %v3577
    %v3579 = vpop.f32.mrb[0].mxu0
    %v3580 = vadd.f32 0.0, %v3579
    %3581 = vmatprep.mubr.f32.mxu0 0.0
    %3582 = vmatmul.mubr.f32.gmra.mrb[0].mxu0 %v3458
    %v3583 = vpop.f32.mrb[0].mxu0
    %v3584 = vadd.f32 0.0, %v3583
    %v3585 = vpop.f32.mrb[0].mxu0
    %v3586 = vadd.f32 0.0, %v3585
    %3587 = vmatprep.mubr.f32.mxu0 0.0
    %3588 = vmatmul.mubr.f32.gmra.mrb[0].mxu0 %v3461
    %v3589 = vpop.f32.mrb[0].mxu0
    %v3590 = vadd.f32 0.0, %v3589
    %v3591 = vpop.f32.mrb[0].mxu0
    %v3592 = vadd.f32 0.0, %v3591
    %3593 = vmatprep.mubr.f32.mxu0 0.0
    %3594 = vmatmul.mubr.f32.gmra.mrb[0].mxu0 %v3464
    %v3595 = vpop.f32.mrb[0].mxu0
    %v3596 = vadd.f32 0.0, %v3595
    %v3597 = vpop.f32.mrb[0].mxu0
    %v3598 = vadd.f32 0.0, %v3597
    %3599 = vmatprep.mubr.f32.mxu0 0.0
    %3600 = vmatmul.mubr.f32.gmra.mrb[0].mxu0 %v3467
    %v3601 = vpop.f32.mrb[0].mxu0
    %v3602 = vadd.f32 0.0, %v3601
    %v3603 = vpop.f32.mrb[0].mxu0
    %v3604 = vadd.f32 0.0, %v3603
    %3605 = vmatprep.mubr.f32.mxu0 0.0
    %3606 = vmatmul.mubr.f32.gmra.mrb[0].mxu0 %v3470
    %v3607 = vpop.f32.mrb[0].mxu0
    %v3608 = vadd.f32 0.0, %v3607
    %v3609 = vpop.f32.mrb[0].mxu0
    %v3610 = vadd.f32 0.0, %v3609
    %3611 = vmatprep.mubr.f32.mxu0 0.0
    %3612 = vmatmul.mubr.f32.gmra.mrb[0].mxu0 %v3473
    %v3613 = vpop.f32.mrb[0].mxu0
    %v3614 = vadd.f32 0.0, %v3613
    %v3615 = vpop.f32.mrb[0].mxu0
    %v3616 = vadd.f32 0.0, %v3615
    %3617 = vmatprep.mubr.f32.mxu0 0.0
    %3618 = vmatmul.mubr.f32.gmra.mrb[0].mxu0 %v3476
    %v3619 = vpop.f32.mrb[0].mxu0
    %v3620 = vadd.f32 0.0, %v3619
    %v3621 = vpop.f32.mrb[0].mxu0
    %v3622 = vadd.f32 0.0, %v3621
    %3623 = vmatprep.mubr.f32.mxu0 0.0
    %3624 = vmatmul.mubr.f32.gmra.mrb[0].mxu0 %v3479
    %v3625 = vpop.f32.mrb[0].mxu0
    %v3626 = vadd.f32 0.0, %v3625
    %v3627 = vpop.f32.mrb[0].mxu0
    %v3628 = vadd.f32 0.0, %v3627
    %3629 = vmatprep.mubr.f32.mxu0 0.0
    %3630 = vmatmul.mubr.f32.gmra.mrb[0].mxu0 %v3482
    %v3631 = vpop.f32.mrb[0].mxu0
    %v3632 = vadd.f32 0.0, %v3631
    %v3633 = vpop.f32.mrb[0].mxu0
    %v3634 = vadd.f32 0.0, %v3633
    %3635 = vmatprep.mubr.f32.mxu0 0.0
    %3636 = vmatmul.mubr.f32.gmra.mrb[0].mxu0 %v3485
    %v3637 = vpop.f32.mrb[0].mxu0
    %v3638 = vadd.f32 0.0, %v3637
    %v3639 = vpop.f32.mrb[0].mxu0
    %v3640 = vadd.f32 0.0, %v3639
    %3641 = vmatprep.mubr.f32.mxu0 0.0
    %3642 = vmatmul.mubr.f32.gmra.mrb[0].mxu0 %v3488
    %v3643 = vpop.f32.mrb[0].mxu0
    %v3644 = vadd.f32 0.0, %v3643
    %v3645 = vpop.f32.mrb[0].mxu0
    %v3646 = vadd.f32 0.0, %v3645
    %3647 = vmatprep.mubr.f32.mxu0 0.0
    %3648 = vmatmul.mubr.f32.gmra.mrb[0].mxu0 %v3491
    %v3649 = vpop.f32.mrb[0].mxu0
    %v3650 = vadd.f32 0.0, %v3649
    %v3651 = vpop.f32.mrb[0].mxu0
    %v3652 = vadd.f32 0.0, %v3651
    %3653 = vdwg.mxu0
    %3654 = vmatprep.subr.mxu0 %v3432
    %3655 = vmatpush1.msra.mxu0 %v3431
    %3656 = vmatprep.subr.mxu0 %v3436
    %3657 = vmatpush1.msra.mxu0 %v3435
    %3658 = vmatprep.subr.mxu0 %v3440
    %3659 = vmatpush1.msra.mxu0 %v3439
    %3660 = vmatprep.subr.mxu0 %v3444
    %3661 = vmatpush1.msra.mxu0 %v3443
    %3662 = vmatprep.subr.mxu0 0.0
    %3663 = vmatpush1.msra.mxu0 0.0
    %3664 = vmatprep.subr.mxu0 0.0
    %3665 = vmatpush1.msra.mxu0 0.0
    %3666 = vmatprep.subr.mxu0 0.0
    %3667 = vmatpush1.msra.mxu0 0.0
    %3668 = vmatprep.subr.mxu0 0.0
    %3669 = vmatpush1.msra.mxu0 0.0
    %3670 = vmatprep.subr.mxu0 0.0
    %3671 = vmatpush1.msra.mxu0 0.0
    %3672 = vmatprep.subr.mxu0 0.0
    %3673 = vmatpush1.msra.mxu0 0.0
    %3674 = vmatprep.subr.mxu0 0.0
    %3675 = vmatpush1.msra.mxu0 0.0
    %3676 = vmatprep.subr.mxu0 0.0
    %3677 = vmatpush1.msra.mxu0 0.0
    %3678 = vmatprep.subr.mxu0 0.0
    %3679 = vmatpush1.msra.mxu0 0.0
    %3680 = vmatprep.subr.mxu0 0.0
    %3681 = vmatpush1.msra.mxu0 0.0
    %3682 = vmatprep.subr.mxu0 0.0
    %3683 = vmatpush1.msra.mxu0 0.0
    %3684 = vmatprep.subr.mxu0 0.0
    %3685 = vmatpush1.msra.mxu0 0.0
    %3686 = vmatprep.subr.mxu0 0.0
    %3687 = vmatpush1.msra.mxu0 0.0
    %3688 = vmatprep.subr.mxu0 0.0
    %3689 = vmatpush1.msra.mxu0 0.0
    %3690 = vmatprep.subr.mxu0 0.0
    %3691 = vmatpush1.msra.mxu0 0.0
    %3692 = vmatprep.subr.mxu0 0.0
    %3693 = vmatpush1.msra.mxu0 0.0
    %3694 = vmatprep.subr.mxu0 0.0
    %3695 = vmatpush1.msra.mxu0 0.0
    %3696 = vmatprep.subr.mxu0 0.0
    %3697 = vmatpush1.msra.mxu0 0.0
    %3698 = vmatprep.subr.mxu0 0.0
    %3699 = vmatpush1.msra.mxu0 0.0
    %3700 = vmatprep.subr.mxu0 0.0
    %3701 = vmatpush1.msra.mxu0 0.0
    %3702 = vmatprep.subr.mxu0 0.0
    %3703 = vmatpush1.msra.mxu0 0.0
    %3704 = vmatprep.subr.mxu0 0.0
    %3705 = vmatpush1.msra.mxu0 0.0
    %3706 = vmatprep.subr.mxu0 0.0
    %3707 = vmatpush1.msra.mxu0 0.0
    %3708 = vmatprep.subr.mxu0 0.0
    %3709 = vmatpush1.msra.mxu0 0.0
    %3710 = vmatprep.subr.mxu0 0.0
    %3711 = vmatpush1.msra.mxu0 0.0
    %3712 = vmatprep.subr.mxu0 0.0
    %3713 = vmatpush1.msra.mxu0 0.0
    %3714 = vmatprep.subr.mxu0 0.0
    %3715 = vmatpush1.msra.mxu0 0.0
    %3716 = vmatprep.subr.mxu0 0.0
    %3717 = vmatpush1.msra.mxu0 0.0
    %3718 = vmatprep.mubr.f32.mxu0 0.0
    %3719 = vmatmul.mubr.f32.gmra.mrb[0].mxu0 %v3446
    %v3720 = vpop.f32.mrb[0].mxu0
    %v3721 = vadd.f32 0.0, %v3720
    %v3722 = vpop.f32.mrb[0].mxu0
    %v3723 = vadd.f32 0.0, %v3722
    %3724 = vmatprep.mubr.f32.mxu0 0.0
    %3725 = vmatmul.mubr.f32.gmra.mrb[0].mxu0 %v3449
    %v3726 = vpop.f32.mrb[0].mxu0
    %v3727 = vadd.f32 0.0, %v3726
    %v3728 = vpop.f32.mrb[0].mxu0
    %v3729 = vadd.f32 0.0, %v3728
    %3730 = vmatprep.mubr.f32.mxu0 0.0
    %3731 = vmatmul.mubr.f32.gmra.mrb[0].mxu0 %v3452
    %v3732 = vpop.f32.mrb[0].mxu0
    %v3733 = vadd.f32 0.0, %v3732
    %v3734 = vpop.f32.mrb[0].mxu0
    %v3735 = vadd.f32 0.0, %v3734
    %3736 = vmatprep.mubr.f32.mxu0 0.0
    %3737 = vmatmul.mubr.f32.gmra.mrb[0].mxu0 %v3455
    %v3738 = vpop.f32.mrb[0].mxu0
    %v3739 = vadd.f32 0.0, %v3738
    %v3740 = vpop.f32.mrb[0].mxu0
    %v3741 = vadd.f32 0.0, %v3740
    %3742 = vmatprep.mubr.f32.mxu0 0.0
    %3743 = vmatmul.mubr.f32.gmra.mrb[0].mxu0 %v3458
    %v3744 = vpop.f32.mrb[0].mxu0
    %v3745 = vadd.f32 0.0, %v3744
    %v3746 = vpop.f32.mrb[0].mxu0
    %v3747 = vadd.f32 0.0, %v3746
    %3748 = vmatprep.mubr.f32.mxu0 0.0
    %3749 = vmatmul.mubr.f32.gmra.mrb[0].mxu0 %v3461
    %v3750 = vpop.f32.mrb[0].mxu0
    %v3751 = vadd.f32 0.0, %v3750
    %v3752 = vpop.f32.mrb[0].mxu0
    %v3753 = vadd.f32 0.0, %v3752
    %3754 = vmatprep.mubr.f32.mxu0 0.0
    %3755 = vmatmul.mubr.f32.gmra.mrb[0].mxu0 %v3464
    %v3756 = vpop.f32.mrb[0].mxu0
    %v3757 = vadd.f32 0.0, %v3756
    %v3758 = vpop.f32.mrb[0].mxu0
    %v3759 = vadd.f32 0.0, %v3758
    %3760 = vmatprep.mubr.f32.mxu0 0.0
    %3761 = vmatmul.mubr.f32.gmra.mrb[0].mxu0 %v3467
    %v3762 = vpop.f32.mrb[0].mxu0
    %v3763 = vadd.f32 0.0, %v3762
    %v3764 = vpop.f32.mrb[0].mxu0
    %v3765 = vadd.f32 0.0, %v3764
    %3766 = vmatprep.mubr.f32.mxu0 0.0
    %3767 = vmatmul.mubr.f32.gmra.mrb[0].mxu0 %v3470
    %v3768 = vpop.f32.mrb[0].mxu0
    %v3769 = vadd.f32 0.0, %v3768
    %v3770 = vpop.f32.mrb[0].mxu0
    %v3771 = vadd.f32 0.0, %v3770
    %3772 = vmatprep.mubr.f32.mxu0 0.0
    %3773 = vmatmul.mubr.f32.gmra.mrb[0].mxu0 %v3473
    %v3774 = vpop.f32.mrb[0].mxu0
    %v3775 = vadd.f32 0.0, %v3774
    %v3776 = vpop.f32.mrb[0].mxu0
    %v3777 = vadd.f32 0.0, %v3776
    %3778 = vmatprep.mubr.f32.mxu0 0.0
    %3779 = vmatmul.mubr.f32.gmra.mrb[0].mxu0 %v3476
    %v3780 = vpop.f32.mrb[0].mxu0
    %v3781 = vadd.f32 0.0, %v3780
    %v3782 = vpop.f32.mrb[0].mxu0
    %v3783 = vadd.f32 0.0, %v3782
    %3784 = vmatprep.mubr.f32.mxu0 0.0
    %3785 = vmatmul.mubr.f32.gmra.mrb[0].mxu0 %v3479
    %v3786 = vpop.f32.mrb[0].mxu0
    %v3787 = vadd.f32 0.0, %v3786
    %v3788 = vpop.f32.mrb[0].mxu0
    %v3789 = vadd.f32 0.0, %v3788
    %3790 = vmatprep.mubr.f32.mxu0 0.0
    %3791 = vmatmul.mubr.f32.gmra.mrb[0].mxu0 %v3482
    %v3792 = vpop.f32.mrb[0].mxu0
    %v3793 = vadd.f32 0.0, %v3792
    %v3794 = vpop.f32.mrb[0].mxu0
    %v3795 = vadd.f32 0.0, %v3794
    %3796 = vmatprep.mubr.f32.mxu0 0.0
    %3797 = vmatmul.mubr.f32.gmra.mrb[0].mxu0 %v3485
    %v3798 = vpop.f32.mrb[0].mxu0
    %v3799 = vadd.f32 0.0, %v3798
    %v3800 = vpop.f32.mrb[0].mxu0
    %v3801 = vadd.f32 0.0, %v3800
    %3802 = vmatprep.mubr.f32.mxu0 0.0
    %3803 = vmatmul.mubr.f32.gmra.mrb[0].mxu0 %v3488
    %v3804 = vpop.f32.mrb[0].mxu0
    %v3805 = vadd.f32 0.0, %v3804
    %v3806 = vpop.f32.mrb[0].mxu0
    %v3807 = vadd.f32 0.0, %v3806
    %3808 = vmatprep.mubr.f32.mxu0 0.0
    %3809 = vmatmul.mubr.f32.gmra.mrb[0].mxu0 %v3491
    %v3810 = vpop.f32.mrb[0].mxu0
    %v3811 = vadd.f32 0.0, %v3810
    %v3812 = vpop.f32.mrb[0].mxu0
    %v3813 = vadd.f32 0.0, %v3812
    %3814 = vdwg.mxu0
    %v3815 = vmul.f32 %v3560, %v3721
    %v3816 = vmul.f32 %v3562, %v3723
    %v3817 = vmul.f32 %v3566, %v3727
    %v3818 = vmul.f32 %v3568, %v3729
    %v3819 = vmul.f32 %v3572, %v3733
    %v3820 = vmul.f32 %v3574, %v3735
    %v3821 = vmul.f32 %v3578, %v3739
    %v3822 = vmul.f32 %v3580, %v3741
    %v3823 = vmul.f32 %v3584, %v3745
    %v3824 = vmul.f32 %v3586, %v3747
    %v3825 = vmul.f32 %v3590, %v3751
    %v3826 = vmul.f32 %v3592, %v3753
    %v3827 = vmul.f32 %v3596, %v3757
    %v3828 = vmul.f32 %v3598, %v3759
    %v3829 = vmul.f32 %v3602, %v3763
    %v3830 = vmul.f32 %v3604, %v3765
    %v3831 = vmul.f32 %v3608, %v3769
    %v3832 = vmul.f32 %v3610, %v3771
    %v3833 = vmul.f32 %v3614, %v3775
    %v3834 = vmul.f32 %v3616, %v3777
    %v3835 = vmul.f32 %v3620, %v3781
    %v3836 = vmul.f32 %v3622, %v3783
    %v3837 = vmul.f32 %v3626, %v3787
    %v3838 = vmul.f32 %v3628, %v3789
    %v3839 = vmul.f32 %v3632, %v3793
    %v3840 = vmul.f32 %v3634, %v3795
    %v3841 = vmul.f32 %v3638, %v3799
    %v3842 = vmul.f32 %v3640, %v3801
    %v3843 = vmul.f32 %v3644, %v3805
    %v3844 = vmul.f32 %v3646, %v3807
    %v3845 = vmul.f32 %v3650, %v3811
    %v3846 = vmul.f32 %v3652, %v3813
    %v3847 = vmul.f32 %v39, %v3815
    %v3848 = vmul.f32 %v40, %v3816
    %v3849 = vmul.f32 %v41, %v3817
    %v3850 = vmul.f32 %v42, %v3818
    %v3851 = vmul.f32 %v43, %v3819
    %v3852 = vmul.f32 %v44, %v3820
    %v3853 = vmul.f32 %v45, %v3821
    %v3854 = vmul.f32 %v46, %v3822
    %v3855 = vmul.f32 %v47, %v3823
    %v3856 = vmul.f32 %v48, %v3824
    %v3857 = vmul.f32 %v49, %v3825
    %v3858 = vmul.f32 %v50, %v3826
    %v3859 = vmul.f32 %v51, %v3827
    %v3860 = vmul.f32 %v52, %v3828
    %v3861 = vmul.f32 %v53, %v3829
    %v3862 = vmul.f32 %v54, %v3830
    %v3863 = vmul.f32 %v55, %v3831
    %v3864 = vmul.f32 %v56, %v3832
    %v3865 = vmul.f32 %v57, %v3833
    %v3866 = vmul.f32 %v58, %v3834
    %v3867 = vmul.f32 %v59, %v3835
    %v3868 = vmul.f32 %v60, %v3836
    %v3869 = vmul.f32 %v61, %v3837
    %v3870 = vmul.f32 %v62, %v3838
    %v3871 = vmul.f32 %v63, %v3839
    %v3872 = vmul.f32 %v64, %v3840
    %v3873 = vmul.f32 %v65, %v3841
    %v3874 = vmul.f32 %v66, %v3842
    %v3875 = vmul.f32 %v67, %v3843
    %v3876 = vmul.f32 %v68, %v3844
    %v3877 = vmul.f32 %v69, %v3845
    %v3878 = vmul.f32 %v70, %v3846
    %3879 = vst [vmem:[#allocation2] sm:$0xff] %v3847
    %3880 = vst [vmem:[#allocation2 + $0x8] sm:$0xff] %v3848
    %3881 = vst [vmem:[#allocation2 + $0x10] sm:$0xff] %v3849
    %3882 = vst [vmem:[#allocation2 + $0x18] sm:$0xff] %v3850
    %3883 = vst [vmem:[#allocation2 + $0x20] sm:$0xff] %v3851
    %3884 = vst [vmem:[#allocation2 + $0x28] sm:$0xff] %v3852
    %3885 = vst [vmem:[#allocation2 + $0x30] sm:$0xff] %v3853
    %3886 = vst [vmem:[#allocation2 + $0x38] sm:$0xff] %v3854
    %3887 = vst [vmem:[#allocation2 + $0x40] sm:$0xff] %v3855
    %3888 = vst [vmem:[#allocation2 + $0x48] sm:$0xff] %v3856
    %3889 = vst [vmem:[#allocation2 + $0x50] sm:$0xff] %v3857
    %3890 = vst [vmem:[#allocation2 + $0x58] sm:$0xff] %v3858
    %3891 = vst [vmem:[#allocation2 + $0x60] sm:$0xff] %v3859
    %3892 = vst [vmem:[#allocation2 + $0x68] sm:$0xff] %v3860
    %3893 = vst [vmem:[#allocation2 + $0x70] sm:$0xff] %v3861
    %3894 = vst [vmem:[#allocation2 + $0x78] sm:$0xff] %v3862
    %3895 = vst [vmem:[#allocation2 + $0x80] sm:$0xff] %v3863
    %3896 = vst [vmem:[#allocation2 + $0x88] sm:$0xff] %v3864
    %3897 = vst [vmem:[#allocation2 + $0x90] sm:$0xff] %v3865
    %3898 = vst [vmem:[#allocation2 + $0x98] sm:$0xff] %v3866
    %3899 = vst [vmem:[#allocation2 + $0xa0] sm:$0xff] %v3867
    %3900 = vst [vmem:[#allocation2 + $0xa8] sm:$0xff] %v3868
    %3901 = vst [vmem:[#allocation2 + $0xb0] sm:$0xff] %v3869
    %3902 = vst [vmem:[#allocation2 + $0xb8] sm:$0xff] %v3870
    %3903 = vst [vmem:[#allocation2 + $0xc0] sm:$0xff] %v3871
    %3904 = vst [vmem:[#allocation2 + $0xc8] sm:$0xff] %v3872
    %3905 = vst [vmem:[#allocation2 + $0xd0] sm:$0xff] %v3873
    %3906 = vst [vmem:[#allocation2 + $0xd8] sm:$0xff] %v3874
    %3907 = vst [vmem:[#allocation2 + $0xe0] sm:$0xff] %v3875
    %3908 = vst [vmem:[#allocation2 + $0xe8] sm:$0xff] %v3876
    %3909 = vst [vmem:[#allocation2 + $0xf0] sm:$0xff] %v3877
    %3910 = vst [vmem:[#allocation2 + $0xf8] sm:$0xff] %v3878
    // Predicated region
    $region46: #{tpu_custom_call.1} parent=1 // pred_check
      _
    $region47: #{tpu_custom_call.1} parent=1 // pred_check_branch
      %3912 = sbr.rel (0) target = $region49
    $region48: #{tpu_custom_call.1} parent=1 // pred_region
      %s3914 = ssub.s32 4096, 4096
      %3915 = vsyncadd [#allocation3], %s3914
      %s3916 = sshll.u32 [#allocation2], 4
      %s3917 = int_to_ptr.vmem [resolvable:$true] %s3916
      %3922 = dma.vmem_to_hbm [thread:$0]  %s3917, 4096, %s11, [#allocation3], 256, 256, 16
    $region49: #{tpu_custom_call.1} parent=1 // pred_fallthru
      _
    // Predicated region
    $region50: #{tpu_custom_call.1} parent=1 // pred_check
      _
    $region51: #{tpu_custom_call.1} parent=1 // pred_check_branch
      %3924 = sbr.rel (0) target = $region53
    $region52: #{tpu_custom_call.1} parent=1 // pred_region
      %3925 = dma.done [#allocation3], 4096
    $region53: #{tpu_custom_call.1} parent=1 // pred_fallthru
      _
    %3926 = vsyncpa [#allocation3], 1

</llo_original>
